<compile_context>
chip_gen: v7x
topology: tpu7x:2x2x1
jax: 0.10.0
libtpu: 0.0.40
codegen_flags: <defaults>
</compile_context>

<pallas_src>
import functools
import math

import jax
import jax.numpy as jnp
from jax.experimental import pallas as pl
from jax.experimental.pallas import tpu as pltpu

NEG_INF = -1e9
LN_EPS = 1e-5


# --------------------------- tile-size helpers ------------------------------

def _row_tile(m, target=256):
    """Largest row tile <= target that divides m and is a multiple of 8.

    Prefers at least two grid steps when possible so both TensorCores get
    work.  Falls back to m itself when m is not sublane-aligned.
    """
    if m % 8 != 0:
        return m
    cand = [t for t in range(8, min(target, m) + 1, 8) if m % t == 0]
    if not cand:
        return m
    t = cand[-1]
    if t == m and len(cand) > 1:
        t = cand[-2]
    return t


def _lane_tile(n, target=512):
    """Largest lane tile <= target that divides n and is a multiple of 128.

    Falls back to the full dimension (required when n is not 128-aligned).
    """
    if n % 128 != 0:
        return n
    cand = [t for t in range(128, min(target, n) + 1, 128) if n % t == 0]
    return cand[-1] if cand else n


# ----------------------------- Pallas kernels --------------------------------

def _linear_kernel(x_ref, w_ref, b_ref, o_ref, acc_ref, *, relu):
    """Tiled matmul + bias (+ optional ReLU) with K-reduction accumulator."""
    @pl.when(pl.program_id(2) == 0)
    def _():
        acc_ref[...] = jnp.zeros_like(acc_ref)

    acc_ref[...] += jnp.dot(x_ref[...], w_ref[...],
                            preferred_element_type=jnp.float32)

    @pl.when(pl.program_id(2) == pl.num_programs(2) - 1)
    def _():
        r = acc_ref[...] + b_ref[...]
        if relu:
            r = jnp.maximum(r, 0.0)
        o_ref[...] = r.astype(o_ref.dtype)


def _ffn_kernel(x_ref, w1_ref, b1_ref, w2_ref, b2_ref, o_ref):
    """Fused linear -> ReLU -> linear over a row tile (weights resident)."""
    h = jnp.dot(x_ref[...], w1_ref[...],
                preferred_element_type=jnp.float32) + b1_ref[...]
    h = jnp.maximum(h, 0.0)
    o_ref[...] = (jnp.dot(h, w2_ref[...],
                          preferred_element_type=jnp.float32) + b2_ref[...])


def _add_ln_kernel(a_ref, b_ref, g_ref, beta_ref, o_ref):
    """Fused residual add + LayerNorm over a row tile."""
    x = a_ref[...] + b_ref[...]
    mu = jnp.mean(x, axis=-1, keepdims=True)
    var = jnp.mean((x - mu) ** 2, axis=-1, keepdims=True)
    o_ref[...] = ((x - mu) * jax.lax.rsqrt(var + LN_EPS)
                  * g_ref[...] + beta_ref[...])


def _attn_core(q, k, v, bias, nhead, scale):
    """Per-head softmax(q k^T * scale + bias) v, heads as static lane slices."""
    dh = q.shape[-1] // nhead
    outs = []
    for h in range(nhead):             # static unroll; slices are lane slices
        lo = h * dh
        qh = q[:, lo:lo + dh]
        kh = k[:, lo:lo + dh]
        vh = v[:, lo:lo + dh]
        s = jax.lax.dot_general(qh, kh, (((1,), (1,)), ((), ())),
                                preferred_element_type=jnp.float32)
        s = s * scale + bias
        s = s - jnp.max(s, axis=-1, keepdims=True)
        p = jnp.exp(s)
        p = p * pl.reciprocal(jnp.sum(p, axis=-1, keepdims=True), approx=True)
        outs.append(jnp.dot(p, vh, preferred_element_type=jnp.float32))
    return jnp.concatenate(outs, axis=-1)          # single lane-dense result


def _self_mha_kernel(qkv_ref, kpad_ref, amask_ref, o_ref, *, nhead, scale):
    """Self-attention for one batch element; qkv packed in the lane dim.

    qkv_ref block is (1, S, 3D) — q/k/v split in-kernel (no wrapper split).
    kpad_ref is (1, 1, S) float (1.0 == masked key), amask_ref is (S, S)
    float (1.0 == masked pair, e.g. causal).
    """
    D = o_ref.shape[-1]
    qkv = qkv_ref[0]                   # (S, 3D)
    q = qkv[:, :D]
    k = qkv[:, D:2 * D]
    v = qkv[:, 2 * D:]
    masked = kpad_ref[0] + amask_ref[...]          # (S, S) via broadcast
    bias = jnp.where(masked > 0.5, NEG_INF, 0.0)
    o_ref[0] = _attn_core(q, k, v, bias, nhead, scale)


def _cross_mha_kernel(q_ref, kv_ref, kpad_ref, amask_ref, o_ref, *,
                      nhead, scale):
    """Cross-attention for one batch element; kv packed in the lane dim."""
    D = q_ref.shape[-1]
    q = q_ref[0]                       # (Sq, D)
    kv = kv_ref[0]                     # (Sk, 2D)
    k = kv[:, :D]
    v = kv[:, D:]
    masked = kpad_ref[0] + amask_ref[...]          # (Sq, Sk)
    bias = jnp.where(masked > 0.5, NEG_INF, 0.0)
    o_ref[0] = _attn_core(q, k, v, bias, nhead, scale)


# ------------------------------- wrappers ------------------------------------

def linear(x, w, b, *, relu=False):
    """y = x @ w + b (+ReLU), tiled over (M, N, K) with a VMEM accumulator."""
    M, K = x.shape
    N = w.shape[1]
    tm = _row_tile(M)
    tn = _lane_tile(N)
    tk = _lane_tile(K)
    grid = (M // tm, N // tn, K // tk)
    kern = functools.partial(_linear_kernel, relu=relu)
    return pl.pallas_call(
        kern,
        grid=grid,
        out_shape=jax.ShapeDtypeStruct((M, N), jnp.float32),
        in_specs=[pl.BlockSpec((tm, tk), lambda i, j, k: (i, k)),
                  pl.BlockSpec((tk, tn), lambda i, j, k: (k, j)),
                  pl.BlockSpec((1, tn), lambda i, j, k: (0, j))],
        out_specs=pl.BlockSpec((tm, tn), lambda i, j, k: (i, j)),
        scratch_shapes=[pltpu.VMEM((tm, tn), jnp.float32)],
        compiler_params=pltpu.CompilerParams(
            dimension_semantics=("parallel", "parallel", "arbitrary")),
    )(x, w, b.reshape(1, N))


def ffn(x, w1, b1, w2, b2):
    """Feed-forward: linear -> ReLU -> linear."""
    M, D = x.shape
    F = w1.shape[1]
    weight_bytes = 4 * (D * F + F * D + F + D)
    if weight_bytes > 8 * 1024 * 1024:
        # Large dim_ff: don't hold both weight matrices resident in VMEM —
        # stream each matmul with K-tiling instead (ReLU fused into the first).
        h = linear(x, w1, b1, relu=True)
        return linear(h, w2, b2)

    tm = _row_tile(M)
    return pl.pallas_call(
        _ffn_kernel,
        grid=(M // tm,),
        out_shape=jax.ShapeDtypeStruct((M, D), jnp.float32),
        in_specs=[pl.BlockSpec((tm, D), lambda i: (i, 0)),
                  pl.BlockSpec((D, F), lambda i: (0, 0)),
                  pl.BlockSpec((1, F), lambda i: (0, 0)),
                  pl.BlockSpec((F, D), lambda i: (0, 0)),
                  pl.BlockSpec((1, D), lambda i: (0, 0))],
        out_specs=pl.BlockSpec((tm, D), lambda i: (i, 0)),
        compiler_params=pltpu.CompilerParams(
            dimension_semantics=("parallel",)),
    )(x, w1, b1.reshape(1, F), w2, b2.reshape(1, D))


def add_layer_norm(a, b, gamma, beta):
    """LayerNorm(a + b) — residual add fused into the norm kernel."""
    shape = a.shape
    D = shape[-1]
    M = a.size // D
    a2 = a.reshape(M, D)
    b2 = b.reshape(M, D)
    tm = _row_tile(M, target=512)
    out = pl.pallas_call(
        _add_ln_kernel,
        grid=(M // tm,),
        out_shape=jax.ShapeDtypeStruct((M, D), jnp.float32),
        in_specs=[pl.BlockSpec((tm, D), lambda i: (i, 0)),
                  pl.BlockSpec((tm, D), lambda i: (i, 0)),
                  pl.BlockSpec((1, D), lambda i: (0, 0)),
                  pl.BlockSpec((1, D), lambda i: (0, 0))],
        out_specs=pl.BlockSpec((tm, D), lambda i: (i, 0)),
        compiler_params=pltpu.CompilerParams(
            dimension_semantics=("parallel",)),
    )(a2, b2, gamma.reshape(1, D), beta.reshape(1, D))
    return out.reshape(shape)


def self_attention(qkv, kpad_f, amask_f, nhead):
    """Self-attention core over packed qkv (B, S, 3D), gridded over batch."""
    B, S, threeD = qkv.shape
    D = threeD // 3
    kern = functools.partial(_self_mha_kernel, nhead=nhead,
                             scale=1.0 / math.sqrt(D // nhead))
    return pl.pallas_call(
        kern,
        grid=(B,),
        out_shape=jax.ShapeDtypeStruct((B, S, D), jnp.float32),
        in_specs=[pl.BlockSpec((1, S, 3 * D), lambda b: (b, 0, 0)),
                  pl.BlockSpec((1, 1, S), lambda b: (b, 0, 0)),
                  pl.BlockSpec((S, S), lambda b: (0, 0))],
        out_specs=pl.BlockSpec((1, S, D), lambda b: (b, 0, 0)),
        compiler_params=pltpu.CompilerParams(
            dimension_semantics=("parallel",)),
    )(qkv, kpad_f, amask_f)


def cross_attention(q, kv, kpad_f, amask_f, nhead):
    """Cross-attention core: q (B, Sq, D), packed kv (B, Sk, 2D)."""
    B, Sq, D = q.shape
    Sk = kv.shape[1]
    kern = functools.partial(_cross_mha_kernel, nhead=nhead,
                             scale=1.0 / math.sqrt(D // nhead))
    return pl.pallas_call(
        kern,
        grid=(B,),
        out_shape=jax.ShapeDtypeStruct((B, Sq, D), jnp.float32),
        in_specs=[pl.BlockSpec((1, Sq, D), lambda b: (b, 0, 0)),
                  pl.BlockSpec((1, Sk, 2 * D), lambda b: (b, 0, 0)),
                  pl.BlockSpec((1, 1, Sk), lambda b: (b, 0, 0)),
                  pl.BlockSpec((Sq, Sk), lambda b: (0, 0))],
        out_specs=pl.BlockSpec((1, Sq, D), lambda b: (b, 0, 0)),
        compiler_params=pltpu.CompilerParams(
            dimension_semantics=("parallel",)),
    )(q, kv, kpad_f, amask_f)


# ------------------------------- model glue ----------------------------------

def self_attention_block(x, p, kpad_f, causal_f, nhead):
    B, S, D = x.shape
    qkv = linear(x.reshape(B * S, D), p["wqkv"], p["bqkv"])   # fused QKV
    o = self_attention(qkv.reshape(B, S, 3 * D), kpad_f, causal_f, nhead)
    return linear(o.reshape(B * S, D), p["wo"], p["bo"]).reshape(B, S, D)


def cross_attention_block(x, memory, p, kpad_f, no_mask_f, nhead):
    B, Sq, D = x.shape
    Sk = memory.shape[1]
    q = linear(x.reshape(B * Sq, D), p["wq"], p["bq"]).reshape(B, Sq, D)
    kv = linear(memory.reshape(B * Sk, D), p["wkv"], p["bkv"])  # fused KV
    o = cross_attention(q, kv.reshape(B, Sk, 2 * D), kpad_f, no_mask_f, nhead)
    return linear(o.reshape(B * Sq, D), p["wo"], p["bo"]).reshape(B, Sq, D)


def decoder_layer_forward(tgt, memory, src_pad_f, tgt_pad_f, causal_f,
                          no_mask_f, p, nhead):
    B, St, D = tgt.shape
    # --- self attention (causal + tgt key padding), post-norm residual ---
    sa = self_attention_block(tgt, p["self_attn"], tgt_pad_f, causal_f, nhead)
    x = add_layer_norm(tgt, sa, p["ln1_g"], p["ln1_b"])
    # --- cross attention (src key padding) ---
    ca = cross_attention_block(x, memory, p["cross_attn"], src_pad_f,
                               no_mask_f, nhead)
    x = add_layer_norm(x, ca, p["ln2_g"], p["ln2_b"])
    # --- feed forward ---
    ff = ffn(x.reshape(B * St, D), p["w1"], p["b1"],
             p["w2"], p["b2"]).reshape(B, St, D)
    x = add_layer_norm(x, ff, p["ln3_g"], p["ln3_b"])
    return x


def decoder_forward(tgt, memory, src_padding_mask, tgt_padding_mask,
                    tgt_subsequent_mask, layer_params, nhead):
    B, St, _ = tgt.shape
    Ss = memory.shape[1]
    # boolean masks -> small float indicator arrays (built once, reused by
    # every layer; never replicated over batch*heads).
    tgt_pad_f = tgt_padding_mask.astype(jnp.float32).reshape(B, 1, St)
    src_pad_f = src_padding_mask.astype(jnp.float32).reshape(B, 1, Ss)
    causal_f = tgt_subsequent_mask.astype(jnp.float32)          # (St, St)
    no_mask_f = jnp.zeros((St, Ss), jnp.float32)

    output = tgt
    for p in layer_params:   # identical to the PyTorch for-loop over layers
        output = decoder_layer_forward(output, memory, src_pad_f, tgt_pad_f,
                                       causal_f, no_mask_f, p, nhead)
    return output


# --------------------------------- params ------------------------------------

def _init_linear(key, fan_in, fan_out):
    w = jax.random.normal(key, (fan_in, fan_out), jnp.float32) / math.sqrt(fan_in)
    b = jnp.zeros((fan_out,), jnp.float32)
    return w, b


def init_layer_params(key, d_model, dim_ff):
    ks = jax.random.split(key, 10)
    wq, bq = _init_linear(ks[0], d_model, d_model)
    wk, bk = _init_linear(ks[1], d_model, d_model)
    wv, bv = _init_linear(ks[2], d_model, d_model)
    wo, bo = _init_linear(ks[3], d_model, d_model)
    self_attn = dict(wqkv=jnp.concatenate([wq, wk, wv], axis=1),
                     bqkv=jnp.concatenate([bq, bk, bv]),
                     wo=wo, bo=bo)
    wq, bq = _init_linear(ks[4], d_model, d_model)
    wk, bk = _init_linear(ks[5], d_model, d_model)
    wv, bv = _init_linear(ks[6], d_model, d_model)
    wo, bo = _init_linear(ks[7], d_model, d_model)
    cross_attn = dict(wq=wq, bq=bq,
                      wkv=jnp.concatenate([wk, wv], axis=1),
                      bkv=jnp.concatenate([bk, bv]),
                      wo=wo, bo=bo)
    p = dict(self_attn=self_attn, cross_attn=cross_attn)
    p["w1"], p["b1"] = _init_linear(ks[8], d_model, dim_ff)
    p["w2"], p["b2"] = _init_linear(ks[9], dim_ff, d_model)
    for i in (1, 2, 3):
        p[f"ln{i}_g"] = jnp.ones((d_model,), jnp.float32)
        p[f"ln{i}_b"] = jnp.zeros((d_model,), jnp.float32)
    return p


# ---------------------------------- main --------------------------------------

if __name__ == "__main__":
    B, S_TGT, S_SRC = 2, 8, 8
    D_MODEL, NHEAD, DIM_FF, NUM_LAYERS = 32, 4, 64, 2

    key = jax.random.PRNGKey(0)
    k_tgt, k_mem, k_par = jax.random.split(key, 3)

    tgt = jax.random.normal(k_tgt, (B, S_TGT, D_MODEL), jnp.float32)
    memory = jax.random.normal(k_mem, (B, S_SRC, D_MODEL), jnp.float32)

    # boolean masks, True == position is masked / padded
    src_padding_mask = jnp.zeros((B, S_SRC), bool).at[:, -1].set(True)
    tgt_padding_mask = jnp.zeros((B, S_TGT), bool).at[:, -1].set(True)
    tgt_subsequent_mask = jnp.triu(jnp.ones((S_TGT, S_TGT), bool), k=1)

    layer_params = [init_layer_params(k, D_MODEL, DIM_FF)
                    for k in jax.random.split(k_par, NUM_LAYERS)]

    fwd = jax.jit(decoder_forward, static_argnames=("nhead",))
    out = fwd(tgt, memory, src_padding_mask, tgt_padding_mask,
              tgt_subsequent_mask, layer_params, nhead=NHEAD)
    jax.block_until_ready(out)
    assert out.shape == (B, S_TGT, D_MODEL)
    assert bool(jnp.all(jnp.isfinite(out)))
    print("KERNEL_OK")
</pallas_src>

<mosaic_0001>
module attributes {stable_mosaic.version = 11 : i64} {
  func.func @_linear_kernel(%arg0: i32, %arg1: i32, %arg2: i32, %arg3: memref<8x32xf32, #tpu.memory_space<vmem>>, %arg4: memref<32x96xf32, #tpu.memory_space<vmem>>, %arg5: memref<1x96xf32, #tpu.memory_space<vmem>>, %arg6: memref<8x96xf32, #tpu.memory_space<vmem>>, %arg7: memref<8x96xf32, #tpu.memory_space<vmem>>) attributes {dimension_semantics = [#tpu.dimension_semantics<parallel>, #tpu.dimension_semantics<parallel>, #tpu.dimension_semantics<arbitrary>], iteration_bounds = array<i64: 2, 1, 1>, scalar_prefetch = 0 : i64, scratch_operands = 1 : i64, tpu.core_type = #tpu.core_type<tc>, window_params = [{transform_indices = @transform_0, window_bounds = array<i64: 8, 32>}, {transform_indices = @transform_1, window_bounds = array<i64: 32, 96>}, {transform_indices = @transform_2, window_bounds = array<i64: 1, 96>}, {transform_indices = @transform_3, window_bounds = array<i64: 8, 96>}]} {
    %c0_i32 = arith.constant 0 : i32
    %0 = arith.cmpi eq, %arg2, %c0_i32 : i32
    %1 = arith.extui %0 : i1 to i32
    %c0_i32_0 = arith.constant 0 : i32
    %2 = arith.cmpi ne, %1, %c0_i32_0 : i32
    scf.if %2 {
      %cst_10 = arith.constant 0.000000e+00 : f32
      %12 = vector.broadcast %cst_10 : f32 to vector<8x96xf32>
      %c0_11 = arith.constant 0 : index
      %c0_12 = arith.constant 0 : index
      %13 = vector.load %arg7[%c0_11, %c0_12] : memref<8x96xf32, #tpu.memory_space<vmem>>, vector<8x96xf32>
      tpu.vector_store %arg7[%c0_11, %c0_12], %12 {strides = array<i32>} : memref<8x96xf32, #tpu.memory_space<vmem>>, vector<8x96xf32>,
    } else {
    }
    %c0 = arith.constant 0 : index
    %c0_1 = arith.constant 0 : index
    %3 = vector.load %arg7[%c0, %c0_1] : memref<8x96xf32, #tpu.memory_space<vmem>>, vector<8x96xf32>
    %c0_2 = arith.constant 0 : index
    %c0_3 = arith.constant 0 : index
    %4 = vector.load %arg3[%c0_2, %c0_3] : memref<8x32xf32, #tpu.memory_space<vmem>>, vector<8x32xf32>
    %c0_4 = arith.constant 0 : index
    %c0_5 = arith.constant 0 : index
    %5 = vector.load %arg4[%c0_4, %c0_5] : memref<32x96xf32, #tpu.memory_space<vmem>>, vector<32x96xf32>
    %cst = arith.constant dense<0.000000e+00> : vector<8x96xf32>
    %6 = tpu.matmul %4, %5, %cst {dimension_numbers = #tpu.dot_dimension_numbers<[1], [0], [0], [1], [0, 0, 1, 1], [], []>} : vector<8x32xf32>, vector<32x96xf32>, vector<8x96xf32> -> vector<8x96xf32>
    %7 = arith.addf %3, %6 : vector<8x96xf32>
    %c0_6 = arith.constant 0 : index
    %c0_7 = arith.constant 0 : index
    %8 = vector.load %arg7[%c0_6, %c0_7] : memref<8x96xf32, #tpu.memory_space<vmem>>, vector<8x96xf32>
    tpu.vector_store %arg7[%c0_6, %c0_7], %7 {strides = array<i32>} : memref<8x96xf32, #tpu.memory_space<vmem>>, vector<8x96xf32>,
    %c0_i32_8 = arith.constant 0 : i32
    %9 = arith.cmpi eq, %arg2, %c0_i32_8 : i32
    %10 = arith.extui %9 : i1 to i32
    %c0_i32_9 = arith.constant 0 : i32
    %11 = arith.cmpi ne, %10, %c0_i32_9 : i32
    scf.if %11 {
      %c0_10 = arith.constant 0 : index
      %c0_11 = arith.constant 0 : index
      %12 = vector.load %arg7[%c0_10, %c0_11] : memref<8x96xf32, #tpu.memory_space<vmem>>, vector<8x96xf32>
      %c0_12 = arith.constant 0 : index
      %c0_13 = arith.constant 0 : index
      %13 = vector.load %arg5[%c0_12, %c0_13] : memref<1x96xf32, #tpu.memory_space<vmem>>, vector<1x96xf32>
      %14 = vector.broadcast %13 : vector<1x96xf32> to vector<8x96xf32>
      %15 = arith.addf %12, %14 : vector<8x96xf32>
      %c0_14 = arith.constant 0 : index
      %c0_15 = arith.constant 0 : index
      %16 = vector.load %arg6[%c0_14, %c0_15] : memref<8x96xf32, #tpu.memory_space<vmem>>, vector<8x96xf32>
      tpu.vector_store %arg6[%c0_14, %c0_15], %15 {strides = array<i32>} : memref<8x96xf32, #tpu.memory_space<vmem>>, vector<8x96xf32>,
    } else {
    }
    return
  }
  func.func @transform_0(%arg0: i32, %arg1: i32, %arg2: i32) -> (i32, i32) {
    %c0_i32 = arith.constant 0 : i32
    return %arg0, %arg2 : i32, i32
  }
  func.func @transform_1(%arg0: i32, %arg1: i32, %arg2: i32) -> (i32, i32) {
    %c0_i32 = arith.constant 0 : i32
    return %arg2, %arg1 : i32, i32
  }
  func.func @transform_2(%arg0: i32, %arg1: i32, %arg2: i32) -> (i32, i32) {
    %c0_i32 = arith.constant 0 : i32
    %c0_i32_0 = arith.constant 0 : i32
    return %c0_i32, %arg1 : i32, i32
  }
  func.func @transform_3(%arg0: i32, %arg1: i32, %arg2: i32) -> (i32, i32) {
    %c0_i32 = arith.constant 0 : i32
    return %arg0, %arg1 : i32, i32
  }
}

module attributes {stable_mosaic.version = 11 : i64} {
  func.func @_self_mha_kernel(%arg0: i32, %arg1: memref<1x8x96xf32, #tpu.memory_space<vmem>>, %arg2: memref<1x1x8xf32, #tpu.memory_space<vmem>>, %arg3: memref<8x8xf32, #tpu.memory_space<vmem>>, %arg4: memref<1x8x32xf32, #tpu.memory_space<vmem>>) attributes {dimension_semantics = [#tpu.dimension_semantics<parallel>], iteration_bounds = array<i64: 2>, scalar_prefetch = 0 : i64, scratch_operands = 0 : i64, tpu.core_type = #tpu.core_type<tc>, window_params = [{transform_indices = @transform_0, window_bounds = array<i64: 1, 8, 96>}, {transform_indices = @transform_1, window_bounds = array<i64: 1, 1, 8>}, {pipeline_mode = #tpu.pipeline_mode<synchronous>, transform_indices = @transform_2, window_bounds = array<i64: 8, 8>}, {transform_indices = @transform_3, window_bounds = array<i64: 1, 8, 32>}]} {
    %c0 = arith.constant 0 : index
    %c0_0 = arith.constant 0 : index
    %c0_1 = arith.constant 0 : index
    %0 = vector.load %arg1[%c0, %c0_0, %c0_1] : memref<1x8x96xf32, #tpu.memory_space<vmem>>, vector<1x8x96xf32>
    %1 = vector.shape_cast %0 : vector<1x8x96xf32> to vector<8x96xf32>
    %2 = vector.extract_strided_slice %1 {offsets = [0, 0], sizes = [8, 32], strides = [1, 1]} : vector<8x96xf32> to vector<8x32xf32>
    %3 = vector.extract_strided_slice %1 {offsets = [0, 32], sizes = [8, 32], strides = [1, 1]} : vector<8x96xf32> to vector<8x32xf32>
    %4 = vector.extract_strided_slice %1 {offsets = [0, 64], sizes = [8, 32], strides = [1, 1]} : vector<8x96xf32> to vector<8x32xf32>
    %c0_2 = arith.constant 0 : index
    %c0_3 = arith.constant 0 : index
    %c0_4 = arith.constant 0 : index
    %5 = vector.load %arg2[%c0_2, %c0_3, %c0_4] : memref<1x1x8xf32, #tpu.memory_space<vmem>>, vector<1x1x8xf32>
    %6 = vector.shape_cast %5 : vector<1x1x8xf32> to vector<1x8xf32>
    %c0_5 = arith.constant 0 : index
    %c0_6 = arith.constant 0 : index
    %7 = vector.load %arg3[%c0_5, %c0_6] : memref<8x8xf32, #tpu.memory_space<vmem>>, vector<8x8xf32>
    %8 = vector.broadcast %6 : vector<1x8xf32> to vector<8x8xf32>
    %9 = arith.addf %8, %7 : vector<8x8xf32>
    %cst = arith.constant 5.000000e-01 : f32
    %10 = vector.broadcast %cst : f32 to vector<8x8xf32>
    %11 = arith.cmpf ogt, %9, %10 : vector<8x8xf32>
    %cst_7 = arith.constant -1.000000e+09 : f32
    %cst_8 = arith.constant 0.000000e+00 : f32
    %12 = vector.broadcast %cst_7 : f32 to vector<8x8xf32>
    %13 = vector.broadcast %cst_8 : f32 to vector<8x8xf32>
    %14 = arith.select %11, %12, %13 : vector<8x8xi1>, vector<8x8xf32>
    %15 = vector.extract_strided_slice %2 {offsets = [0, 0], sizes = [8, 8], strides = [1, 1]} : vector<8x32xf32> to vector<8x8xf32>
    %16 = vector.extract_strided_slice %3 {offsets = [0, 0], sizes = [8, 8], strides = [1, 1]} : vector<8x32xf32> to vector<8x8xf32>
    %17 = vector.extract_strided_slice %4 {offsets = [0, 0], sizes = [8, 8], strides = [1, 1]} : vector<8x32xf32> to vector<8x8xf32>
    %cst_9 = arith.constant dense<0.000000e+00> : vector<8x8xf32>
    %18 = tpu.matmul %15, %16, %cst_9 {dimension_numbers = #tpu.dot_dimension_numbers<[1], [1], [0], [0], [0, 0, 1, 0], [], []>} : vector<8x8xf32>, vector<8x8xf32>, vector<8x8xf32> -> vector<8x8xf32>
    %cst_10 = arith.constant 0.353553385 : f32
    %19 = vector.broadcast %cst_10 : f32 to vector<8x8xf32>
    %20 = arith.mulf %18, %19 : vector<8x8xf32>
    %21 = arith.addf %20, %14 : vector<8x8xf32>
    %cst_11 = arith.constant dense<0xFF800000> : vector<8xf32>
    %22 = vector.multi_reduction <maximumf>, %21, %cst_11 [1] : vector<8x8xf32> to vector<8xf32>
    %23 = vector.shape_cast %22 : vector<8xf32> to vector<8x1xf32>
    %24 = vector.broadcast %23 : vector<8x1xf32> to vector<8x8xf32>
    %25 = arith.subf %21, %24 : vector<8x8xf32>
    %26 = math.exp %25 : vector<8x8xf32>
    %cst_12 = arith.constant dense<0.000000e+00> : vector<8xf32>
    %27 = vector.multi_reduction <add>, %26, %cst_12 [1] : vector<8x8xf32> to vector<8xf32>
    %28 = vector.shape_cast %27 : vector<8xf32> to vector<8x1xf32>
    %29 = tpu.reciprocal %28 {approx = true} : vector<8x1xf32> -> vector<8x1xf32>
    %30 = vector.broadcast %29 : vector<8x1xf32> to vector<8x8xf32>
    %31 = arith.mulf %26, %30 : vector<8x8xf32>
    %cst_13 = arith.constant dense<0.000000e+00> : vector<8x8xf32>
    %32 = tpu.matmul %31, %17, %cst_13 {dimension_numbers = #tpu.dot_dimension_numbers<[1], [0], [0], [1], [0, 0, 1, 1], [], []>} : vector<8x8xf32>, vector<8x8xf32>, vector<8x8xf32> -> vector<8x8xf32>
    %33 = vector.extract_strided_slice %2 {offsets = [0, 8], sizes = [8, 8], strides = [1, 1]} : vector<8x32xf32> to vector<8x8xf32>
    %34 = vector.extract_strided_slice %3 {offsets = [0, 8], sizes = [8, 8], strides = [1, 1]} : vector<8x32xf32> to vector<8x8xf32>
    %35 = vector.extract_strided_slice %4 {offsets = [0, 8], sizes = [8, 8], strides = [1, 1]} : vector<8x32xf32> to vector<8x8xf32>
    %cst_14 = arith.constant dense<0.000000e+00> : vector<8x8xf32>
    %36 = tpu.matmul %33, %34, %cst_14 {dimension_numbers = #tpu.dot_dimension_numbers<[1], [1], [0], [0], [0, 0, 1, 0], [], []>} : vector<8x8xf32>, vector<8x8xf32>, vector<8x8xf32> -> vector<8x8xf32>
    %cst_15 = arith.constant 0.353553385 : f32
    %37 = vector.broadcast %cst_15 : f32 to vector<8x8xf32>
    %38 = arith.mulf %36, %37 : vector<8x8xf32>
    %39 = arith.addf %38, %14 : vector<8x8xf32>
    %cst_16 = arith.constant dense<0xFF800000> : vector<8xf32>
    %40 = vector.multi_reduction <maximumf>, %39, %cst_16 [1] : vector<8x8xf32> to vector<8xf32>
    %41 = vector.shape_cast %40 : vector<8xf32> to vector<8x1xf32>
    %42 = vector.broadcast %41 : vector<8x1xf32> to vector<8x8xf32>
    %43 = arith.subf %39, %42 : vector<8x8xf32>
    %44 = math.exp %43 : vector<8x8xf32>
    %cst_17 = arith.constant dense<0.000000e+00> : vector<8xf32>
    %45 = vector.multi_reduction <add>, %44, %cst_17 [1] : vector<8x8xf32> to vector<8xf32>
    %46 = vector.shape_cast %45 : vector<8xf32> to vector<8x1xf32>
    %47 = tpu.reciprocal %46 {approx = true} : vector<8x1xf32> -> vector<8x1xf32>
    %48 = vector.broadcast %47 : vector<8x1xf32> to vector<8x8xf32>
    %49 = arith.mulf %44, %48 : vector<8x8xf32>
    %cst_18 = arith.constant dense<0.000000e+00> : vector<8x8xf32>
    %50 = tpu.matmul %49, %35, %cst_18 {dimension_numbers = #tpu.dot_dimension_numbers<[1], [0], [0], [1], [0, 0, 1, 1], [], []>} : vector<8x8xf32>, vector<8x8xf32>, vector<8x8xf32> -> vector<8x8xf32>
    %51 = vector.extract_strided_slice %2 {offsets = [0, 16], sizes = [8, 8], strides = [1, 1]} : vector<8x32xf32> to vector<8x8xf32>
    %52 = vector.extract_strided_slice %3 {offsets = [0, 16], sizes = [8, 8], strides = [1, 1]} : vector<8x32xf32> to vector<8x8xf32>
    %53 = vector.extract_strided_slice %4 {offsets = [0, 16], sizes = [8, 8], strides = [1, 1]} : vector<8x32xf32> to vector<8x8xf32>
    %cst_19 = arith.constant dense<0.000000e+00> : vector<8x8xf32>
    %54 = tpu.matmul %51, %52, %cst_19 {dimension_numbers = #tpu.dot_dimension_numbers<[1], [1], [0], [0], [0, 0, 1, 0], [], []>} : vector<8x8xf32>, vector<8x8xf32>, vector<8x8xf32> -> vector<8x8xf32>
    %cst_20 = arith.constant 0.353553385 : f32
    %55 = vector.broadcast %cst_20 : f32 to vector<8x8xf32>
    %56 = arith.mulf %54, %55 : vector<8x8xf32>
    %57 = arith.addf %56, %14 : vector<8x8xf32>
    %cst_21 = arith.constant dense<0xFF800000> : vector<8xf32>
    %58 = vector.multi_reduction <maximumf>, %57, %cst_21 [1] : vector<8x8xf32> to vector<8xf32>
    %59 = vector.shape_cast %58 : vector<8xf32> to vector<8x1xf32>
    %60 = vector.broadcast %59 : vector<8x1xf32> to vector<8x8xf32>
    %61 = arith.subf %57, %60 : vector<8x8xf32>
    %62 = math.exp %61 : vector<8x8xf32>
    %cst_22 = arith.constant dense<0.000000e+00> : vector<8xf32>
    %63 = vector.multi_reduction <add>, %62, %cst_22 [1] : vector<8x8xf32> to vector<8xf32>
    %64 = vector.shape_cast %63 : vector<8xf32> to vector<8x1xf32>
    %65 = tpu.reciprocal %64 {approx = true} : vector<8x1xf32> -> vector<8x1xf32>
    %66 = vector.broadcast %65 : vector<8x1xf32> to vector<8x8xf32>
    %67 = arith.mulf %62, %66 : vector<8x8xf32>
    %cst_23 = arith.constant dense<0.000000e+00> : vector<8x8xf32>
    %68 = tpu.matmul %67, %53, %cst_23 {dimension_numbers = #tpu.dot_dimension_numbers<[1], [0], [0], [1], [0, 0, 1, 1], [], []>} : vector<8x8xf32>, vector<8x8xf32>, vector<8x8xf32> -> vector<8x8xf32>
    %69 = vector.extract_strided_slice %2 {offsets = [0, 24], sizes = [8, 8], strides = [1, 1]} : vector<8x32xf32> to vector<8x8xf32>
    %70 = vector.extract_strided_slice %3 {offsets = [0, 24], sizes = [8, 8], strides = [1, 1]} : vector<8x32xf32> to vector<8x8xf32>
    %71 = vector.extract_strided_slice %4 {offsets = [0, 24], sizes = [8, 8], strides = [1, 1]} : vector<8x32xf32> to vector<8x8xf32>
    %cst_24 = arith.constant dense<0.000000e+00> : vector<8x8xf32>
    %72 = tpu.matmul %69, %70, %cst_24 {dimension_numbers = #tpu.dot_dimension_numbers<[1], [1], [0], [0], [0, 0, 1, 0], [], []>} : vector<8x8xf32>, vector<8x8xf32>, vector<8x8xf32> -> vector<8x8xf32>
    %cst_25 = arith.constant 0.353553385 : f32
    %73 = vector.broadcast %cst_25 : f32 to vector<8x8xf32>
    %74 = arith.mulf %72, %73 : vector<8x8xf32>
    %75 = arith.addf %74, %14 : vector<8x8xf32>
    %cst_26 = arith.constant dense<0xFF800000> : vector<8xf32>
    %76 = vector.multi_reduction <maximumf>, %75, %cst_26 [1] : vector<8x8xf32> to vector<8xf32>
    %77 = vector.shape_cast %76 : vector<8xf32> to vector<8x1xf32>
    %78 = vector.broadcast %77 : vector<8x1xf32> to vector<8x8xf32>
    %79 = arith.subf %75, %78 : vector<8x8xf32>
    %80 = math.exp %79 : vector<8x8xf32>
    %cst_27 = arith.constant dense<0.000000e+00> : vector<8xf32>
    %81 = vector.multi_reduction <add>, %80, %cst_27 [1] : vector<8x8xf32> to vector<8xf32>
    %82 = vector.shape_cast %81 : vector<8xf32> to vector<8x1xf32>
    %83 = tpu.reciprocal %82 {approx = true} : vector<8x1xf32> -> vector<8x1xf32>
    %84 = vector.broadcast %83 : vector<8x1xf32> to vector<8x8xf32>
    %85 = arith.mulf %80, %84 : vector<8x8xf32>
    %cst_28 = arith.constant dense<0.000000e+00> : vector<8x8xf32>
    %86 = tpu.matmul %85, %71, %cst_28 {dimension_numbers = #tpu.dot_dimension_numbers<[1], [0], [0], [1], [0, 0, 1, 1], [], []>} : vector<8x8xf32>, vector<8x8xf32>, vector<8x8xf32> -> vector<8x8xf32>
    %87 = tpu.concatenate %32, %50, %68, %86 in 1 : vector<8x8xf32>, vector<8x8xf32>, vector<8x8xf32>, vector<8x8xf32> -> vector<8x32xf32>
    %c0_29 = arith.constant 0 : index
    %c0_30 = arith.constant 0 : index
    %c0_31 = arith.constant 0 : index
    %88 = vector.load %arg4[%c0_29, %c0_30, %c0_31] : memref<1x8x32xf32, #tpu.memory_space<vmem>>, vector<1x8x32xf32>
    %89 = vector.shape_cast %88 : vector<1x8x32xf32> to vector<8x32xf32>
    %90 = vector.shape_cast %87 : vector<8x32xf32> to vector<1x8x32xf32>
    tpu.vector_store %arg4[%c0_29, %c0_30, %c0_31], %90 {strides = array<i32>} : memref<1x8x32xf32, #tpu.memory_space<vmem>>, vector<1x8x32xf32>,
    return
  }
  func.func @transform_0(%arg0: i32) -> (i32, i32, i32) {
    %c0_i32 = arith.constant 0 : i32
    %c0_i32_0 = arith.constant 0 : i32
    %c0_i32_1 = arith.constant 0 : i32
    return %arg0, %c0_i32, %c0_i32_0 : i32, i32, i32
  }
  func.func @transform_1(%arg0: i32) -> (i32, i32, i32) {
    %c0_i32 = arith.constant 0 : i32
    %c0_i32_0 = arith.constant 0 : i32
    %c0_i32_1 = arith.constant 0 : i32
    return %arg0, %c0_i32, %c0_i32_0 : i32, i32, i32
  }
  func.func @transform_2(%arg0: i32) -> (i32, i32) {
    %c0_i32 = arith.constant 0 : i32
    %c0_i32_0 = arith.constant 0 : i32
    %c0_i32_1 = arith.constant 0 : i32
    return %c0_i32, %c0_i32_0 : i32, i32
  }
  func.func @transform_3(%arg0: i32) -> (i32, i32, i32) {
    %c0_i32 = arith.constant 0 : i32
    %c0_i32_0 = arith.constant 0 : i32
    %c0_i32_1 = arith.constant 0 : i32
    return %arg0, %c0_i32, %c0_i32_0 : i32, i32, i32
  }
}

module attributes {stable_mosaic.version = 11 : i64} {
  func.func @_add_ln_kernel(%arg0: i32, %arg1: memref<8x32xf32, #tpu.memory_space<vmem>>, %arg2: memref<8x32xf32, #tpu.memory_space<vmem>>, %arg3: memref<1x32xf32, #tpu.memory_space<vmem>>, %arg4: memref<1x32xf32, #tpu.memory_space<vmem>>, %arg5: memref<8x32xf32, #tpu.memory_space<vmem>>) attributes {dimension_semantics = [#tpu.dimension_semantics<parallel>], iteration_bounds = array<i64: 2>, scalar_prefetch = 0 : i64, scratch_operands = 0 : i64, tpu.core_type = #tpu.core_type<tc>, window_params = [{transform_indices = @transform_0, window_bounds = array<i64: 8, 32>}, {transform_indices = @transform_1, window_bounds = array<i64: 8, 32>}, {pipeline_mode = #tpu.pipeline_mode<synchronous>, transform_indices = @transform_2, window_bounds = array<i64: 1, 32>}, {pipeline_mode = #tpu.pipeline_mode<synchronous>, transform_indices = @transform_3, window_bounds = array<i64: 1, 32>}, {transform_indices = @transform_4, window_bounds = array<i64: 8, 32>}]} {
    %c0 = arith.constant 0 : index
    %c0_0 = arith.constant 0 : index
    %0 = vector.load %arg1[%c0, %c0_0] : memref<8x32xf32, #tpu.memory_space<vmem>>, vector<8x32xf32>
    %c0_1 = arith.constant 0 : index
    %c0_2 = arith.constant 0 : index
    %1 = vector.load %arg2[%c0_1, %c0_2] : memref<8x32xf32, #tpu.memory_space<vmem>>, vector<8x32xf32>
    %2 = arith.addf %0, %1 : vector<8x32xf32>
    %cst = arith.constant dense<0.000000e+00> : vector<8xf32>
    %3 = vector.multi_reduction <add>, %2, %cst [1] : vector<8x32xf32> to vector<8xf32>
    %4 = vector.shape_cast %3 : vector<8xf32> to vector<8x1xf32>
    %cst_3 = arith.constant 3.200000e+01 : f32
    %5 = vector.broadcast %cst_3 : f32 to vector<8x1xf32>
    %6 = arith.divf %4, %5 : vector<8x1xf32>
    %7 = vector.broadcast %6 : vector<8x1xf32> to vector<8x32xf32>
    %8 = arith.subf %2, %7 : vector<8x32xf32>
    %9 = arith.mulf %8, %8 : vector<8x32xf32>
    %cst_4 = arith.constant dense<0.000000e+00> : vector<8xf32>
    %10 = vector.multi_reduction <add>, %9, %cst_4 [1] : vector<8x32xf32> to vector<8xf32>
    %11 = vector.shape_cast %10 : vector<8xf32> to vector<8x1xf32>
    %cst_5 = arith.constant 3.200000e+01 : f32
    %12 = vector.broadcast %cst_5 : f32 to vector<8x1xf32>
    %13 = arith.divf %11, %12 : vector<8x1xf32>
    %14 = vector.broadcast %6 : vector<8x1xf32> to vector<8x32xf32>
    %15 = arith.subf %2, %14 : vector<8x32xf32>
    %cst_6 = arith.constant 9.99999974E-6 : f32
    %16 = vector.broadcast %cst_6 : f32 to vector<8x1xf32>
    %17 = arith.addf %13, %16 : vector<8x1xf32>
    %18 = math.rsqrt %17 : vector<8x1xf32>
    %19 = vector.broadcast %18 : vector<8x1xf32> to vector<8x32xf32>
    %20 = arith.mulf %15, %19 : vector<8x32xf32>
    %c0_7 = arith.constant 0 : index
    %c0_8 = arith.constant 0 : index
    %21 = vector.load %arg3[%c0_7, %c0_8] : memref<1x32xf32, #tpu.memory_space<vmem>>, vector<1x32xf32>
    %22 = vector.broadcast %21 : vector<1x32xf32> to vector<8x32xf32>
    %23 = arith.mulf %20, %22 : vector<8x32xf32>
    %c0_9 = arith.constant 0 : index
    %c0_10 = arith.constant 0 : index
    %24 = vector.load %arg4[%c0_9, %c0_10] : memref<1x32xf32, #tpu.memory_space<vmem>>, vector<1x32xf32>
    %25 = vector.broadcast %24 : vector<1x32xf32> to vector<8x32xf32>
    %26 = arith.addf %23, %25 : vector<8x32xf32>
    %c0_11 = arith.constant 0 : index
    %c0_12 = arith.constant 0 : index
    %27 = vector.load %arg5[%c0_11, %c0_12] : memref<8x32xf32, #tpu.memory_space<vmem>>, vector<8x32xf32>
    tpu.vector_store %arg5[%c0_11, %c0_12], %26 {strides = array<i32>} : memref<8x32xf32, #tpu.memory_space<vmem>>, vector<8x32xf32>,
    return
  }
  func.func @transform_0(%arg0: i32) -> (i32, i32) {
    %c0_i32 = arith.constant 0 : i32
    %c0_i32_0 = arith.constant 0 : i32
    return %arg0, %c0_i32 : i32, i32
  }
  func.func @transform_1(%arg0: i32) -> (i32, i32) {
    %c0_i32 = arith.constant 0 : i32
    %c0_i32_0 = arith.constant 0 : i32
    return %arg0, %c0_i32 : i32, i32
  }
  func.func @transform_2(%arg0: i32) -> (i32, i32) {
    %c0_i32 = arith.constant 0 : i32
    %c0_i32_0 = arith.constant 0 : i32
    %c0_i32_1 = arith.constant 0 : i32
    return %c0_i32, %c0_i32_0 : i32, i32
  }
  func.func @transform_3(%arg0: i32) -> (i32, i32) {
    %c0_i32 = arith.constant 0 : i32
    %c0_i32_0 = arith.constant 0 : i32
    %c0_i32_1 = arith.constant 0 : i32
    return %c0_i32, %c0_i32_0 : i32, i32
  }
  func.func @transform_4(%arg0: i32) -> (i32, i32) {
    %c0_i32 = arith.constant 0 : i32
    %c0_i32_0 = arith.constant 0 : i32
    return %arg0, %c0_i32 : i32, i32
  }
}

module attributes {stable_mosaic.version = 11 : i64} {
  func.func @_linear_kernel(%arg0: i32, %arg1: i32, %arg2: i32, %arg3: memref<8x32xf32, #tpu.memory_space<vmem>>, %arg4: memref<32x32xf32, #tpu.memory_space<vmem>>, %arg5: memref<1x32xf32, #tpu.memory_space<vmem>>, %arg6: memref<8x32xf32, #tpu.memory_space<vmem>>, %arg7: memref<8x32xf32, #tpu.memory_space<vmem>>) attributes {dimension_semantics = [#tpu.dimension_semantics<parallel>, #tpu.dimension_semantics<parallel>, #tpu.dimension_semantics<arbitrary>], iteration_bounds = array<i64: 2, 1, 1>, scalar_prefetch = 0 : i64, scratch_operands = 1 : i64, tpu.core_type = #tpu.core_type<tc>, window_params = [{transform_indices = @transform_0, window_bounds = array<i64: 8, 32>}, {transform_indices = @transform_1, window_bounds = array<i64: 32, 32>}, {transform_indices = @transform_2, window_bounds = array<i64: 1, 32>}, {transform_indices = @transform_3, window_bounds = array<i64: 8, 32>}]} {
    %c0_i32 = arith.constant 0 : i32
    %0 = arith.cmpi eq, %arg2, %c0_i32 : i32
    %1 = arith.extui %0 : i1 to i32
    %c0_i32_0 = arith.constant 0 : i32
    %2 = arith.cmpi ne, %1, %c0_i32_0 : i32
    scf.if %2 {
      %cst_10 = arith.constant 0.000000e+00 : f32
      %12 = vector.broadcast %cst_10 : f32 to vector<8x32xf32>
      %c0_11 = arith.constant 0 : index
      %c0_12 = arith.constant 0 : index
      %13 = vector.load %arg7[%c0_11, %c0_12] : memref<8x32xf32, #tpu.memory_space<vmem>>, vector<8x32xf32>
      tpu.vector_store %arg7[%c0_11, %c0_12], %12 {strides = array<i32>} : memref<8x32xf32, #tpu.memory_space<vmem>>, vector<8x32xf32>,
    } else {
    }
    %c0 = arith.constant 0 : index
    %c0_1 = arith.constant 0 : index
    %3 = vector.load %arg7[%c0, %c0_1] : memref<8x32xf32, #tpu.memory_space<vmem>>, vector<8x32xf32>
    %c0_2 = arith.constant 0 : index
    %c0_3 = arith.constant 0 : index
    %4 = vector.load %arg3[%c0_2, %c0_3] : memref<8x32xf32, #tpu.memory_space<vmem>>, vector<8x32xf32>
    %c0_4 = arith.constant 0 : index
    %c0_5 = arith.constant 0 : index
    %5 = vector.load %arg4[%c0_4, %c0_5] : memref<32x32xf32, #tpu.memory_space<vmem>>, vector<32x32xf32>
    %cst = arith.constant dense<0.000000e+00> : vector<8x32xf32>
    %6 = tpu.matmul %4, %5, %cst {dimension_numbers = #tpu.dot_dimension_numbers<[1], [0], [0], [1], [0, 0, 1, 1], [], []>} : vector<8x32xf32>, vector<32x32xf32>, vector<8x32xf32> -> vector<8x32xf32>
    %7 = arith.addf %3, %6 : vector<8x32xf32>
    %c0_6 = arith.constant 0 : index
    %c0_7 = arith.constant 0 : index
    %8 = vector.load %arg7[%c0_6, %c0_7] : memref<8x32xf32, #tpu.memory_space<vmem>>, vector<8x32xf32>
    tpu.vector_store %arg7[%c0_6, %c0_7], %7 {strides = array<i32>} : memref<8x32xf32, #tpu.memory_space<vmem>>, vector<8x32xf32>,
    %c0_i32_8 = arith.constant 0 : i32
    %9 = arith.cmpi eq, %arg2, %c0_i32_8 : i32
    %10 = arith.extui %9 : i1 to i32
    %c0_i32_9 = arith.constant 0 : i32
    %11 = arith.cmpi ne, %10, %c0_i32_9 : i32
    scf.if %11 {
      %c0_10 = arith.constant 0 : index
      %c0_11 = arith.constant 0 : index
      %12 = vector.load %arg7[%c0_10, %c0_11] : memref<8x32xf32, #tpu.memory_space<vmem>>, vector<8x32xf32>
      %c0_12 = arith.constant 0 : index
      %c0_13 = arith.constant 0 : index
      %13 = vector.load %arg5[%c0_12, %c0_13] : memref<1x32xf32, #tpu.memory_space<vmem>>, vector<1x32xf32>
      %14 = vector.broadcast %13 : vector<1x32xf32> to vector<8x32xf32>
      %15 = arith.addf %12, %14 : vector<8x32xf32>
      %c0_14 = arith.constant 0 : index
      %c0_15 = arith.constant 0 : index
      %16 = vector.load %arg6[%c0_14, %c0_15] : memref<8x32xf32, #tpu.memory_space<vmem>>, vector<8x32xf32>
      tpu.vector_store %arg6[%c0_14, %c0_15], %15 {strides = array<i32>} : memref<8x32xf32, #tpu.memory_space<vmem>>, vector<8x32xf32>,
    } else {
    }
    return
  }
  func.func @transform_0(%arg0: i32, %arg1: i32, %arg2: i32) -> (i32, i32) {
    %c0_i32 = arith.constant 0 : i32
    return %arg0, %arg2 : i32, i32
  }
  func.func @transform_1(%arg0: i32, %arg1: i32, %arg2: i32) -> (i32, i32) {
    %c0_i32 = arith.constant 0 : i32
    return %arg2, %arg1 : i32, i32
  }
  func.func @transform_2(%arg0: i32, %arg1: i32, %arg2: i32) -> (i32, i32) {
    %c0_i32 = arith.constant 0 : i32
    %c0_i32_0 = arith.constant 0 : i32
    return %c0_i32, %arg1 : i32, i32
  }
  func.func @transform_3(%arg0: i32, %arg1: i32, %arg2: i32) -> (i32, i32) {
    %c0_i32 = arith.constant 0 : i32
    return %arg0, %arg1 : i32, i32
  }
}

module attributes {stable_mosaic.version = 11 : i64} {
  func.func @_linear_kernel(%arg0: i32, %arg1: i32, %arg2: i32, %arg3: memref<8x32xf32, #tpu.memory_space<vmem>>, %arg4: memref<32x64xf32, #tpu.memory_space<vmem>>, %arg5: memref<1x64xf32, #tpu.memory_space<vmem>>, %arg6: memref<8x64xf32, #tpu.memory_space<vmem>>, %arg7: memref<8x64xf32, #tpu.memory_space<vmem>>) attributes {dimension_semantics = [#tpu.dimension_semantics<parallel>, #tpu.dimension_semantics<parallel>, #tpu.dimension_semantics<arbitrary>], iteration_bounds = array<i64: 2, 1, 1>, scalar_prefetch = 0 : i64, scratch_operands = 1 : i64, tpu.core_type = #tpu.core_type<tc>, window_params = [{transform_indices = @transform_0, window_bounds = array<i64: 8, 32>}, {transform_indices = @transform_1, window_bounds = array<i64: 32, 64>}, {transform_indices = @transform_2, window_bounds = array<i64: 1, 64>}, {transform_indices = @transform_3, window_bounds = array<i64: 8, 64>}]} {
    %c0_i32 = arith.constant 0 : i32
    %0 = arith.cmpi eq, %arg2, %c0_i32 : i32
    %1 = arith.extui %0 : i1 to i32
    %c0_i32_0 = arith.constant 0 : i32
    %2 = arith.cmpi ne, %1, %c0_i32_0 : i32
    scf.if %2 {
      %cst_10 = arith.constant 0.000000e+00 : f32
      %12 = vector.broadcast %cst_10 : f32 to vector<8x64xf32>
      %c0_11 = arith.constant 0 : index
      %c0_12 = arith.constant 0 : index
      %13 = vector.load %arg7[%c0_11, %c0_12] : memref<8x64xf32, #tpu.memory_space<vmem>>, vector<8x64xf32>
      tpu.vector_store %arg7[%c0_11, %c0_12], %12 {strides = array<i32>} : memref<8x64xf32, #tpu.memory_space<vmem>>, vector<8x64xf32>,
    } else {
    }
    %c0 = arith.constant 0 : index
    %c0_1 = arith.constant 0 : index
    %3 = vector.load %arg7[%c0, %c0_1] : memref<8x64xf32, #tpu.memory_space<vmem>>, vector<8x64xf32>
    %c0_2 = arith.constant 0 : index
    %c0_3 = arith.constant 0 : index
    %4 = vector.load %arg3[%c0_2, %c0_3] : memref<8x32xf32, #tpu.memory_space<vmem>>, vector<8x32xf32>
    %c0_4 = arith.constant 0 : index
    %c0_5 = arith.constant 0 : index
    %5 = vector.load %arg4[%c0_4, %c0_5] : memref<32x64xf32, #tpu.memory_space<vmem>>, vector<32x64xf32>
    %cst = arith.constant dense<0.000000e+00> : vector<8x64xf32>
    %6 = tpu.matmul %4, %5, %cst {dimension_numbers = #tpu.dot_dimension_numbers<[1], [0], [0], [1], [0, 0, 1, 1], [], []>} : vector<8x32xf32>, vector<32x64xf32>, vector<8x64xf32> -> vector<8x64xf32>
    %7 = arith.addf %3, %6 : vector<8x64xf32>
    %c0_6 = arith.constant 0 : index
    %c0_7 = arith.constant 0 : index
    %8 = vector.load %arg7[%c0_6, %c0_7] : memref<8x64xf32, #tpu.memory_space<vmem>>, vector<8x64xf32>
    tpu.vector_store %arg7[%c0_6, %c0_7], %7 {strides = array<i32>} : memref<8x64xf32, #tpu.memory_space<vmem>>, vector<8x64xf32>,
    %c0_i32_8 = arith.constant 0 : i32
    %9 = arith.cmpi eq, %arg2, %c0_i32_8 : i32
    %10 = arith.extui %9 : i1 to i32
    %c0_i32_9 = arith.constant 0 : i32
    %11 = arith.cmpi ne, %10, %c0_i32_9 : i32
    scf.if %11 {
      %c0_10 = arith.constant 0 : index
      %c0_11 = arith.constant 0 : index
      %12 = vector.load %arg7[%c0_10, %c0_11] : memref<8x64xf32, #tpu.memory_space<vmem>>, vector<8x64xf32>
      %c0_12 = arith.constant 0 : index
      %c0_13 = arith.constant 0 : index
      %13 = vector.load %arg5[%c0_12, %c0_13] : memref<1x64xf32, #tpu.memory_space<vmem>>, vector<1x64xf32>
      %14 = vector.broadcast %13 : vector<1x64xf32> to vector<8x64xf32>
      %15 = arith.addf %12, %14 : vector<8x64xf32>
      %c0_14 = arith.constant 0 : index
      %c0_15 = arith.constant 0 : index
      %16 = vector.load %arg6[%c0_14, %c0_15] : memref<8x64xf32, #tpu.memory_space<vmem>>, vector<8x64xf32>
      tpu.vector_store %arg6[%c0_14, %c0_15], %15 {strides = array<i32>} : memref<8x64xf32, #tpu.memory_space<vmem>>, vector<8x64xf32>,
    } else {
    }
    return
  }
  func.func @transform_0(%arg0: i32, %arg1: i32, %arg2: i32) -> (i32, i32) {
    %c0_i32 = arith.constant 0 : i32
    return %arg0, %arg2 : i32, i32
  }
  func.func @transform_1(%arg0: i32, %arg1: i32, %arg2: i32) -> (i32, i32) {
    %c0_i32 = arith.constant 0 : i32
    return %arg2, %arg1 : i32, i32
  }
  func.func @transform_2(%arg0: i32, %arg1: i32, %arg2: i32) -> (i32, i32) {
    %c0_i32 = arith.constant 0 : i32
    %c0_i32_0 = arith.constant 0 : i32
    return %c0_i32, %arg1 : i32, i32
  }
  func.func @transform_3(%arg0: i32, %arg1: i32, %arg2: i32) -> (i32, i32) {
    %c0_i32 = arith.constant 0 : i32
    return %arg0, %arg1 : i32, i32
  }
}

module attributes {stable_mosaic.version = 11 : i64} {
  func.func @_cross_mha_kernel(%arg0: i32, %arg1: memref<1x8x32xf32, #tpu.memory_space<vmem>>, %arg2: memref<1x8x64xf32, #tpu.memory_space<vmem>>, %arg3: memref<1x1x8xf32, #tpu.memory_space<vmem>>, %arg4: memref<8x8xf32, #tpu.memory_space<vmem>>, %arg5: memref<1x8x32xf32, #tpu.memory_space<vmem>>) attributes {dimension_semantics = [#tpu.dimension_semantics<parallel>], iteration_bounds = array<i64: 2>, scalar_prefetch = 0 : i64, scratch_operands = 0 : i64, tpu.core_type = #tpu.core_type<tc>, window_params = [{transform_indices = @transform_0, window_bounds = array<i64: 1, 8, 32>}, {transform_indices = @transform_1, window_bounds = array<i64: 1, 8, 64>}, {transform_indices = @transform_2, window_bounds = array<i64: 1, 1, 8>}, {pipeline_mode = #tpu.pipeline_mode<synchronous>, transform_indices = @transform_3, window_bounds = array<i64: 8, 8>}, {transform_indices = @transform_4, window_bounds = array<i64: 1, 8, 32>}]} {
    %c0 = arith.constant 0 : index
    %c0_0 = arith.constant 0 : index
    %c0_1 = arith.constant 0 : index
    %0 = vector.load %arg1[%c0, %c0_0, %c0_1] : memref<1x8x32xf32, #tpu.memory_space<vmem>>, vector<1x8x32xf32>
    %1 = vector.shape_cast %0 : vector<1x8x32xf32> to vector<8x32xf32>
    %c0_2 = arith.constant 0 : index
    %c0_3 = arith.constant 0 : index
    %c0_4 = arith.constant 0 : index
    %2 = vector.load %arg2[%c0_2, %c0_3, %c0_4] : memref<1x8x64xf32, #tpu.memory_space<vmem>>, vector<1x8x64xf32>
    %3 = vector.shape_cast %2 : vector<1x8x64xf32> to vector<8x64xf32>
    %4 = vector.extract_strided_slice %3 {offsets = [0, 0], sizes = [8, 32], strides = [1, 1]} : vector<8x64xf32> to vector<8x32xf32>
    %5 = vector.extract_strided_slice %3 {offsets = [0, 32], sizes = [8, 32], strides = [1, 1]} : vector<8x64xf32> to vector<8x32xf32>
    %c0_5 = arith.constant 0 : index
    %c0_6 = arith.constant 0 : index
    %c0_7 = arith.constant 0 : index
    %6 = vector.load %arg3[%c0_5, %c0_6, %c0_7] : memref<1x1x8xf32, #tpu.memory_space<vmem>>, vector<1x1x8xf32>
    %7 = vector.shape_cast %6 : vector<1x1x8xf32> to vector<1x8xf32>
    %c0_8 = arith.constant 0 : index
    %c0_9 = arith.constant 0 : index
    %8 = vector.load %arg4[%c0_8, %c0_9] : memref<8x8xf32, #tpu.memory_space<vmem>>, vector<8x8xf32>
    %9 = vector.broadcast %7 : vector<1x8xf32> to vector<8x8xf32>
    %10 = arith.addf %9, %8 : vector<8x8xf32>
    %cst = arith.constant 5.000000e-01 : f32
    %11 = vector.broadcast %cst : f32 to vector<8x8xf32>
    %12 = arith.cmpf ogt, %10, %11 : vector<8x8xf32>
    %cst_10 = arith.constant -1.000000e+09 : f32
    %cst_11 = arith.constant 0.000000e+00 : f32
    %13 = vector.broadcast %cst_10 : f32 to vector<8x8xf32>
    %14 = vector.broadcast %cst_11 : f32 to vector<8x8xf32>
    %15 = arith.select %12, %13, %14 : vector<8x8xi1>, vector<8x8xf32>
    %16 = vector.extract_strided_slice %1 {offsets = [0, 0], sizes = [8, 8], strides = [1, 1]} : vector<8x32xf32> to vector<8x8xf32>
    %17 = vector.extract_strided_slice %4 {offsets = [0, 0], sizes = [8, 8], strides = [1, 1]} : vector<8x32xf32> to vector<8x8xf32>
    %18 = vector.extract_strided_slice %5 {offsets = [0, 0], sizes = [8, 8], strides = [1, 1]} : vector<8x32xf32> to vector<8x8xf32>
    %cst_12 = arith.constant dense<0.000000e+00> : vector<8x8xf32>
    %19 = tpu.matmul %16, %17, %cst_12 {dimension_numbers = #tpu.dot_dimension_numbers<[1], [1], [0], [0], [0, 0, 1, 0], [], []>} : vector<8x8xf32>, vector<8x8xf32>, vector<8x8xf32> -> vector<8x8xf32>
    %cst_13 = arith.constant 0.353553385 : f32
    %20 = vector.broadcast %cst_13 : f32 to vector<8x8xf32>
    %21 = arith.mulf %19, %20 : vector<8x8xf32>
    %22 = arith.addf %21, %15 : vector<8x8xf32>
    %cst_14 = arith.constant dense<0xFF800000> : vector<8xf32>
    %23 = vector.multi_reduction <maximumf>, %22, %cst_14 [1] : vector<8x8xf32> to vector<8xf32>
    %24 = vector.shape_cast %23 : vector<8xf32> to vector<8x1xf32>
    %25 = vector.broadcast %24 : vector<8x1xf32> to vector<8x8xf32>
    %26 = arith.subf %22, %25 : vector<8x8xf32>
    %27 = math.exp %26 : vector<8x8xf32>
    %cst_15 = arith.constant dense<0.000000e+00> : vector<8xf32>
    %28 = vector.multi_reduction <add>, %27, %cst_15 [1] : vector<8x8xf32> to vector<8xf32>
    %29 = vector.shape_cast %28 : vector<8xf32> to vector<8x1xf32>
    %30 = tpu.reciprocal %29 {approx = true} : vector<8x1xf32> -> vector<8x1xf32>
    %31 = vector.broadcast %30 : vector<8x1xf32> to vector<8x8xf32>
    %32 = arith.mulf %27, %31 : vector<8x8xf32>
    %cst_16 = arith.constant dense<0.000000e+00> : vector<8x8xf32>
    %33 = tpu.matmul %32, %18, %cst_16 {dimension_numbers = #tpu.dot_dimension_numbers<[1], [0], [0], [1], [0, 0, 1, 1], [], []>} : vector<8x8xf32>, vector<8x8xf32>, vector<8x8xf32> -> vector<8x8xf32>
    %34 = vector.extract_strided_slice %1 {offsets = [0, 8], sizes = [8, 8], strides = [1, 1]} : vector<8x32xf32> to vector<8x8xf32>
    %35 = vector.extract_strided_slice %4 {offsets = [0, 8], sizes = [8, 8], strides = [1, 1]} : vector<8x32xf32> to vector<8x8xf32>
    %36 = vector.extract_strided_slice %5 {offsets = [0, 8], sizes = [8, 8], strides = [1, 1]} : vector<8x32xf32> to vector<8x8xf32>
    %cst_17 = arith.constant dense<0.000000e+00> : vector<8x8xf32>
    %37 = tpu.matmul %34, %35, %cst_17 {dimension_numbers = #tpu.dot_dimension_numbers<[1], [1], [0], [0], [0, 0, 1, 0], [], []>} : vector<8x8xf32>, vector<8x8xf32>, vector<8x8xf32> -> vector<8x8xf32>
    %cst_18 = arith.constant 0.353553385 : f32
    %38 = vector.broadcast %cst_18 : f32 to vector<8x8xf32>
    %39 = arith.mulf %37, %38 : vector<8x8xf32>
    %40 = arith.addf %39, %15 : vector<8x8xf32>
    %cst_19 = arith.constant dense<0xFF800000> : vector<8xf32>
    %41 = vector.multi_reduction <maximumf>, %40, %cst_19 [1] : vector<8x8xf32> to vector<8xf32>
    %42 = vector.shape_cast %41 : vector<8xf32> to vector<8x1xf32>
    %43 = vector.broadcast %42 : vector<8x1xf32> to vector<8x8xf32>
    %44 = arith.subf %40, %43 : vector<8x8xf32>
    %45 = math.exp %44 : vector<8x8xf32>
    %cst_20 = arith.constant dense<0.000000e+00> : vector<8xf32>
    %46 = vector.multi_reduction <add>, %45, %cst_20 [1] : vector<8x8xf32> to vector<8xf32>
    %47 = vector.shape_cast %46 : vector<8xf32> to vector<8x1xf32>
    %48 = tpu.reciprocal %47 {approx = true} : vector<8x1xf32> -> vector<8x1xf32>
    %49 = vector.broadcast %48 : vector<8x1xf32> to vector<8x8xf32>
    %50 = arith.mulf %45, %49 : vector<8x8xf32>
    %cst_21 = arith.constant dense<0.000000e+00> : vector<8x8xf32>
    %51 = tpu.matmul %50, %36, %cst_21 {dimension_numbers = #tpu.dot_dimension_numbers<[1], [0], [0], [1], [0, 0, 1, 1], [], []>} : vector<8x8xf32>, vector<8x8xf32>, vector<8x8xf32> -> vector<8x8xf32>
    %52 = vector.extract_strided_slice %1 {offsets = [0, 16], sizes = [8, 8], strides = [1, 1]} : vector<8x32xf32> to vector<8x8xf32>
    %53 = vector.extract_strided_slice %4 {offsets = [0, 16], sizes = [8, 8], strides = [1, 1]} : vector<8x32xf32> to vector<8x8xf32>
    %54 = vector.extract_strided_slice %5 {offsets = [0, 16], sizes = [8, 8], strides = [1, 1]} : vector<8x32xf32> to vector<8x8xf32>
    %cst_22 = arith.constant dense<0.000000e+00> : vector<8x8xf32>
    %55 = tpu.matmul %52, %53, %cst_22 {dimension_numbers = #tpu.dot_dimension_numbers<[1], [1], [0], [0], [0, 0, 1, 0], [], []>} : vector<8x8xf32>, vector<8x8xf32>, vector<8x8xf32> -> vector<8x8xf32>
    %cst_23 = arith.constant 0.353553385 : f32
    %56 = vector.broadcast %cst_23 : f32 to vector<8x8xf32>
    %57 = arith.mulf %55, %56 : vector<8x8xf32>
    %58 = arith.addf %57, %15 : vector<8x8xf32>
    %cst_24 = arith.constant dense<0xFF800000> : vector<8xf32>
    %59 = vector.multi_reduction <maximumf>, %58, %cst_24 [1] : vector<8x8xf32> to vector<8xf32>
    %60 = vector.shape_cast %59 : vector<8xf32> to vector<8x1xf32>
    %61 = vector.broadcast %60 : vector<8x1xf32> to vector<8x8xf32>
    %62 = arith.subf %58, %61 : vector<8x8xf32>
    %63 = math.exp %62 : vector<8x8xf32>
    %cst_25 = arith.constant dense<0.000000e+00> : vector<8xf32>
    %64 = vector.multi_reduction <add>, %63, %cst_25 [1] : vector<8x8xf32> to vector<8xf32>
    %65 = vector.shape_cast %64 : vector<8xf32> to vector<8x1xf32>
    %66 = tpu.reciprocal %65 {approx = true} : vector<8x1xf32> -> vector<8x1xf32>
    %67 = vector.broadcast %66 : vector<8x1xf32> to vector<8x8xf32>
    %68 = arith.mulf %63, %67 : vector<8x8xf32>
    %cst_26 = arith.constant dense<0.000000e+00> : vector<8x8xf32>
    %69 = tpu.matmul %68, %54, %cst_26 {dimension_numbers = #tpu.dot_dimension_numbers<[1], [0], [0], [1], [0, 0, 1, 1], [], []>} : vector<8x8xf32>, vector<8x8xf32>, vector<8x8xf32> -> vector<8x8xf32>
    %70 = vector.extract_strided_slice %1 {offsets = [0, 24], sizes = [8, 8], strides = [1, 1]} : vector<8x32xf32> to vector<8x8xf32>
    %71 = vector.extract_strided_slice %4 {offsets = [0, 24], sizes = [8, 8], strides = [1, 1]} : vector<8x32xf32> to vector<8x8xf32>
    %72 = vector.extract_strided_slice %5 {offsets = [0, 24], sizes = [8, 8], strides = [1, 1]} : vector<8x32xf32> to vector<8x8xf32>
    %cst_27 = arith.constant dense<0.000000e+00> : vector<8x8xf32>
    %73 = tpu.matmul %70, %71, %cst_27 {dimension_numbers = #tpu.dot_dimension_numbers<[1], [1], [0], [0], [0, 0, 1, 0], [], []>} : vector<8x8xf32>, vector<8x8xf32>, vector<8x8xf32> -> vector<8x8xf32>
    %cst_28 = arith.constant 0.353553385 : f32
    %74 = vector.broadcast %cst_28 : f32 to vector<8x8xf32>
    %75 = arith.mulf %73, %74 : vector<8x8xf32>
    %76 = arith.addf %75, %15 : vector<8x8xf32>
    %cst_29 = arith.constant dense<0xFF800000> : vector<8xf32>
    %77 = vector.multi_reduction <maximumf>, %76, %cst_29 [1] : vector<8x8xf32> to vector<8xf32>
    %78 = vector.shape_cast %77 : vector<8xf32> to vector<8x1xf32>
    %79 = vector.broadcast %78 : vector<8x1xf32> to vector<8x8xf32>
    %80 = arith.subf %76, %79 : vector<8x8xf32>
    %81 = math.exp %80 : vector<8x8xf32>
    %cst_30 = arith.constant dense<0.000000e+00> : vector<8xf32>
    %82 = vector.multi_reduction <add>, %81, %cst_30 [1] : vector<8x8xf32> to vector<8xf32>
    %83 = vector.shape_cast %82 : vector<8xf32> to vector<8x1xf32>
    %84 = tpu.reciprocal %83 {approx = true} : vector<8x1xf32> -> vector<8x1xf32>
    %85 = vector.broadcast %84 : vector<8x1xf32> to vector<8x8xf32>
    %86 = arith.mulf %81, %85 : vector<8x8xf32>
    %cst_31 = arith.constant dense<0.000000e+00> : vector<8x8xf32>
    %87 = tpu.matmul %86, %72, %cst_31 {dimension_numbers = #tpu.dot_dimension_numbers<[1], [0], [0], [1], [0, 0, 1, 1], [], []>} : vector<8x8xf32>, vector<8x8xf32>, vector<8x8xf32> -> vector<8x8xf32>
    %88 = tpu.concatenate %33, %51, %69, %87 in 1 : vector<8x8xf32>, vector<8x8xf32>, vector<8x8xf32>, vector<8x8xf32> -> vector<8x32xf32>
    %c0_32 = arith.constant 0 : index
    %c0_33 = arith.constant 0 : index
    %c0_34 = arith.constant 0 : index
    %89 = vector.load %arg5[%c0_32, %c0_33, %c0_34] : memref<1x8x32xf32, #tpu.memory_space<vmem>>, vector<1x8x32xf32>
    %90 = vector.shape_cast %89 : vector<1x8x32xf32> to vector<8x32xf32>
    %91 = vector.shape_cast %88 : vector<8x32xf32> to vector<1x8x32xf32>
    tpu.vector_store %arg5[%c0_32, %c0_33, %c0_34], %91 {strides = array<i32>} : memref<1x8x32xf32, #tpu.memory_space<vmem>>, vector<1x8x32xf32>,
    return
  }
  func.func @transform_0(%arg0: i32) -> (i32, i32, i32) {
    %c0_i32 = arith.constant 0 : i32
    %c0_i32_0 = arith.constant 0 : i32
    %c0_i32_1 = arith.constant 0 : i32
    return %arg0, %c0_i32, %c0_i32_0 : i32, i32, i32
  }
  func.func @transform_1(%arg0: i32) -> (i32, i32, i32) {
    %c0_i32 = arith.constant 0 : i32
    %c0_i32_0 = arith.constant 0 : i32
    %c0_i32_1 = arith.constant 0 : i32
    return %arg0, %c0_i32, %c0_i32_0 : i32, i32, i32
  }
  func.func @transform_2(%arg0: i32) -> (i32, i32, i32) {
    %c0_i32 = arith.constant 0 : i32
    %c0_i32_0 = arith.constant 0 : i32
    %c0_i32_1 = arith.constant 0 : i32
    return %arg0, %c0_i32, %c0_i32_0 : i32, i32, i32
  }
  func.func @transform_3(%arg0: i32) -> (i32, i32) {
    %c0_i32 = arith.constant 0 : i32
    %c0_i32_0 = arith.constant 0 : i32
    %c0_i32_1 = arith.constant 0 : i32
    return %c0_i32, %c0_i32_0 : i32, i32
  }
  func.func @transform_4(%arg0: i32) -> (i32, i32, i32) {
    %c0_i32 = arith.constant 0 : i32
    %c0_i32_0 = arith.constant 0 : i32
    %c0_i32_1 = arith.constant 0 : i32
    return %arg0, %c0_i32, %c0_i32_0 : i32, i32, i32
  }
}

module attributes {stable_mosaic.version = 11 : i64} {
  func.func @_add_ln_kernel(%arg0: i32, %arg1: memref<8x32xf32, #tpu.memory_space<vmem>>, %arg2: memref<8x32xf32, #tpu.memory_space<vmem>>, %arg3: memref<1x32xf32, #tpu.memory_space<vmem>>, %arg4: memref<1x32xf32, #tpu.memory_space<vmem>>, %arg5: memref<8x32xf32, #tpu.memory_space<vmem>>) attributes {dimension_semantics = [#tpu.dimension_semantics<parallel>], iteration_bounds = array<i64: 2>, scalar_prefetch = 0 : i64, scratch_operands = 0 : i64, tpu.core_type = #tpu.core_type<tc>, window_params = [{transform_indices = @transform_0, window_bounds = array<i64: 8, 32>}, {transform_indices = @transform_1, window_bounds = array<i64: 8, 32>}, {pipeline_mode = #tpu.pipeline_mode<synchronous>, transform_indices = @transform_2, window_bounds = array<i64: 1, 32>}, {pipeline_mode = #tpu.pipeline_mode<synchronous>, transform_indices = @transform_3, window_bounds = array<i64: 1, 32>}, {transform_indices = @transform_4, window_bounds = array<i64: 8, 32>}]} {
    %c0 = arith.constant 0 : index
    %c0_0 = arith.constant 0 : index
    %0 = vector.load %arg1[%c0, %c0_0] : memref<8x32xf32, #tpu.memory_space<vmem>>, vector<8x32xf32>
    %c0_1 = arith.constant 0 : index
    %c0_2 = arith.constant 0 : index
    %1 = vector.load %arg2[%c0_1, %c0_2] : memref<8x32xf32, #tpu.memory_space<vmem>>, vector<8x32xf32>
    %2 = arith.addf %0, %1 : vector<8x32xf32>
    %cst = arith.constant dense<0.000000e+00> : vector<8xf32>
    %3 = vector.multi_reduction <add>, %2, %cst [1] : vector<8x32xf32> to vector<8xf32>
    %4 = vector.shape_cast %3 : vector<8xf32> to vector<8x1xf32>
    %cst_3 = arith.constant 3.200000e+01 : f32
    %5 = vector.broadcast %cst_3 : f32 to vector<8x1xf32>
    %6 = arith.divf %4, %5 : vector<8x1xf32>
    %7 = vector.broadcast %6 : vector<8x1xf32> to vector<8x32xf32>
    %8 = arith.subf %2, %7 : vector<8x32xf32>
    %9 = arith.mulf %8, %8 : vector<8x32xf32>
    %cst_4 = arith.constant dense<0.000000e+00> : vector<8xf32>
    %10 = vector.multi_reduction <add>, %9, %cst_4 [1] : vector<8x32xf32> to vector<8xf32>
    %11 = vector.shape_cast %10 : vector<8xf32> to vector<8x1xf32>
    %cst_5 = arith.constant 3.200000e+01 : f32
    %12 = vector.broadcast %cst_5 : f32 to vector<8x1xf32>
    %13 = arith.divf %11, %12 : vector<8x1xf32>
    %14 = vector.broadcast %6 : vector<8x1xf32> to vector<8x32xf32>
    %15 = arith.subf %2, %14 : vector<8x32xf32>
    %cst_6 = arith.constant 9.99999974E-6 : f32
    %16 = vector.broadcast %cst_6 : f32 to vector<8x1xf32>
    %17 = arith.addf %13, %16 : vector<8x1xf32>
    %18 = math.rsqrt %17 : vector<8x1xf32>
    %19 = vector.broadcast %18 : vector<8x1xf32> to vector<8x32xf32>
    %20 = arith.mulf %15, %19 : vector<8x32xf32>
    %c0_7 = arith.constant 0 : index
    %c0_8 = arith.constant 0 : index
    %21 = vector.load %arg3[%c0_7, %c0_8] : memref<1x32xf32, #tpu.memory_space<vmem>>, vector<1x32xf32>
    %22 = vector.broadcast %21 : vector<1x32xf32> to vector<8x32xf32>
    %23 = arith.mulf %20, %22 : vector<8x32xf32>
    %c0_9 = arith.constant 0 : index
    %c0_10 = arith.constant 0 : index
    %24 = vector.load %arg4[%c0_9, %c0_10] : memref<1x32xf32, #tpu.memory_space<vmem>>, vector<1x32xf32>
    %25 = vector.broadcast %24 : vector<1x32xf32> to vector<8x32xf32>
    %26 = arith.addf %23, %25 : vector<8x32xf32>
    %c0_11 = arith.constant 0 : index
    %c0_12 = arith.constant 0 : index
    %27 = vector.load %arg5[%c0_11, %c0_12] : memref<8x32xf32, #tpu.memory_space<vmem>>, vector<8x32xf32>
    tpu.vector_store %arg5[%c0_11, %c0_12], %26 {strides = array<i32>} : memref<8x32xf32, #tpu.memory_space<vmem>>, vector<8x32xf32>,
    return
  }
  func.func @transform_0(%arg0: i32) -> (i32, i32) {
    %c0_i32 = arith.constant 0 : i32
    %c0_i32_0 = arith.constant 0 : i32
    return %arg0, %c0_i32 : i32, i32
  }
  func.func @transform_1(%arg0: i32) -> (i32, i32) {
    %c0_i32 = arith.constant 0 : i32
    %c0_i32_0 = arith.constant 0 : i32
    return %arg0, %c0_i32 : i32, i32
  }
  func.func @transform_2(%arg0: i32) -> (i32, i32) {
    %c0_i32 = arith.constant 0 : i32
    %c0_i32_0 = arith.constant 0 : i32
    %c0_i32_1 = arith.constant 0 : i32
    return %c0_i32, %c0_i32_0 : i32, i32
  }
  func.func @transform_3(%arg0: i32) -> (i32, i32) {
    %c0_i32 = arith.constant 0 : i32
    %c0_i32_0 = arith.constant 0 : i32
    %c0_i32_1 = arith.constant 0 : i32
    return %c0_i32, %c0_i32_0 : i32, i32
  }
  func.func @transform_4(%arg0: i32) -> (i32, i32) {
    %c0_i32 = arith.constant 0 : i32
    %c0_i32_0 = arith.constant 0 : i32
    return %arg0, %c0_i32 : i32, i32
  }
}

module attributes {stable_mosaic.version = 11 : i64} {
  func.func @_ffn_kernel(%arg0: i32, %arg1: memref<8x32xf32, #tpu.memory_space<vmem>>, %arg2: memref<32x64xf32, #tpu.memory_space<vmem>>, %arg3: memref<1x64xf32, #tpu.memory_space<vmem>>, %arg4: memref<64x32xf32, #tpu.memory_space<vmem>>, %arg5: memref<1x32xf32, #tpu.memory_space<vmem>>, %arg6: memref<8x32xf32, #tpu.memory_space<vmem>>) attributes {dimension_semantics = [#tpu.dimension_semantics<parallel>], iteration_bounds = array<i64: 2>, scalar_prefetch = 0 : i64, scratch_operands = 0 : i64, tpu.core_type = #tpu.core_type<tc>, window_params = [{transform_indices = @transform_0, window_bounds = array<i64: 8, 32>}, {pipeline_mode = #tpu.pipeline_mode<synchronous>, transform_indices = @transform_1, window_bounds = array<i64: 32, 64>}, {pipeline_mode = #tpu.pipeline_mode<synchronous>, transform_indices = @transform_2, window_bounds = array<i64: 1, 64>}, {pipeline_mode = #tpu.pipeline_mode<synchronous>, transform_indices = @transform_3, window_bounds = array<i64: 64, 32>}, {pipeline_mode = #tpu.pipeline_mode<synchronous>, transform_indices = @transform_4, window_bounds = array<i64: 1, 32>}, {transform_indices = @transform_5, window_bounds = array<i64: 8, 32>}]} {
    %c0 = arith.constant 0 : index
    %c0_0 = arith.constant 0 : index
    %0 = vector.load %arg1[%c0, %c0_0] : memref<8x32xf32, #tpu.memory_space<vmem>>, vector<8x32xf32>
    %c0_1 = arith.constant 0 : index
    %c0_2 = arith.constant 0 : index
    %1 = vector.load %arg2[%c0_1, %c0_2] : memref<32x64xf32, #tpu.memory_space<vmem>>, vector<32x64xf32>
    %cst = arith.constant dense<0.000000e+00> : vector<8x64xf32>
    %2 = tpu.matmul %0, %1, %cst {dimension_numbers = #tpu.dot_dimension_numbers<[1], [0], [0], [1], [0, 0, 1, 1], [], []>} : vector<8x32xf32>, vector<32x64xf32>, vector<8x64xf32> -> vector<8x64xf32>
    %c0_3 = arith.constant 0 : index
    %c0_4 = arith.constant 0 : index
    %3 = vector.load %arg3[%c0_3, %c0_4] : memref<1x64xf32, #tpu.memory_space<vmem>>, vector<1x64xf32>
    %4 = vector.broadcast %3 : vector<1x64xf32> to vector<8x64xf32>
    %5 = arith.addf %2, %4 : vector<8x64xf32>
    %cst_5 = arith.constant 0.000000e+00 : f32
    %6 = vector.broadcast %cst_5 : f32 to vector<8x64xf32>
    %7 = arith.maximumf %5, %6 : vector<8x64xf32>
    %c0_6 = arith.constant 0 : index
    %c0_7 = arith.constant 0 : index
    %8 = vector.load %arg4[%c0_6, %c0_7] : memref<64x32xf32, #tpu.memory_space<vmem>>, vector<64x32xf32>
    %cst_8 = arith.constant dense<0.000000e+00> : vector<8x32xf32>
    %9 = tpu.matmul %7, %8, %cst_8 {dimension_numbers = #tpu.dot_dimension_numbers<[1], [0], [0], [1], [0, 0, 1, 1], [], []>} : vector<8x64xf32>, vector<64x32xf32>, vector<8x32xf32> -> vector<8x32xf32>
    %c0_9 = arith.constant 0 : index
    %c0_10 = arith.constant 0 : index
    %10 = vector.load %arg5[%c0_9, %c0_10] : memref<1x32xf32, #tpu.memory_space<vmem>>, vector<1x32xf32>
    %11 = vector.broadcast %10 : vector<1x32xf32> to vector<8x32xf32>
    %12 = arith.addf %9, %11 : vector<8x32xf32>
    %c0_11 = arith.constant 0 : index
    %c0_12 = arith.constant 0 : index
    %13 = vector.load %arg6[%c0_11, %c0_12] : memref<8x32xf32, #tpu.memory_space<vmem>>, vector<8x32xf32>
    tpu.vector_store %arg6[%c0_11, %c0_12], %12 {strides = array<i32>} : memref<8x32xf32, #tpu.memory_space<vmem>>, vector<8x32xf32>,
    return
  }
  func.func @transform_0(%arg0: i32) -> (i32, i32) {
    %c0_i32 = arith.constant 0 : i32
    %c0_i32_0 = arith.constant 0 : i32
    return %arg0, %c0_i32 : i32, i32
  }
  func.func @transform_1(%arg0: i32) -> (i32, i32) {
    %c0_i32 = arith.constant 0 : i32
    %c0_i32_0 = arith.constant 0 : i32
    %c0_i32_1 = arith.constant 0 : i32
    return %c0_i32, %c0_i32_0 : i32, i32
  }
  func.func @transform_2(%arg0: i32) -> (i32, i32) {
    %c0_i32 = arith.constant 0 : i32
    %c0_i32_0 = arith.constant 0 : i32
    %c0_i32_1 = arith.constant 0 : i32
    return %c0_i32, %c0_i32_0 : i32, i32
  }
  func.func @transform_3(%arg0: i32) -> (i32, i32) {
    %c0_i32 = arith.constant 0 : i32
    %c0_i32_0 = arith.constant 0 : i32
    %c0_i32_1 = arith.constant 0 : i32
    return %c0_i32, %c0_i32_0 : i32, i32
  }
  func.func @transform_4(%arg0: i32) -> (i32, i32) {
    %c0_i32 = arith.constant 0 : i32
    %c0_i32_0 = arith.constant 0 : i32
    %c0_i32_1 = arith.constant 0 : i32
    return %c0_i32, %c0_i32_0 : i32, i32
  }
  func.func @transform_5(%arg0: i32) -> (i32, i32) {
    %c0_i32 = arith.constant 0 : i32
    %c0_i32_0 = arith.constant 0 : i32
    return %arg0, %c0_i32 : i32, i32
  }
}

</mosaic_0001>

<llo_original>
// kernel: decoder_forward.22
$region0: #{decoder_forward.22}
  #allocation0 [shape = 'u32[]', space=smem, size = 0x4, offset = 0x4, fixed_abs, tag = 'smem constant byte address 0x4 - core index']
  #allocation1 [shape = 'u32[144,128]{1,0:T(1,128)}', space=vmem, size = 0x12000, scoped, tag = 'internal scratch']
  #allocation2 [shape = 'f32[8,96]{1,0:T(8,128)}', space=vmem, size = 0x1000, scoped, tag = 'scratch operand']
  %s0 = inlined_call_operand.vmem [shape: f32[16,32], index: 0, kind: input, shape index: {}]
  %s1 = inlined_call_operand.vmem [shape: f32[32,96], index: 1, kind: input, shape index: {}]
  %s2 = inlined_call_operand.vmem [shape: f32[1,96], index: 2, kind: input, shape index: {}]
  %s3 = inlined_call_operand.vmem [shape: f32[16,96], index: 3, kind: output, shape index: {}]
  %s4 = sld [smem:[#allocation0]]
  $region53: #{decoder_forward.22} parent=0
    _
  %s6 = ssub.s32 1, %s4
  %s7 = scalar_select 0, %s6, %s4
  loop: start=0, step=1, limit=4
  $region2: #{decoder_forward.22} parent=0 // loop_pre_header
    _
  $region3: #{decoder_forward.22} parent=0 // loop_header
    %s9 = sphi 0, %s13
    %p10 = scmp.ge.s32.totalorder %s9, 4
    %s16 = sphi 0, %s35
    %s17 = sphi 0, %s31
    %s18 = sphi 0, %s27
    %s19 = sphi 0, %s16
    %s20 = sphi 0, %s17
    %s21 = sphi 0, %s18
    %s22 = sphi 0, %s19
    %s23 = sphi 0, %s20
    %s24 = sphi 0, %s21
    %s40 = sphi 0, %s42
    %s43 = sphi 0, %s40
    %s44 = sphi 0, %s43
    %s60 = sphi 0, %s44
    %s68 = sphi 0, %s70
    %s71 = sphi 0, %s68
    %s72 = sphi 0, %s71
    %s88 = sphi 0, %s72
    %s94 = sphi 0, %s96
    %s97 = sphi 0, %s94
    %s98 = sphi 0, %s97
    %s114 = sphi 0, %s98
    %s122 = sphi 0, %s124
    %s125 = sphi 0, %s122
    %s126 = sphi 0, %s125
    %s142 = sphi 0, %s126
  $region4: #{decoder_forward.22} parent=0 // loop_header_branch
    %12 = sbr.rel (%p10) target = $region8
  $region5: #{decoder_forward.22} parent=0 // loop_body
    %s14 = ssub.s32 %s9, 1
    %s15 = ssub.s32 %s9, 2
    %s25 = sadd.s32 1, %s18
    %p26 = scmp.ge.s32.totalorder %s25, 1
    %s27 = scalar_select %p26, 0, %s25
    %s28 = sadd.s32 1, %s17
    %s29 = scalar_select %p26, %s28, %s17
    %p30 = scmp.ge.s32.totalorder %s29, 1
    %s31 = scalar_select %p30, 0, %s29
    %s32 = sadd.s32 1, %s16
    %s33 = scalar_select %p30, %s32, %s16
    %p34 = scmp.ge.s32.totalorder %s33, 2
    %s35 = scalar_select %p34, 0, %s33
    %s36 = ssub.s32 %s16, %s35
    %s37 = ssub.s32 %s18, %s27
    %s38 = sor.u32 %s36, %s37
    %p39 = scmp.eq.s32.totalorder %s38, 0
    %s41 = sadd.s32 %s40, 1
    %s42 = scalar_select %p39, %s40, %s41
    %p45 = pneg %p39
    %p46 = scmp.eq.s32.totalorder %s9, 1
    %p47 = por %p45, %p46
    %p48 = scmp.ne.s32.totalorder %s40, %s43
    %p49 = scmp.eq.s32.totalorder %s9, 0
    %p50 = por %p48, %p49
    %p51 = scmp.ne.s32.totalorder %s40, %s43
    %p52 = scmp.eq.s32.totalorder %s14, 1
    %p53 = por %p51, %p52
    %p54 = scmp.ne.s32.totalorder %s43, %s44
    %p55 = scmp.eq.s32.totalorder %s14, 0
    %p56 = por %p54, %p55
    %p57 = scmp.ne.s32.totalorder %s43, %s44
    %p58 = scmp.eq.s32.totalorder %s15, 1
    %p59 = por %p57, %p58
    %p61 = scmp.ne.s32.totalorder %s44, %s60
    %p62 = scmp.eq.s32.totalorder %s15, 0
    %p63 = por %p61, %p62
    %s64 = ssub.s32 %s18, %s27
    %s65 = ssub.s32 %s17, %s31
    %s66 = sor.u32 %s64, %s65
    %p67 = scmp.eq.s32.totalorder %s66, 0
    %s69 = sadd.s32 %s68, 1
    %s70 = scalar_select %p67, %s68, %s69
    %p73 = pneg %p67
    %p74 = scmp.eq.s32.totalorder %s9, 1
    %p75 = por %p73, %p74
    %p76 = scmp.ne.s32.totalorder %s68, %s71
    %p77 = scmp.eq.s32.totalorder %s9, 0
    %p78 = por %p76, %p77
    %p79 = scmp.ne.s32.totalorder %s68, %s71
    %p80 = scmp.eq.s32.totalorder %s14, 1
    %p81 = por %p79, %p80
    %p82 = scmp.ne.s32.totalorder %s71, %s72
    %p83 = scmp.eq.s32.totalorder %s14, 0
    %p84 = por %p82, %p83
    %p85 = scmp.ne.s32.totalorder %s71, %s72
    %p86 = scmp.eq.s32.totalorder %s15, 1
    %p87 = por %p85, %p86
    %p89 = scmp.ne.s32.totalorder %s72, %s88
    %p90 = scmp.eq.s32.totalorder %s15, 0
    %p91 = por %p89, %p90
    %s92 = ssub.s32 %s17, %s31
    %p93 = scmp.eq.s32.totalorder %s92, 0
    %s95 = sadd.s32 %s94, 1
    %s96 = scalar_select %p93, %s94, %s95
    %p99 = pneg %p93
    %p100 = scmp.eq.s32.totalorder %s9, 1
    %p101 = por %p99, %p100
    %p102 = scmp.ne.s32.totalorder %s94, %s97
    %p103 = scmp.eq.s32.totalorder %s9, 0
    %p104 = por %p102, %p103
    %p105 = scmp.ne.s32.totalorder %s94, %s97
    %p106 = scmp.eq.s32.totalorder %s14, 1
    %p107 = por %p105, %p106
    %p108 = scmp.ne.s32.totalorder %s97, %s98
    %p109 = scmp.eq.s32.totalorder %s14, 0
    %p110 = por %p108, %p109
    %p111 = scmp.ne.s32.totalorder %s97, %s98
    %p112 = scmp.eq.s32.totalorder %s15, 1
    %p113 = por %p111, %p112
    %p115 = scmp.ne.s32.totalorder %s98, %s114
    %p116 = scmp.eq.s32.totalorder %s15, 0
    %p117 = por %p115, %p116
    %s118 = ssub.s32 %s16, %s35
    %s119 = ssub.s32 %s17, %s31
    %s120 = sor.u32 %s118, %s119
    %p121 = scmp.eq.s32.totalorder %s120, 0
    %s123 = sadd.s32 %s122, 1
    %s124 = scalar_select %p121, %s122, %s123
    %p127 = pneg %p121
    %p128 = scmp.eq.s32.totalorder %s9, 1
    %p129 = por %p127, %p128
    %p130 = scmp.ne.s32.totalorder %s122, %s125
    %p131 = scmp.eq.s32.totalorder %s9, 0
    %p132 = por %p130, %p131
    %p133 = scmp.ne.s32.totalorder %s122, %s125
    %p134 = scmp.eq.s32.totalorder %s14, 1
    %p135 = por %p133, %p134
    %p136 = scmp.ne.s32.totalorder %s125, %s126
    %p137 = scmp.eq.s32.totalorder %s14, 0
    %p138 = por %p136, %p137
    %p139 = scmp.ne.s32.totalorder %s125, %s126
    %p140 = scmp.eq.s32.totalorder %s15, 1
    %p141 = por %p139, %p140
    %p143 = scmp.ne.s32.totalorder %s126, %s142
    %p144 = scmp.eq.s32.totalorder %s15, 0
    %p145 = por %p143, %p144
    %p146 = scmp.le.s32.totalorder 1, %s9
    %p147 = scmp.lt.s32.totalorder %s9, 3
    %p148 = pnand %p146, %p147
    %p149 = pneg %p148
    // Predicated region
    $region9: #{decoder_forward.22} parent=5 // pred_check
      _
    $region10: #{decoder_forward.22} parent=5 // pred_check_branch
      %151 = sbr.rel (%p148) target = $region12
    $region11: #{decoder_forward.22} parent=5 // pred_region
      %s152 = ssub.s32 %s9, 1
      // Predicated region
      $region13: #{decoder_forward.22} parent=11 // pred_check
        %p153 = pneg %p84
      $region14: #{decoder_forward.22} parent=11 // pred_check_branch
        %155 = sbr.rel (%p153) target = $region16
      $region15: #{decoder_forward.22} parent=11 // pred_region
        %s156 = smul.u32 4, %s21
        %p157 = scmp.lt.s32.totalorder %s156, 3
        %s158 = scalar_select %p157, %s156, 3
        %p159 = scmp.lt.s32.totalorder %s20, 0
        %s160 = scalar_select %p159, %s20, 0
        %s161 = sadd.s32 %s160, %s158
        %s162 = smul.addr %s161, 8
        %s163 = scalar_lea.vmem %s1, %s162
        %s164 = smul.u32 4, %s21
      $region16: #{decoder_forward.22} parent=11 // pred_fallthru
        _
      // Predicated region
      $region17: #{decoder_forward.22} parent=11 // pred_check
        %p165 = pneg %p110
      $region18: #{decoder_forward.22} parent=11 // pred_check_branch
        %167 = sbr.rel (%p165) target = $region20
      $region19: #{decoder_forward.22} parent=11 // pred_region
        %p168 = scmp.lt.s32.totalorder %s20, 0
        %s169 = scalar_select %p168, %s20, 0
        %s170 = scalar_lea.vmem %s2, %s169
      $region20: #{decoder_forward.22} parent=11 // pred_fallthru
        _
    $region12: #{decoder_forward.22} parent=5 // pred_fallthru
      _
    %p171 = scmp.lt.s32.totalorder %s9, 2
    // Predicated region
    $region21: #{decoder_forward.22} parent=5 // pred_check
      %p172 = pneg %p171
    $region22: #{decoder_forward.22} parent=5 // pred_check_branch
      %174 = sbr.rel (%p172) target = $region24
    $region23: #{decoder_forward.22} parent=5 // pred_region
      // Predicated region
      $region25: #{decoder_forward.22} parent=23 // pred_check
        %p175 = pneg %p50
      $region26: #{decoder_forward.22} parent=23 // pred_check_branch
        %177 = sbr.rel (%p175) target = $region28
      $region27: #{decoder_forward.22} parent=23 // pred_region
        %p178 = scmp.lt.s32.totalorder %s16, 1
        %s179 = scalar_select %p178, %s16, 1
        %p180 = scmp.lt.s32.totalorder %s18, 0
        %s181 = scalar_select %p180, %s18, 0
        %s182 = sadd.s32 %s181, %s179
        %s183 = smul.addr %s182, 8
        %s184 = scalar_lea.vmem %s0, %s183
      $region28: #{decoder_forward.22} parent=23 // pred_fallthru
        _
    $region24: #{decoder_forward.22} parent=5 // pred_fallthru
      _
    %p185 = scmp.le.s32.totalorder 1, %s9
    %p186 = scmp.lt.s32.totalorder %s9, 3
    %p187 = pnand %p185, %p186
    %p188 = pneg %p187
    // Predicated region
    $region29: #{decoder_forward.22} parent=5 // pred_check
      _
    $region30: #{decoder_forward.22} parent=5 // pred_check_branch
      %190 = sbr.rel (%p187) target = $region32
    $region31: #{decoder_forward.22} parent=5 // pred_region
      %s191 = ssub.s32 %s9, 1
      %p192 = scmp.lt.s32.totalorder %s19, 1
      %s193 = scalar_select %p192, %s19, 1
      %p194 = scmp.lt.s32.totalorder %s21, 0
      %s195 = scalar_select %p194, %s21, 0
      %s196 = sadd.s32 %s195, %s193
      %s197 = smul.addr %s196, 8
      %s198 = scalar_lea.vmem %s0, %s197
      %p199 = pneg %p56
      %p200 = pneg %p53
      %s201 = smul.u32 4, %s21
      %p202 = scmp.lt.s32.totalorder %s201, 3
      %s203 = scalar_select %p202, %s201, 3
      %p204 = scmp.lt.s32.totalorder %s20, 0
      %s205 = scalar_select %p204, %s20, 0
      %s206 = sadd.s32 %s205, %s203
      %s207 = smul.addr %s206, 8
      %s208 = scalar_lea.vmem %s1, %s207
      %p209 = pneg %p84
      %p210 = pneg %p81
      %p211 = scmp.lt.s32.totalorder %s20, 0
      %s212 = scalar_select %p211, %s20, 0
      %s213 = scalar_lea.vmem %s2, %s212
      %p214 = pneg %p110
      %p215 = pneg %p107
      %p216 = pneg %p138
      %p217 = pneg %p135
      %p218 = scmp.lt.s32.totalorder %s19, 1
      %s219 = scalar_select %p218, %s19, 1
      %p220 = scmp.lt.s32.totalorder %s20, 0
      %s221 = scalar_select %p220, %s20, 0
      %s222 = sadd.s32 %s221, %s219
      %s223 = smul.addr %s222, 8
      %s224 = scalar_lea.vmem %s3, %s223
      %p225 = scmp.lt.s32.totalorder %s19, 1
      %s226 = scalar_select %p225, %s19, 1
      %p227 = scmp.lt.s32.totalorder %s21, 0
      %s228 = scalar_select %p227, %s21, 0
      %s229 = sadd.s32 %s228, %s226
      %s230 = smul.addr %s229, 8
      %s231 = scalar_lea.vmem %s0, %s230
      %s232 = smul.u32 4, %s21
      %p233 = scmp.lt.s32.totalorder %s232, 3
      %s234 = scalar_select %p233, %s232, 3
      %p235 = scmp.lt.s32.totalorder %s20, 0
      %s236 = scalar_select %p235, %s20, 0
      %s237 = sadd.s32 %s236, %s234
      %s238 = smul.addr %s237, 8
      %s239 = scalar_lea.vmem %s1, %s238
      %s240 = smul.u32 4, %s21
      %p241 = scmp.lt.s32.totalorder %s20, 0
      %s242 = scalar_select %p241, %s20, 0
      %s243 = scalar_lea.vmem %s2, %s242
      %p244 = scmp.lt.s32.totalorder %s19, 1
      %s245 = scalar_select %p244, %s19, 1
      %p246 = scmp.lt.s32.totalorder %s20, 0
      %s247 = scalar_select %p246, %s20, 0
      %s248 = sadd.s32 %s247, %s245
      %s249 = smul.addr %s248, 8
      %s250 = scalar_lea.vmem %s3, %s249
      %p251 = scmp.eq.s32.totalorder %s21, 0
      // Predicated region
      $region33: #{decoder_forward.22} parent=31 // pred_check
        %p252 = pneg %p251
      $region34: #{decoder_forward.22} parent=31 // pred_check_branch
        %254 = sbr.rel (%p252) target = $region36
      $region35: #{decoder_forward.22} parent=31 // pred_region
        %vm255 = vcmask 785408
        %256 = vst.msk [vmem:[#allocation2] sm:$0xff] %vm255, 0.0
      $region36: #{decoder_forward.22} parent=31 // pred_fallthru
        _
      %v257 = vld [vmem:[#allocation2] sm:$0xff]
      %v258 = vld [vmem:[%s231] sm:$0xff]
      %v259 = vld [vmem:[%s239] sm:$0xff]
      %v260 = vld [vmem:[%s239 + $0x8] sm:$0xff]
      %v261 = vld [vmem:[%s239 + $0x10] sm:$0xff]
      %v262 = vld [vmem:[%s239 + $0x18] sm:$0xff]
      %vm263 = vcmask 261120
      %v265 = vsel %vm263, %v258, 0
      %267 = vmatprep.subr.mxu0 0.0
      %268 = vmatpush1.msra.mxu0 %v259
      %269 = vmatprep.subr.mxu0 0.0
      %270 = vmatpush1.msra.mxu0 %v260
      %271 = vmatprep.subr.mxu0 0.0
      %272 = vmatpush1.msra.mxu0 %v261
      %273 = vmatprep.subr.mxu0 0.0
      %274 = vmatpush1.msra.mxu0 %v262
      %275 = vmatprep.subr.mxu0 0.0
      %276 = vmatpush1.msra.mxu0 0.0
      %277 = vmatprep.subr.mxu0 0.0
      %278 = vmatpush1.msra.mxu0 0.0
      %279 = vmatprep.subr.mxu0 0.0
      %280 = vmatpush1.msra.mxu0 0.0
      %281 = vmatprep.subr.mxu0 0.0
      %282 = vmatpush1.msra.mxu0 0.0
      %283 = vmatprep.subr.mxu0 0.0
      %284 = vmatpush1.msra.mxu0 0.0
      %285 = vmatprep.subr.mxu0 0.0
      %286 = vmatpush1.msra.mxu0 0.0
      %287 = vmatprep.subr.mxu0 0.0
      %288 = vmatpush1.msra.mxu0 0.0
      %289 = vmatprep.subr.mxu0 0.0
      %290 = vmatpush1.msra.mxu0 0.0
      %291 = vmatprep.subr.mxu0 0.0
      %292 = vmatpush1.msra.mxu0 0.0
      %293 = vmatprep.subr.mxu0 0.0
      %294 = vmatpush1.msra.mxu0 0.0
      %295 = vmatprep.subr.mxu0 0.0
      %296 = vmatpush1.msra.mxu0 0.0
      %297 = vmatprep.subr.mxu0 0.0
      %298 = vmatpush1.msra.mxu0 0.0
      %299 = vmatprep.subr.mxu0 0.0
      %300 = vmatpush1.msra.mxu0 0.0
      %301 = vmatprep.subr.mxu0 0.0
      %302 = vmatpush1.msra.mxu0 0.0
      %303 = vmatprep.subr.mxu0 0.0
      %304 = vmatpush1.msra.mxu0 0.0
      %305 = vmatprep.subr.mxu0 0.0
      %306 = vmatpush1.msra.mxu0 0.0
      %307 = vmatprep.subr.mxu0 0.0
      %308 = vmatpush1.msra.mxu0 0.0
      %309 = vmatprep.subr.mxu0 0.0
      %310 = vmatpush1.msra.mxu0 0.0
      %311 = vmatprep.subr.mxu0 0.0
      %312 = vmatpush1.msra.mxu0 0.0
      %313 = vmatprep.subr.mxu0 0.0
      %314 = vmatpush1.msra.mxu0 0.0
      %315 = vmatprep.subr.mxu0 0.0
      %316 = vmatpush1.msra.mxu0 0.0
      %317 = vmatprep.subr.mxu0 0.0
      %318 = vmatpush1.msra.mxu0 0.0
      %319 = vmatprep.subr.mxu0 0.0
      %320 = vmatpush1.msra.mxu0 0.0
      %321 = vmatprep.subr.mxu0 0.0
      %322 = vmatpush1.msra.mxu0 0.0
      %323 = vmatprep.subr.mxu0 0.0
      %324 = vmatpush1.msra.mxu0 0.0
      %325 = vmatprep.subr.mxu0 0.0
      %326 = vmatpush1.msra.mxu0 0.0
      %327 = vmatprep.subr.mxu0 0.0
      %328 = vmatpush1.msra.mxu0 0.0
      %329 = vmatprep.subr.mxu0 0.0
      %330 = vmatpush1.msra.mxu0 0.0
      %331 = vmatprep.mubr.f32.mxu0 0.0
      %332 = vmatmul.mubr.f32.gmra.mrb[0].mxu0 %v265
      %v333 = vpop.f32.mrb[0].mxu0
      %v334 = vadd.f32 0.0, %v333
      %v335 = vpop.f32.mrb[0].mxu0
      %336 = vdwg.mxu0
      %v337 = vadd.f32 %v257, %v334
      %vm338 = vcmask 785408
      %339 = vst.msk [vmem:[#allocation2] sm:$0xff] %vm338, %v337
      // Predicated region
      $region37: #{decoder_forward.22} parent=31 // pred_check
        %p340 = pneg %p251
      $region38: #{decoder_forward.22} parent=31 // pred_check_branch
        %342 = sbr.rel (%p340) target = $region40
      $region39: #{decoder_forward.22} parent=31 // pred_region
        %v343 = vld [vmem:[#allocation2] sm:$0xff]
        %v344 = vld [vmem:[%s243] sm:$0x1]
        %v346 = vlaneseq
        %v347 = vshrl.u32 %v346, 7
        %v348 = vsub.s32 0, %v347
        %v349 = vrot.slane %v344, %v348
        %v351 = vadd.f32 %v343, %v349
        %352 = vst.msk [vmem:[%s250] sm:$0xff] %vm338, %v351
      $region40: #{decoder_forward.22} parent=31 // pred_fallthru
        _
      %p353 = scmp.lt.s32.totalorder %s19, 1
      %s354 = scalar_select %p353, %s19, 1
      %p355 = scmp.lt.s32.totalorder %s20, 0
      %s356 = scalar_select %p355, %s20, 0
      %s357 = sadd.s32 %s356, %s354
      %s358 = smul.addr %s357, 8
      %s359 = scalar_lea.vmem %s3, %s358
      // Predicated region
      $region41: #{decoder_forward.22} parent=31 // pred_check
        %p360 = pneg %p135
      $region42: #{decoder_forward.22} parent=31 // pred_check_branch
        %362 = sbr.rel (%p360) target = $region44
      $region43: #{decoder_forward.22} parent=31 // pred_region
        _
      $region44: #{decoder_forward.22} parent=31 // pred_fallthru
        _
    $region32: #{decoder_forward.22} parent=5 // pred_fallthru
      _
    %p363 = scmp.le.s32.totalorder 2, %s9
    // Predicated region
    $region45: #{decoder_forward.22} parent=5 // pred_check
      %p364 = pneg %p363
    $region46: #{decoder_forward.22} parent=5 // pred_check_branch
      %366 = sbr.rel (%p364) target = $region48
    $region47: #{decoder_forward.22} parent=5 // pred_region
      %s367 = ssub.s32 %s9, 2
      // Predicated region
      $region49: #{decoder_forward.22} parent=47 // pred_check
        %p368 = pneg %p141
      $region50: #{decoder_forward.22} parent=47 // pred_check_branch
        %370 = sbr.rel (%p368) target = $region52
      $region51: #{decoder_forward.22} parent=47 // pred_region
        %p371 = scmp.lt.s32.totalorder %s22, 1
        %s372 = scalar_select %p371, %s22, 1
        %p373 = scmp.lt.s32.totalorder %s23, 0
        %s374 = scalar_select %p373, %s23, 0
        %s375 = sadd.s32 %s374, %s372
        %s376 = smul.addr %s375, 8
        %s377 = scalar_lea.vmem %s3, %s376
      $region52: #{decoder_forward.22} parent=47 // pred_fallthru
        _
    $region48: #{decoder_forward.22} parent=5 // pred_fallthru
      _
  $region6: #{decoder_forward.22} parent=0 // loop_footer
    %s13 = sadd.s32 1, %s9
  $region7: #{decoder_forward.22} parent=0 // loop_footer_branch
    %8 = sbr.rel target = $region3
  $region8: #{decoder_forward.22} parent=0 // loop_exit
    _

// kernel: decoder_forward.25
$region0: #{decoder_forward.25}
  #allocation0 [shape = 'u32[]', space=smem, size = 0x4, offset = 0x4, fixed_abs, tag = 'smem constant byte address 0x4 - core index']
  #allocation1 [shape = 'u32[144,128]{1,0:T(1,128)}', space=vmem, size = 0x12000, scoped, tag = 'internal scratch']
  %s0 = inlined_call_operand.vmem [shape: f32[16,32], index: 0, kind: input, shape index: {}]
  %s1 = inlined_call_operand.vmem [shape: f32[16,32], index: 1, kind: input, shape index: {}]
  %s2 = inlined_call_operand.vmem [shape: f32[1,32], index: 2, kind: input, shape index: {}]
  %s3 = inlined_call_operand.vmem [shape: f32[1,32], index: 3, kind: input, shape index: {}]
  %s4 = inlined_call_operand.vmem [shape: f32[16,32], index: 4, kind: output, shape index: {}]
  %s5 = sld [smem:[#allocation0]]
  $region49: #{decoder_forward.25} parent=0
    _
  %s7 = ssub.s32 1, %s5
  %s8 = scalar_select 0, %s7, %s5
  loop: start=0, step=1, limit=4
  $region2: #{decoder_forward.25} parent=0 // loop_pre_header
    _
  $region3: #{decoder_forward.25} parent=0 // loop_header
    %s10 = sphi 0, %s14
    %p11 = scmp.ge.s32.totalorder %s10, 4
    %s20 = sphi 0, %s22
    %s23 = sphi 0, %s20
    %s24 = sphi 0, %s23
    %s40 = sphi 0, %s24
    %s46 = sphi 0, %s48
    %s49 = sphi 0, %s46
    %s50 = sphi 0, %s49
    %s66 = sphi 0, %s50
    %s70 = sphi 0, %s70
    %s72 = sphi 0, %s70
    %s73 = sphi 0, %s72
    %s87 = sphi 0, %s73
    %s91 = sphi 0, %s91
    %s93 = sphi 0, %s91
    %s94 = sphi 0, %s93
    %s108 = sphi 0, %s94
    %s114 = sphi 0, %s116
    %s117 = sphi 0, %s114
    %s118 = sphi 0, %s117
    %s134 = sphi 0, %s118
  $region4: #{decoder_forward.25} parent=0 // loop_header_branch
    %13 = sbr.rel (%p11) target = $region8
  $region5: #{decoder_forward.25} parent=0 // loop_body
    %s15 = ssub.s32 %s10, 1
    %s16 = ssub.s32 %s10, 2
    %s17 = sadd.s32 %s10, 1
    %s18 = ssub.s32 %s10, %s17
    %p19 = scmp.eq.s32.totalorder %s18, 0
    %s21 = sadd.s32 %s20, 1
    %s22 = scalar_select %p19, %s20, %s21
    %p25 = pneg %p19
    %p26 = scmp.eq.s32.totalorder %s10, 1
    %p27 = por %p25, %p26
    %p28 = scmp.ne.s32.totalorder %s20, %s23
    %p29 = scmp.eq.s32.totalorder %s10, 0
    %p30 = por %p28, %p29
    %p31 = scmp.ne.s32.totalorder %s20, %s23
    %p32 = scmp.eq.s32.totalorder %s15, 1
    %p33 = por %p31, %p32
    %p34 = scmp.ne.s32.totalorder %s23, %s24
    %p35 = scmp.eq.s32.totalorder %s15, 0
    %p36 = por %p34, %p35
    %p37 = scmp.ne.s32.totalorder %s23, %s24
    %p38 = scmp.eq.s32.totalorder %s16, 1
    %p39 = por %p37, %p38
    %p41 = scmp.ne.s32.totalorder %s24, %s40
    %p42 = scmp.eq.s32.totalorder %s16, 0
    %p43 = por %p41, %p42
    %s44 = ssub.s32 %s10, %s17
    %p45 = scmp.eq.s32.totalorder %s44, 0
    %s47 = sadd.s32 %s46, 1
    %s48 = scalar_select %p45, %s46, %s47
    %p51 = pneg %p45
    %p52 = scmp.eq.s32.totalorder %s10, 1
    %p53 = por %p51, %p52
    %p54 = scmp.ne.s32.totalorder %s46, %s49
    %p55 = scmp.eq.s32.totalorder %s10, 0
    %p56 = por %p54, %p55
    %p57 = scmp.ne.s32.totalorder %s46, %s49
    %p58 = scmp.eq.s32.totalorder %s15, 1
    %p59 = por %p57, %p58
    %p60 = scmp.ne.s32.totalorder %s49, %s50
    %p61 = scmp.eq.s32.totalorder %s15, 0
    %p62 = por %p60, %p61
    %p63 = scmp.ne.s32.totalorder %s49, %s50
    %p64 = scmp.eq.s32.totalorder %s16, 1
    %p65 = por %p63, %p64
    %p67 = scmp.ne.s32.totalorder %s50, %s66
    %p68 = scmp.eq.s32.totalorder %s16, 0
    %p69 = por %p67, %p68
    %s71 = sadd.s32 %s70, 1
    %p74 = scmp.eq.s32.totalorder %s10, 1
    %p75 = scmp.ne.s32.totalorder %s70, %s72
    %p76 = scmp.eq.s32.totalorder %s10, 0
    %p77 = por %p75, %p76
    %p78 = scmp.ne.s32.totalorder %s70, %s72
    %p79 = scmp.eq.s32.totalorder %s15, 1
    %p80 = por %p78, %p79
    %p81 = scmp.ne.s32.totalorder %s72, %s73
    %p82 = scmp.eq.s32.totalorder %s15, 0
    %p83 = por %p81, %p82
    %p84 = scmp.ne.s32.totalorder %s72, %s73
    %p85 = scmp.eq.s32.totalorder %s16, 1
    %p86 = por %p84, %p85
    %p88 = scmp.ne.s32.totalorder %s73, %s87
    %p89 = scmp.eq.s32.totalorder %s16, 0
    %p90 = por %p88, %p89
    %s92 = sadd.s32 %s91, 1
    %p95 = scmp.eq.s32.totalorder %s10, 1
    %p96 = scmp.ne.s32.totalorder %s91, %s93
    %p97 = scmp.eq.s32.totalorder %s10, 0
    %p98 = por %p96, %p97
    %p99 = scmp.ne.s32.totalorder %s91, %s93
    %p100 = scmp.eq.s32.totalorder %s15, 1
    %p101 = por %p99, %p100
    %p102 = scmp.ne.s32.totalorder %s93, %s94
    %p103 = scmp.eq.s32.totalorder %s15, 0
    %p104 = por %p102, %p103
    %p105 = scmp.ne.s32.totalorder %s93, %s94
    %p106 = scmp.eq.s32.totalorder %s16, 1
    %p107 = por %p105, %p106
    %p109 = scmp.ne.s32.totalorder %s94, %s108
    %p110 = scmp.eq.s32.totalorder %s16, 0
    %p111 = por %p109, %p110
    %s112 = ssub.s32 %s10, %s17
    %p113 = scmp.eq.s32.totalorder %s112, 0
    %s115 = sadd.s32 %s114, 1
    %s116 = scalar_select %p113, %s114, %s115
    %p119 = pneg %p113
    %p120 = scmp.eq.s32.totalorder %s10, 1
    %p121 = por %p119, %p120
    %p122 = scmp.ne.s32.totalorder %s114, %s117
    %p123 = scmp.eq.s32.totalorder %s10, 0
    %p124 = por %p122, %p123
    %p125 = scmp.ne.s32.totalorder %s114, %s117
    %p126 = scmp.eq.s32.totalorder %s15, 1
    %p127 = por %p125, %p126
    %p128 = scmp.ne.s32.totalorder %s117, %s118
    %p129 = scmp.eq.s32.totalorder %s15, 0
    %p130 = por %p128, %p129
    %p131 = scmp.ne.s32.totalorder %s117, %s118
    %p132 = scmp.eq.s32.totalorder %s16, 1
    %p133 = por %p131, %p132
    %p135 = scmp.ne.s32.totalorder %s118, %s134
    %p136 = scmp.eq.s32.totalorder %s16, 0
    %p137 = por %p135, %p136
    %p138 = scmp.le.s32.totalorder 1, %s10
    %p139 = scmp.lt.s32.totalorder %s10, 3
    %p140 = pnand %p138, %p139
    %p141 = pneg %p140
    // Predicated region
    $region9: #{decoder_forward.25} parent=5 // pred_check
      _
    $region10: #{decoder_forward.25} parent=5 // pred_check_branch
      %143 = sbr.rel (%p140) target = $region12
    $region11: #{decoder_forward.25} parent=5 // pred_region
      %s144 = ssub.s32 %s10, 1
      // Predicated region
      $region13: #{decoder_forward.25} parent=11 // pred_check
        %p145 = pneg %p83
      $region14: #{decoder_forward.25} parent=11 // pred_check_branch
        %147 = sbr.rel (%p145) target = $region16
      $region15: #{decoder_forward.25} parent=11 // pred_region
        _
      $region16: #{decoder_forward.25} parent=11 // pred_fallthru
        _
      // Predicated region
      $region17: #{decoder_forward.25} parent=11 // pred_check
        %p148 = pneg %p104
      $region18: #{decoder_forward.25} parent=11 // pred_check_branch
        %150 = sbr.rel (%p148) target = $region20
      $region19: #{decoder_forward.25} parent=11 // pred_region
        _
      $region20: #{decoder_forward.25} parent=11 // pred_fallthru
        _
    $region12: #{decoder_forward.25} parent=5 // pred_fallthru
      _
    %p151 = scmp.lt.s32.totalorder %s10, 2
    // Predicated region
    $region21: #{decoder_forward.25} parent=5 // pred_check
      %p152 = pneg %p151
    $region22: #{decoder_forward.25} parent=5 // pred_check_branch
      %154 = sbr.rel (%p152) target = $region24
    $region23: #{decoder_forward.25} parent=5 // pred_region
      // Predicated region
      $region25: #{decoder_forward.25} parent=23 // pred_check
        %p155 = pneg %p30
      $region26: #{decoder_forward.25} parent=23 // pred_check_branch
        %157 = sbr.rel (%p155) target = $region28
      $region27: #{decoder_forward.25} parent=23 // pred_region
        %p158 = scmp.lt.s32.totalorder %s10, 1
        %s159 = scalar_select %p158, %s10, 1
        %s160 = smul.addr %s159, 8
        %s161 = scalar_lea.vmem %s0, %s160
      $region28: #{decoder_forward.25} parent=23 // pred_fallthru
        _
      // Predicated region
      $region29: #{decoder_forward.25} parent=23 // pred_check
        %p162 = pneg %p56
      $region30: #{decoder_forward.25} parent=23 // pred_check_branch
        %164 = sbr.rel (%p162) target = $region32
      $region31: #{decoder_forward.25} parent=23 // pred_region
        %p165 = scmp.lt.s32.totalorder %s10, 1
        %s166 = scalar_select %p165, %s10, 1
        %s167 = smul.addr %s166, 8
        %s168 = scalar_lea.vmem %s1, %s167
      $region32: #{decoder_forward.25} parent=23 // pred_fallthru
        _
    $region24: #{decoder_forward.25} parent=5 // pred_fallthru
      _
    %p169 = scmp.le.s32.totalorder 1, %s10
    %p170 = scmp.lt.s32.totalorder %s10, 3
    %p171 = pnand %p169, %p170
    %p172 = pneg %p171
    // Predicated region
    $region33: #{decoder_forward.25} parent=5 // pred_check
      _
    $region34: #{decoder_forward.25} parent=5 // pred_check_branch
      %174 = sbr.rel (%p171) target = $region36
    $region35: #{decoder_forward.25} parent=5 // pred_region
      %s175 = ssub.s32 %s10, 1
      %p176 = scmp.lt.s32.totalorder %s15, 1
      %s177 = scalar_select %p176, %s15, 1
      %s178 = smul.addr %s177, 8
      %s179 = scalar_lea.vmem %s0, %s178
      %p180 = pneg %p36
      %p181 = pneg %p33
      %p182 = scmp.lt.s32.totalorder %s15, 1
      %s183 = scalar_select %p182, %s15, 1
      %s184 = smul.addr %s183, 8
      %s185 = scalar_lea.vmem %s1, %s184
      %p186 = pneg %p62
      %p187 = pneg %p59
      %p188 = pneg %p83
      %p189 = pneg %p80
      %p190 = pneg %p104
      %p191 = pneg %p101
      %p192 = pneg %p130
      %p193 = pneg %p127
      %p194 = scmp.lt.s32.totalorder %s15, 1
      %s195 = scalar_select %p194, %s15, 1
      %s196 = smul.addr %s195, 8
      %s197 = scalar_lea.vmem %s4, %s196
      %p198 = scmp.lt.s32.totalorder %s15, 1
      %s199 = scalar_select %p198, %s15, 1
      %s200 = smul.addr %s199, 8
      %s201 = scalar_lea.vmem %s0, %s200
      %p202 = scmp.lt.s32.totalorder %s15, 1
      %s203 = scalar_select %p202, %s15, 1
      %s204 = smul.addr %s203, 8
      %s205 = scalar_lea.vmem %s1, %s204
      %p206 = scmp.lt.s32.totalorder %s15, 1
      %s207 = scalar_select %p206, %s15, 1
      %s208 = smul.addr %s207, 8
      %s209 = scalar_lea.vmem %s4, %s208
      %v210 = vld [vmem:[%s201] sm:$0xff]
      %v211 = vld [vmem:[%s205] sm:$0xff]
      %v212 = vadd.f32 %v210, %v211
      %vm213 = vcmask 261120
      %v214 = vsel %vm213, %v212, 0.0
      %215 = vadd.xlane.f32.xlu0 %v214
      %v216 = vpop.xlane.xlu0 %215
      %v217 = vrcp.pop 32.0
      %v218 = vmul.f32 %v216, %v217
      %v219 = vsub.f32 %v212, %v218
      %v220 = vmul.f32 %v219, %v219
      %v221 = vsel %vm213, %v220, 0.0
      %222 = vadd.xlane.f32.xlu0 %v221
      %v223 = vpop.xlane.xlu0 %222
      %v224 = vmul.f32 %v223, %v217
      %v225 = vadd.f32 %v224, 1e-05
      %v226 = vrsqrt.pop %v225
      %v227 = vmul.f32 %v219, %v226
      %v228 = vld [vmem:[%s2] sm:$0x1]
      %v230 = vlaneseq
      %v231 = vshrl.u32 %v230, 7
      %v232 = vsub.s32 0, %v231
      %v233 = vrot.slane %v228, %v232
      %v235 = vmul.f32 %v227, %v233
      %v236 = vld [vmem:[%s3] sm:$0x1]
      %v238 = vlaneseq
      %v239 = vshrl.u32 %v238, 7
      %v240 = vsub.s32 0, %v239
      %v241 = vrot.slane %v236, %v240
      %v243 = vadd.f32 %v235, %v241
      %244 = vst.msk [vmem:[%s209] sm:$0xff] %vm213, %v243
      %p245 = scmp.lt.s32.totalorder %s15, 1
      %s246 = scalar_select %p245, %s15, 1
      %s247 = smul.addr %s246, 8
      %s248 = scalar_lea.vmem %s4, %s247
      // Predicated region
      $region37: #{decoder_forward.25} parent=35 // pred_check
        %p249 = pneg %p127
      $region38: #{decoder_forward.25} parent=35 // pred_check_branch
        %251 = sbr.rel (%p249) target = $region40
      $region39: #{decoder_forward.25} parent=35 // pred_region
        _
      $region40: #{decoder_forward.25} parent=35 // pred_fallthru
        _
    $region36: #{decoder_forward.25} parent=5 // pred_fallthru
      _
    %p252 = scmp.le.s32.totalorder 2, %s10
    // Predicated region
    $region41: #{decoder_forward.25} parent=5 // pred_check
      %p253 = pneg %p252
    $region42: #{decoder_forward.25} parent=5 // pred_check_branch
      %255 = sbr.rel (%p253) target = $region44
    $region43: #{decoder_forward.25} parent=5 // pred_region
      %s256 = ssub.s32 %s10, 2
      // Predicated region
      $region45: #{decoder_forward.25} parent=43 // pred_check
        %p257 = pneg %p133
      $region46: #{decoder_forward.25} parent=43 // pred_check_branch
        %259 = sbr.rel (%p257) target = $region48
      $region47: #{decoder_forward.25} parent=43 // pred_region
        %p260 = scmp.lt.s32.totalorder %s16, 1
        %s261 = scalar_select %p260, %s16, 1
        %s262 = smul.addr %s261, 8
        %s263 = scalar_lea.vmem %s4, %s262
      $region48: #{decoder_forward.25} parent=43 // pred_fallthru
        _
    $region44: #{decoder_forward.25} parent=5 // pred_fallthru
      _
  $region6: #{decoder_forward.25} parent=0 // loop_footer
    %s14 = sadd.s32 1, %s10
  $region7: #{decoder_forward.25} parent=0 // loop_footer_branch
    %9 = sbr.rel target = $region3
  $region8: #{decoder_forward.25} parent=0 // loop_exit
    _

// kernel: decoder_forward.24
$region0: #{decoder_forward.24}
  #allocation0 [shape = 'u32[]', space=smem, size = 0x4, offset = 0x4, fixed_abs, tag = 'smem constant byte address 0x4 - core index']
  #allocation1 [shape = 'u32[144,128]{1,0:T(1,128)}', space=vmem, size = 0x12000, scoped, tag = 'internal scratch']
  #allocation2 [shape = 'f32[8,32]{1,0:T(8,128)}', space=vmem, size = 0x1000, scoped, tag = 'scratch operand']
  %s0 = inlined_call_operand.vmem [shape: f32[16,32], index: 0, kind: input, shape index: {}]
  %s1 = inlined_call_operand.vmem [shape: f32[32,32], index: 1, kind: input, shape index: {}]
  %s2 = inlined_call_operand.vmem [shape: f32[1,32], index: 2, kind: input, shape index: {}]
  %s3 = inlined_call_operand.vmem [shape: f32[16,32], index: 3, kind: output, shape index: {}]
  %s4 = sld [smem:[#allocation0]]
  $region53: #{decoder_forward.24} parent=0
    _
  %s6 = ssub.s32 1, %s4
  %s7 = scalar_select 0, %s6, %s4
  loop: start=0, step=1, limit=4
  $region2: #{decoder_forward.24} parent=0 // loop_pre_header
    _
  $region3: #{decoder_forward.24} parent=0 // loop_header
    %s9 = sphi 0, %s13
    %p10 = scmp.ge.s32.totalorder %s9, 4
    %s16 = sphi 0, %s35
    %s17 = sphi 0, %s31
    %s18 = sphi 0, %s27
    %s19 = sphi 0, %s16
    %s20 = sphi 0, %s17
    %s21 = sphi 0, %s18
    %s22 = sphi 0, %s19
    %s23 = sphi 0, %s20
    %s24 = sphi 0, %s21
    %s40 = sphi 0, %s42
    %s43 = sphi 0, %s40
    %s44 = sphi 0, %s43
    %s60 = sphi 0, %s44
    %s68 = sphi 0, %s70
    %s71 = sphi 0, %s68
    %s72 = sphi 0, %s71
    %s88 = sphi 0, %s72
    %s94 = sphi 0, %s96
    %s97 = sphi 0, %s94
    %s98 = sphi 0, %s97
    %s114 = sphi 0, %s98
    %s122 = sphi 0, %s124
    %s125 = sphi 0, %s122
    %s126 = sphi 0, %s125
    %s142 = sphi 0, %s126
  $region4: #{decoder_forward.24} parent=0 // loop_header_branch
    %12 = sbr.rel (%p10) target = $region8
  $region5: #{decoder_forward.24} parent=0 // loop_body
    %s14 = ssub.s32 %s9, 1
    %s15 = ssub.s32 %s9, 2
    %s25 = sadd.s32 1, %s18
    %p26 = scmp.ge.s32.totalorder %s25, 1
    %s27 = scalar_select %p26, 0, %s25
    %s28 = sadd.s32 1, %s17
    %s29 = scalar_select %p26, %s28, %s17
    %p30 = scmp.ge.s32.totalorder %s29, 1
    %s31 = scalar_select %p30, 0, %s29
    %s32 = sadd.s32 1, %s16
    %s33 = scalar_select %p30, %s32, %s16
    %p34 = scmp.ge.s32.totalorder %s33, 2
    %s35 = scalar_select %p34, 0, %s33
    %s36 = ssub.s32 %s16, %s35
    %s37 = ssub.s32 %s18, %s27
    %s38 = sor.u32 %s36, %s37
    %p39 = scmp.eq.s32.totalorder %s38, 0
    %s41 = sadd.s32 %s40, 1
    %s42 = scalar_select %p39, %s40, %s41
    %p45 = pneg %p39
    %p46 = scmp.eq.s32.totalorder %s9, 1
    %p47 = por %p45, %p46
    %p48 = scmp.ne.s32.totalorder %s40, %s43
    %p49 = scmp.eq.s32.totalorder %s9, 0
    %p50 = por %p48, %p49
    %p51 = scmp.ne.s32.totalorder %s40, %s43
    %p52 = scmp.eq.s32.totalorder %s14, 1
    %p53 = por %p51, %p52
    %p54 = scmp.ne.s32.totalorder %s43, %s44
    %p55 = scmp.eq.s32.totalorder %s14, 0
    %p56 = por %p54, %p55
    %p57 = scmp.ne.s32.totalorder %s43, %s44
    %p58 = scmp.eq.s32.totalorder %s15, 1
    %p59 = por %p57, %p58
    %p61 = scmp.ne.s32.totalorder %s44, %s60
    %p62 = scmp.eq.s32.totalorder %s15, 0
    %p63 = por %p61, %p62
    %s64 = ssub.s32 %s18, %s27
    %s65 = ssub.s32 %s17, %s31
    %s66 = sor.u32 %s64, %s65
    %p67 = scmp.eq.s32.totalorder %s66, 0
    %s69 = sadd.s32 %s68, 1
    %s70 = scalar_select %p67, %s68, %s69
    %p73 = pneg %p67
    %p74 = scmp.eq.s32.totalorder %s9, 1
    %p75 = por %p73, %p74
    %p76 = scmp.ne.s32.totalorder %s68, %s71
    %p77 = scmp.eq.s32.totalorder %s9, 0
    %p78 = por %p76, %p77
    %p79 = scmp.ne.s32.totalorder %s68, %s71
    %p80 = scmp.eq.s32.totalorder %s14, 1
    %p81 = por %p79, %p80
    %p82 = scmp.ne.s32.totalorder %s71, %s72
    %p83 = scmp.eq.s32.totalorder %s14, 0
    %p84 = por %p82, %p83
    %p85 = scmp.ne.s32.totalorder %s71, %s72
    %p86 = scmp.eq.s32.totalorder %s15, 1
    %p87 = por %p85, %p86
    %p89 = scmp.ne.s32.totalorder %s72, %s88
    %p90 = scmp.eq.s32.totalorder %s15, 0
    %p91 = por %p89, %p90
    %s92 = ssub.s32 %s17, %s31
    %p93 = scmp.eq.s32.totalorder %s92, 0
    %s95 = sadd.s32 %s94, 1
    %s96 = scalar_select %p93, %s94, %s95
    %p99 = pneg %p93
    %p100 = scmp.eq.s32.totalorder %s9, 1
    %p101 = por %p99, %p100
    %p102 = scmp.ne.s32.totalorder %s94, %s97
    %p103 = scmp.eq.s32.totalorder %s9, 0
    %p104 = por %p102, %p103
    %p105 = scmp.ne.s32.totalorder %s94, %s97
    %p106 = scmp.eq.s32.totalorder %s14, 1
    %p107 = por %p105, %p106
    %p108 = scmp.ne.s32.totalorder %s97, %s98
    %p109 = scmp.eq.s32.totalorder %s14, 0
    %p110 = por %p108, %p109
    %p111 = scmp.ne.s32.totalorder %s97, %s98
    %p112 = scmp.eq.s32.totalorder %s15, 1
    %p113 = por %p111, %p112
    %p115 = scmp.ne.s32.totalorder %s98, %s114
    %p116 = scmp.eq.s32.totalorder %s15, 0
    %p117 = por %p115, %p116
    %s118 = ssub.s32 %s16, %s35
    %s119 = ssub.s32 %s17, %s31
    %s120 = sor.u32 %s118, %s119
    %p121 = scmp.eq.s32.totalorder %s120, 0
    %s123 = sadd.s32 %s122, 1
    %s124 = scalar_select %p121, %s122, %s123
    %p127 = pneg %p121
    %p128 = scmp.eq.s32.totalorder %s9, 1
    %p129 = por %p127, %p128
    %p130 = scmp.ne.s32.totalorder %s122, %s125
    %p131 = scmp.eq.s32.totalorder %s9, 0
    %p132 = por %p130, %p131
    %p133 = scmp.ne.s32.totalorder %s122, %s125
    %p134 = scmp.eq.s32.totalorder %s14, 1
    %p135 = por %p133, %p134
    %p136 = scmp.ne.s32.totalorder %s125, %s126
    %p137 = scmp.eq.s32.totalorder %s14, 0
    %p138 = por %p136, %p137
    %p139 = scmp.ne.s32.totalorder %s125, %s126
    %p140 = scmp.eq.s32.totalorder %s15, 1
    %p141 = por %p139, %p140
    %p143 = scmp.ne.s32.totalorder %s126, %s142
    %p144 = scmp.eq.s32.totalorder %s15, 0
    %p145 = por %p143, %p144
    %p146 = scmp.le.s32.totalorder 1, %s9
    %p147 = scmp.lt.s32.totalorder %s9, 3
    %p148 = pnand %p146, %p147
    %p149 = pneg %p148
    // Predicated region
    $region9: #{decoder_forward.24} parent=5 // pred_check
      _
    $region10: #{decoder_forward.24} parent=5 // pred_check_branch
      %151 = sbr.rel (%p148) target = $region12
    $region11: #{decoder_forward.24} parent=5 // pred_region
      %s152 = ssub.s32 %s9, 1
      // Predicated region
      $region13: #{decoder_forward.24} parent=11 // pred_check
        %p153 = pneg %p84
      $region14: #{decoder_forward.24} parent=11 // pred_check_branch
        %155 = sbr.rel (%p153) target = $region16
      $region15: #{decoder_forward.24} parent=11 // pred_region
        %s156 = smul.u32 4, %s21
        %p157 = scmp.lt.s32.totalorder %s156, 3
        %s158 = scalar_select %p157, %s156, 3
        %p159 = scmp.lt.s32.totalorder %s20, 0
        %s160 = scalar_select %p159, %s20, 0
        %s161 = sadd.s32 %s160, %s158
        %s162 = smul.addr %s161, 8
        %s163 = scalar_lea.vmem %s1, %s162
        %s164 = smul.u32 4, %s21
      $region16: #{decoder_forward.24} parent=11 // pred_fallthru
        _
      // Predicated region
      $region17: #{decoder_forward.24} parent=11 // pred_check
        %p165 = pneg %p110
      $region18: #{decoder_forward.24} parent=11 // pred_check_branch
        %167 = sbr.rel (%p165) target = $region20
      $region19: #{decoder_forward.24} parent=11 // pred_region
        %p168 = scmp.lt.s32.totalorder %s20, 0
        %s169 = scalar_select %p168, %s20, 0
        %s170 = scalar_lea.vmem %s2, %s169
      $region20: #{decoder_forward.24} parent=11 // pred_fallthru
        _
    $region12: #{decoder_forward.24} parent=5 // pred_fallthru
      _
    %p171 = scmp.lt.s32.totalorder %s9, 2
    // Predicated region
    $region21: #{decoder_forward.24} parent=5 // pred_check
      %p172 = pneg %p171
    $region22: #{decoder_forward.24} parent=5 // pred_check_branch
      %174 = sbr.rel (%p172) target = $region24
    $region23: #{decoder_forward.24} parent=5 // pred_region
      // Predicated region
      $region25: #{decoder_forward.24} parent=23 // pred_check
        %p175 = pneg %p50
      $region26: #{decoder_forward.24} parent=23 // pred_check_branch
        %177 = sbr.rel (%p175) target = $region28
      $region27: #{decoder_forward.24} parent=23 // pred_region
        %p178 = scmp.lt.s32.totalorder %s16, 1
        %s179 = scalar_select %p178, %s16, 1
        %p180 = scmp.lt.s32.totalorder %s18, 0
        %s181 = scalar_select %p180, %s18, 0
        %s182 = sadd.s32 %s181, %s179
        %s183 = smul.addr %s182, 8
        %s184 = scalar_lea.vmem %s0, %s183
      $region28: #{decoder_forward.24} parent=23 // pred_fallthru
        _
    $region24: #{decoder_forward.24} parent=5 // pred_fallthru
      _
    %p185 = scmp.le.s32.totalorder 1, %s9
    %p186 = scmp.lt.s32.totalorder %s9, 3
    %p187 = pnand %p185, %p186
    %p188 = pneg %p187
    // Predicated region
    $region29: #{decoder_forward.24} parent=5 // pred_check
      _
    $region30: #{decoder_forward.24} parent=5 // pred_check_branch
      %190 = sbr.rel (%p187) target = $region32
    $region31: #{decoder_forward.24} parent=5 // pred_region
      %s191 = ssub.s32 %s9, 1
      %p192 = scmp.lt.s32.totalorder %s19, 1
      %s193 = scalar_select %p192, %s19, 1
      %p194 = scmp.lt.s32.totalorder %s21, 0
      %s195 = scalar_select %p194, %s21, 0
      %s196 = sadd.s32 %s195, %s193
      %s197 = smul.addr %s196, 8
      %s198 = scalar_lea.vmem %s0, %s197
      %p199 = pneg %p56
      %p200 = pneg %p53
      %s201 = smul.u32 4, %s21
      %p202 = scmp.lt.s32.totalorder %s201, 3
      %s203 = scalar_select %p202, %s201, 3
      %p204 = scmp.lt.s32.totalorder %s20, 0
      %s205 = scalar_select %p204, %s20, 0
      %s206 = sadd.s32 %s205, %s203
      %s207 = smul.addr %s206, 8
      %s208 = scalar_lea.vmem %s1, %s207
      %p209 = pneg %p84
      %p210 = pneg %p81
      %p211 = scmp.lt.s32.totalorder %s20, 0
      %s212 = scalar_select %p211, %s20, 0
      %s213 = scalar_lea.vmem %s2, %s212
      %p214 = pneg %p110
      %p215 = pneg %p107
      %p216 = pneg %p138
      %p217 = pneg %p135
      %p218 = scmp.lt.s32.totalorder %s19, 1
      %s219 = scalar_select %p218, %s19, 1
      %p220 = scmp.lt.s32.totalorder %s20, 0
      %s221 = scalar_select %p220, %s20, 0
      %s222 = sadd.s32 %s221, %s219
      %s223 = smul.addr %s222, 8
      %s224 = scalar_lea.vmem %s3, %s223
      %p225 = scmp.lt.s32.totalorder %s19, 1
      %s226 = scalar_select %p225, %s19, 1
      %p227 = scmp.lt.s32.totalorder %s21, 0
      %s228 = scalar_select %p227, %s21, 0
      %s229 = sadd.s32 %s228, %s226
      %s230 = smul.addr %s229, 8
      %s231 = scalar_lea.vmem %s0, %s230
      %s232 = smul.u32 4, %s21
      %p233 = scmp.lt.s32.totalorder %s232, 3
      %s234 = scalar_select %p233, %s232, 3
      %p235 = scmp.lt.s32.totalorder %s20, 0
      %s236 = scalar_select %p235, %s20, 0
      %s237 = sadd.s32 %s236, %s234
      %s238 = smul.addr %s237, 8
      %s239 = scalar_lea.vmem %s1, %s238
      %s240 = smul.u32 4, %s21
      %p241 = scmp.lt.s32.totalorder %s20, 0
      %s242 = scalar_select %p241, %s20, 0
      %s243 = scalar_lea.vmem %s2, %s242
      %p244 = scmp.lt.s32.totalorder %s19, 1
      %s245 = scalar_select %p244, %s19, 1
      %p246 = scmp.lt.s32.totalorder %s20, 0
      %s247 = scalar_select %p246, %s20, 0
      %s248 = sadd.s32 %s247, %s245
      %s249 = smul.addr %s248, 8
      %s250 = scalar_lea.vmem %s3, %s249
      %p251 = scmp.eq.s32.totalorder %s21, 0
      // Predicated region
      $region33: #{decoder_forward.24} parent=31 // pred_check
        %p252 = pneg %p251
      $region34: #{decoder_forward.24} parent=31 // pred_check_branch
        %254 = sbr.rel (%p252) target = $region36
      $region35: #{decoder_forward.24} parent=31 // pred_region
        %vm255 = vcmask 261120
        %256 = vst.msk [vmem:[#allocation2] sm:$0xff] %vm255, 0.0
      $region36: #{decoder_forward.24} parent=31 // pred_fallthru
        _
      %v257 = vld [vmem:[#allocation2] sm:$0xff]
      %v258 = vld [vmem:[%s231] sm:$0xff]
      %v259 = vld [vmem:[%s239] sm:$0xff]
      %v260 = vld [vmem:[%s239 + $0x8] sm:$0xff]
      %v261 = vld [vmem:[%s239 + $0x10] sm:$0xff]
      %v262 = vld [vmem:[%s239 + $0x18] sm:$0xff]
      %vm263 = vcmask 261120
      %v265 = vsel %vm263, %v258, 0
      %267 = vmatprep.subr.mxu0 0.0
      %268 = vmatpush1.msra.mxu0 %v259
      %269 = vmatprep.subr.mxu0 0.0
      %270 = vmatpush1.msra.mxu0 %v260
      %271 = vmatprep.subr.mxu0 0.0
      %272 = vmatpush1.msra.mxu0 %v261
      %273 = vmatprep.subr.mxu0 0.0
      %274 = vmatpush1.msra.mxu0 %v262
      %275 = vmatprep.subr.mxu0 0.0
      %276 = vmatpush1.msra.mxu0 0.0
      %277 = vmatprep.subr.mxu0 0.0
      %278 = vmatpush1.msra.mxu0 0.0
      %279 = vmatprep.subr.mxu0 0.0
      %280 = vmatpush1.msra.mxu0 0.0
      %281 = vmatprep.subr.mxu0 0.0
      %282 = vmatpush1.msra.mxu0 0.0
      %283 = vmatprep.subr.mxu0 0.0
      %284 = vmatpush1.msra.mxu0 0.0
      %285 = vmatprep.subr.mxu0 0.0
      %286 = vmatpush1.msra.mxu0 0.0
      %287 = vmatprep.subr.mxu0 0.0
      %288 = vmatpush1.msra.mxu0 0.0
      %289 = vmatprep.subr.mxu0 0.0
      %290 = vmatpush1.msra.mxu0 0.0
      %291 = vmatprep.subr.mxu0 0.0
      %292 = vmatpush1.msra.mxu0 0.0
      %293 = vmatprep.subr.mxu0 0.0
      %294 = vmatpush1.msra.mxu0 0.0
      %295 = vmatprep.subr.mxu0 0.0
      %296 = vmatpush1.msra.mxu0 0.0
      %297 = vmatprep.subr.mxu0 0.0
      %298 = vmatpush1.msra.mxu0 0.0
      %299 = vmatprep.subr.mxu0 0.0
      %300 = vmatpush1.msra.mxu0 0.0
      %301 = vmatprep.subr.mxu0 0.0
      %302 = vmatpush1.msra.mxu0 0.0
      %303 = vmatprep.subr.mxu0 0.0
      %304 = vmatpush1.msra.mxu0 0.0
      %305 = vmatprep.subr.mxu0 0.0
      %306 = vmatpush1.msra.mxu0 0.0
      %307 = vmatprep.subr.mxu0 0.0
      %308 = vmatpush1.msra.mxu0 0.0
      %309 = vmatprep.subr.mxu0 0.0
      %310 = vmatpush1.msra.mxu0 0.0
      %311 = vmatprep.subr.mxu0 0.0
      %312 = vmatpush1.msra.mxu0 0.0
      %313 = vmatprep.subr.mxu0 0.0
      %314 = vmatpush1.msra.mxu0 0.0
      %315 = vmatprep.subr.mxu0 0.0
      %316 = vmatpush1.msra.mxu0 0.0
      %317 = vmatprep.subr.mxu0 0.0
      %318 = vmatpush1.msra.mxu0 0.0
      %319 = vmatprep.subr.mxu0 0.0
      %320 = vmatpush1.msra.mxu0 0.0
      %321 = vmatprep.subr.mxu0 0.0
      %322 = vmatpush1.msra.mxu0 0.0
      %323 = vmatprep.subr.mxu0 0.0
      %324 = vmatpush1.msra.mxu0 0.0
      %325 = vmatprep.subr.mxu0 0.0
      %326 = vmatpush1.msra.mxu0 0.0
      %327 = vmatprep.subr.mxu0 0.0
      %328 = vmatpush1.msra.mxu0 0.0
      %329 = vmatprep.subr.mxu0 0.0
      %330 = vmatpush1.msra.mxu0 0.0
      %331 = vmatprep.mubr.f32.mxu0 0.0
      %332 = vmatmul.mubr.f32.gmra.mrb[0].mxu0 %v265
      %v333 = vpop.f32.mrb[0].mxu0
      %v334 = vadd.f32 0.0, %v333
      %v335 = vpop.f32.mrb[0].mxu0
      %336 = vdwg.mxu0
      %v337 = vadd.f32 %v257, %v334
      %338 = vst.msk [vmem:[#allocation2] sm:$0xff] %vm263, %v337
      // Predicated region
      $region37: #{decoder_forward.24} parent=31 // pred_check
        %p339 = pneg %p251
      $region38: #{decoder_forward.24} parent=31 // pred_check_branch
        %341 = sbr.rel (%p339) target = $region40
      $region39: #{decoder_forward.24} parent=31 // pred_region
        %v342 = vld [vmem:[#allocation2] sm:$0xff]
        %v343 = vld [vmem:[%s243] sm:$0x1]
        %v345 = vlaneseq
        %v346 = vshrl.u32 %v345, 7
        %v347 = vsub.s32 0, %v346
        %v348 = vrot.slane %v343, %v347
        %v350 = vadd.f32 %v342, %v348
        %351 = vst.msk [vmem:[%s250] sm:$0xff] %vm263, %v350
      $region40: #{decoder_forward.24} parent=31 // pred_fallthru
        _
      %p352 = scmp.lt.s32.totalorder %s19, 1
      %s353 = scalar_select %p352, %s19, 1
      %p354 = scmp.lt.s32.totalorder %s20, 0
      %s355 = scalar_select %p354, %s20, 0
      %s356 = sadd.s32 %s355, %s353
      %s357 = smul.addr %s356, 8
      %s358 = scalar_lea.vmem %s3, %s357
      // Predicated region
      $region41: #{decoder_forward.24} parent=31 // pred_check
        %p359 = pneg %p135
      $region42: #{decoder_forward.24} parent=31 // pred_check_branch
        %361 = sbr.rel (%p359) target = $region44
      $region43: #{decoder_forward.24} parent=31 // pred_region
        _
      $region44: #{decoder_forward.24} parent=31 // pred_fallthru
        _
    $region32: #{decoder_forward.24} parent=5 // pred_fallthru
      _
    %p362 = scmp.le.s32.totalorder 2, %s9
    // Predicated region
    $region45: #{decoder_forward.24} parent=5 // pred_check
      %p363 = pneg %p362
    $region46: #{decoder_forward.24} parent=5 // pred_check_branch
      %365 = sbr.rel (%p363) target = $region48
    $region47: #{decoder_forward.24} parent=5 // pred_region
      %s366 = ssub.s32 %s9, 2
      // Predicated region
      $region49: #{decoder_forward.24} parent=47 // pred_check
        %p367 = pneg %p141
      $region50: #{decoder_forward.24} parent=47 // pred_check_branch
        %369 = sbr.rel (%p367) target = $region52
      $region51: #{decoder_forward.24} parent=47 // pred_region
        %p370 = scmp.lt.s32.totalorder %s22, 1
        %s371 = scalar_select %p370, %s22, 1
        %p372 = scmp.lt.s32.totalorder %s23, 0
        %s373 = scalar_select %p372, %s23, 0
        %s374 = sadd.s32 %s373, %s371
        %s375 = smul.addr %s374, 8
        %s376 = scalar_lea.vmem %s3, %s375
      $region52: #{decoder_forward.24} parent=47 // pred_fallthru
        _
    $region48: #{decoder_forward.24} parent=5 // pred_fallthru
      _
  $region6: #{decoder_forward.24} parent=0 // loop_footer
    %s13 = sadd.s32 1, %s9
  $region7: #{decoder_forward.24} parent=0 // loop_footer_branch
    %8 = sbr.rel target = $region3
  $region8: #{decoder_forward.24} parent=0 // loop_exit
    _

// kernel: decoder_forward.23
$region0: #{decoder_forward.23}
  #allocation0 [shape = 'u32[]', space=smem, size = 0x4, offset = 0x4, fixed_abs, tag = 'smem constant byte address 0x4 - core index']
  #allocation1 [shape = 'u32[144,128]{1,0:T(1,128)}', space=vmem, size = 0x12000, scoped, tag = 'internal scratch']
  %s0 = inlined_call_operand.vmem [shape: f32[2,8,96], index: 0, kind: input, shape index: {}]
  %s1 = inlined_call_operand.vmem [shape: f32[2,1,8], index: 1, kind: input, shape index: {}]
  %s2 = inlined_call_operand.vmem [shape: f32[8,8], index: 2, kind: input, shape index: {}]
  %s3 = inlined_call_operand.vmem [shape: f32[2,8,32], index: 3, kind: output, shape index: {}]
  %s4 = sld [smem:[#allocation0]]
  $region45: #{decoder_forward.23} parent=0
    _
  %s6 = ssub.s32 1, %s4
  %s7 = scalar_select 0, %s6, %s4
  loop: start=0, step=1, limit=4
  $region2: #{decoder_forward.23} parent=0 // loop_pre_header
    _
  $region3: #{decoder_forward.23} parent=0 // loop_header
    %s9 = sphi 0, %s13
    %p10 = scmp.ge.s32.totalorder %s9, 4
    %s19 = sphi 0, %s21
    %s22 = sphi 0, %s19
    %s23 = sphi 0, %s22
    %s39 = sphi 0, %s23
    %s45 = sphi 0, %s47
    %s48 = sphi 0, %s45
    %s49 = sphi 0, %s48
    %s65 = sphi 0, %s49
    %s69 = sphi 0, %s69
    %s71 = sphi 0, %s69
    %s72 = sphi 0, %s71
    %s86 = sphi 0, %s72
    %s92 = sphi 0, %s94
    %s95 = sphi 0, %s92
    %s96 = sphi 0, %s95
    %s112 = sphi 0, %s96
  $region4: #{decoder_forward.23} parent=0 // loop_header_branch
    %12 = sbr.rel (%p10) target = $region8
  $region5: #{decoder_forward.23} parent=0 // loop_body
    %s14 = ssub.s32 %s9, 1
    %s15 = ssub.s32 %s9, 2
    %s16 = sadd.s32 %s9, 1
    %s17 = ssub.s32 %s9, %s16
    %p18 = scmp.eq.s32.totalorder %s17, 0
    %s20 = sadd.s32 %s19, 1
    %s21 = scalar_select %p18, %s19, %s20
    %p24 = pneg %p18
    %p25 = scmp.eq.s32.totalorder %s9, 1
    %p26 = por %p24, %p25
    %p27 = scmp.ne.s32.totalorder %s19, %s22
    %p28 = scmp.eq.s32.totalorder %s9, 0
    %p29 = por %p27, %p28
    %p30 = scmp.ne.s32.totalorder %s19, %s22
    %p31 = scmp.eq.s32.totalorder %s14, 1
    %p32 = por %p30, %p31
    %p33 = scmp.ne.s32.totalorder %s22, %s23
    %p34 = scmp.eq.s32.totalorder %s14, 0
    %p35 = por %p33, %p34
    %p36 = scmp.ne.s32.totalorder %s22, %s23
    %p37 = scmp.eq.s32.totalorder %s15, 1
    %p38 = por %p36, %p37
    %p40 = scmp.ne.s32.totalorder %s23, %s39
    %p41 = scmp.eq.s32.totalorder %s15, 0
    %p42 = por %p40, %p41
    %s43 = ssub.s32 %s9, %s16
    %p44 = scmp.eq.s32.totalorder %s43, 0
    %s46 = sadd.s32 %s45, 1
    %s47 = scalar_select %p44, %s45, %s46
    %p50 = pneg %p44
    %p51 = scmp.eq.s32.totalorder %s9, 1
    %p52 = por %p50, %p51
    %p53 = scmp.ne.s32.totalorder %s45, %s48
    %p54 = scmp.eq.s32.totalorder %s9, 0
    %p55 = por %p53, %p54
    %p56 = scmp.ne.s32.totalorder %s45, %s48
    %p57 = scmp.eq.s32.totalorder %s14, 1
    %p58 = por %p56, %p57
    %p59 = scmp.ne.s32.totalorder %s48, %s49
    %p60 = scmp.eq.s32.totalorder %s14, 0
    %p61 = por %p59, %p60
    %p62 = scmp.ne.s32.totalorder %s48, %s49
    %p63 = scmp.eq.s32.totalorder %s15, 1
    %p64 = por %p62, %p63
    %p66 = scmp.ne.s32.totalorder %s49, %s65
    %p67 = scmp.eq.s32.totalorder %s15, 0
    %p68 = por %p66, %p67
    %s70 = sadd.s32 %s69, 1
    %p73 = scmp.eq.s32.totalorder %s9, 1
    %p74 = scmp.ne.s32.totalorder %s69, %s71
    %p75 = scmp.eq.s32.totalorder %s9, 0
    %p76 = por %p74, %p75
    %p77 = scmp.ne.s32.totalorder %s69, %s71
    %p78 = scmp.eq.s32.totalorder %s14, 1
    %p79 = por %p77, %p78
    %p80 = scmp.ne.s32.totalorder %s71, %s72
    %p81 = scmp.eq.s32.totalorder %s14, 0
    %p82 = por %p80, %p81
    %p83 = scmp.ne.s32.totalorder %s71, %s72
    %p84 = scmp.eq.s32.totalorder %s15, 1
    %p85 = por %p83, %p84
    %p87 = scmp.ne.s32.totalorder %s72, %s86
    %p88 = scmp.eq.s32.totalorder %s15, 0
    %p89 = por %p87, %p88
    %s90 = ssub.s32 %s9, %s16
    %p91 = scmp.eq.s32.totalorder %s90, 0
    %s93 = sadd.s32 %s92, 1
    %s94 = scalar_select %p91, %s92, %s93
    %p97 = pneg %p91
    %p98 = scmp.eq.s32.totalorder %s9, 1
    %p99 = por %p97, %p98
    %p100 = scmp.ne.s32.totalorder %s92, %s95
    %p101 = scmp.eq.s32.totalorder %s9, 0
    %p102 = por %p100, %p101
    %p103 = scmp.ne.s32.totalorder %s92, %s95
    %p104 = scmp.eq.s32.totalorder %s14, 1
    %p105 = por %p103, %p104
    %p106 = scmp.ne.s32.totalorder %s95, %s96
    %p107 = scmp.eq.s32.totalorder %s14, 0
    %p108 = por %p106, %p107
    %p109 = scmp.ne.s32.totalorder %s95, %s96
    %p110 = scmp.eq.s32.totalorder %s15, 1
    %p111 = por %p109, %p110
    %p113 = scmp.ne.s32.totalorder %s96, %s112
    %p114 = scmp.eq.s32.totalorder %s15, 0
    %p115 = por %p113, %p114
    %p116 = scmp.le.s32.totalorder 1, %s9
    %p117 = scmp.lt.s32.totalorder %s9, 3
    %p118 = pnand %p116, %p117
    %p119 = pneg %p118
    // Predicated region
    $region9: #{decoder_forward.23} parent=5 // pred_check
      _
    $region10: #{decoder_forward.23} parent=5 // pred_check_branch
      %121 = sbr.rel (%p118) target = $region12
    $region11: #{decoder_forward.23} parent=5 // pred_region
      %s122 = ssub.s32 %s9, 1
      // Predicated region
      $region13: #{decoder_forward.23} parent=11 // pred_check
        %p123 = pneg %p82
      $region14: #{decoder_forward.23} parent=11 // pred_check_branch
        %125 = sbr.rel (%p123) target = $region16
      $region15: #{decoder_forward.23} parent=11 // pred_region
        _
      $region16: #{decoder_forward.23} parent=11 // pred_fallthru
        _
    $region12: #{decoder_forward.23} parent=5 // pred_fallthru
      _
    %p126 = scmp.lt.s32.totalorder %s9, 2
    // Predicated region
    $region17: #{decoder_forward.23} parent=5 // pred_check
      %p127 = pneg %p126
    $region18: #{decoder_forward.23} parent=5 // pred_check_branch
      %129 = sbr.rel (%p127) target = $region20
    $region19: #{decoder_forward.23} parent=5 // pred_region
      // Predicated region
      $region21: #{decoder_forward.23} parent=19 // pred_check
        %p130 = pneg %p29
      $region22: #{decoder_forward.23} parent=19 // pred_check_branch
        %132 = sbr.rel (%p130) target = $region24
      $region23: #{decoder_forward.23} parent=19 // pred_region
        %p133 = scmp.lt.s32.totalorder %s9, 1
        %s134 = scalar_select %p133, %s9, 1
        %s135 = smul.addr %s134, 8
        %s136 = scalar_lea.vmem %s0, %s135
      $region24: #{decoder_forward.23} parent=19 // pred_fallthru
        _
      // Predicated region
      $region25: #{decoder_forward.23} parent=19 // pred_check
        %p137 = pneg %p55
      $region26: #{decoder_forward.23} parent=19 // pred_check_branch
        %139 = sbr.rel (%p137) target = $region28
      $region27: #{decoder_forward.23} parent=19 // pred_region
        %p140 = scmp.lt.s32.totalorder %s9, 1
        %s141 = scalar_select %p140, %s9, 1
        %s142 = scalar_lea.vmem %s1, %s141
      $region28: #{decoder_forward.23} parent=19 // pred_fallthru
        _
    $region20: #{decoder_forward.23} parent=5 // pred_fallthru
      _
    %p143 = scmp.le.s32.totalorder 1, %s9
    %p144 = scmp.lt.s32.totalorder %s9, 3
    %p145 = pnand %p143, %p144
    %p146 = pneg %p145
    // Predicated region
    $region29: #{decoder_forward.23} parent=5 // pred_check
      _
    $region30: #{decoder_forward.23} parent=5 // pred_check_branch
      %148 = sbr.rel (%p145) target = $region32
    $region31: #{decoder_forward.23} parent=5 // pred_region
      %s149 = ssub.s32 %s9, 1
      %p150 = scmp.lt.s32.totalorder %s14, 1
      %s151 = scalar_select %p150, %s14, 1
      %s152 = smul.addr %s151, 8
      %s153 = scalar_lea.vmem %s0, %s152
      %p154 = pneg %p35
      %p155 = pneg %p32
      %p156 = scmp.lt.s32.totalorder %s14, 1
      %s157 = scalar_select %p156, %s14, 1
      %s158 = scalar_lea.vmem %s1, %s157
      %p159 = pneg %p61
      %p160 = pneg %p58
      %p161 = pneg %p82
      %p162 = pneg %p79
      %p163 = pneg %p108
      %p164 = pneg %p105
      %p165 = scmp.lt.s32.totalorder %s14, 1
      %s166 = scalar_select %p165, %s14, 1
      %s167 = smul.addr %s166, 8
      %s168 = scalar_lea.vmem %s3, %s167
      %p169 = scmp.lt.s32.totalorder %s14, 1
      %s170 = scalar_select %p169, %s14, 1
      %s171 = smul.addr %s170, 8
      %s172 = scalar_lea.vmem %s0, %s171
      %p173 = scmp.lt.s32.totalorder %s14, 1
      %s174 = scalar_select %p173, %s14, 1
      %s175 = scalar_lea.vmem %s1, %s174
      %p176 = scmp.lt.s32.totalorder %s14, 1
      %s177 = scalar_select %p176, %s14, 1
      %s178 = smul.addr %s177, 8
      %s179 = scalar_lea.vmem %s3, %s178
      %v180 = vld [vmem:[%s172] sm:$0xff]
      %v181 = vld [vmem:[%s175] sm:$0x1]
      %v182 = vld [vmem:[%s2] sm:$0xff]
      %v184 = vlaneseq
      %v185 = vshrl.u32 %v184, 7
      %v186 = vsub.s32 0, %v185
      %v187 = vrot.slane %v181, %v186
      %v189 = vadd.f32 %v187, %v182
      %vm190 = vcmp.gt.f32.partialorder %v189, 0.5
      %v191 = vsel %vm190, -1e+09, 0.0
      %193 = vrot.lane.b32.xlu0 %v180, 96
      %v194 = vpop.permute.xlu0 %193
      %vm195 = vcmask 64512
      %v196 = vsel %vm195, %v180, 0
      %v198 = vsel %vm195, %v194, 0
      %200 = vmatprep.subr.mxu0 0.0
      %201 = vmatpush1.xpose.msra.mxu0 %v198
      %202 = vmatprep.subr.mxu0 0.0
      %203 = vmatpush1.xpose.msra.mxu0 0.0
      %204 = vmatprep.subr.mxu0 0.0
      %205 = vmatpush1.xpose.msra.mxu0 0.0
      %206 = vmatprep.subr.mxu0 0.0
      %207 = vmatpush1.xpose.msra.mxu0 0.0
      %208 = vmatprep.subr.mxu0 0.0
      %209 = vmatpush1.xpose.msra.mxu0 0.0
      %210 = vmatprep.subr.mxu0 0.0
      %211 = vmatpush1.xpose.msra.mxu0 0.0
      %212 = vmatprep.subr.mxu0 0.0
      %213 = vmatpush1.xpose.msra.mxu0 0.0
      %214 = vmatprep.subr.mxu0 0.0
      %215 = vmatpush1.xpose.msra.mxu0 0.0
      %216 = vmatprep.subr.mxu0 0.0
      %217 = vmatpush1.xpose.msra.mxu0 0.0
      %218 = vmatprep.subr.mxu0 0.0
      %219 = vmatpush1.xpose.msra.mxu0 0.0
      %220 = vmatprep.subr.mxu0 0.0
      %221 = vmatpush1.xpose.msra.mxu0 0.0
      %222 = vmatprep.subr.mxu0 0.0
      %223 = vmatpush1.xpose.msra.mxu0 0.0
      %224 = vmatprep.subr.mxu0 0.0
      %225 = vmatpush1.xpose.msra.mxu0 0.0
      %226 = vmatprep.subr.mxu0 0.0
      %227 = vmatpush1.xpose.msra.mxu0 0.0
      %228 = vmatprep.subr.mxu0 0.0
      %229 = vmatpush1.xpose.msra.mxu0 0.0
      %230 = vmatprep.subr.mxu0 0.0
      %231 = vmatpush1.xpose.msra.mxu0 0.0
      %232 = vmatprep.subr.mxu0 0.0
      %233 = vmatpush1.xpose.msra.mxu0 0.0
      %234 = vmatprep.subr.mxu0 0.0
      %235 = vmatpush1.xpose.msra.mxu0 0.0
      %236 = vmatprep.subr.mxu0 0.0
      %237 = vmatpush1.xpose.msra.mxu0 0.0
      %238 = vmatprep.subr.mxu0 0.0
      %239 = vmatpush1.xpose.msra.mxu0 0.0
      %240 = vmatprep.subr.mxu0 0.0
      %241 = vmatpush1.xpose.msra.mxu0 0.0
      %242 = vmatprep.subr.mxu0 0.0
      %243 = vmatpush1.xpose.msra.mxu0 0.0
      %244 = vmatprep.subr.mxu0 0.0
      %245 = vmatpush1.xpose.msra.mxu0 0.0
      %246 = vmatprep.subr.mxu0 0.0
      %247 = vmatpush1.xpose.msra.mxu0 0.0
      %248 = vmatprep.subr.mxu0 0.0
      %249 = vmatpush1.xpose.msra.mxu0 0.0
      %250 = vmatprep.subr.mxu0 0.0
      %251 = vmatpush1.xpose.msra.mxu0 0.0
      %252 = vmatprep.subr.mxu0 0.0
      %253 = vmatpush1.xpose.msra.mxu0 0.0
      %254 = vmatprep.subr.mxu0 0.0
      %255 = vmatpush1.xpose.msra.mxu0 0.0
      %256 = vmatprep.subr.mxu0 0.0
      %257 = vmatpush1.xpose.msra.mxu0 0.0
      %258 = vmatprep.subr.mxu0 0.0
      %259 = vmatpush1.xpose.msra.mxu0 0.0
      %260 = vmatprep.subr.mxu0 0.0
      %261 = vmatpush1.xpose.msra.mxu0 0.0
      %262 = vmatprep.subr.mxu0 0.0
      %263 = vmatpush1.xpose.msra.mxu0 0.0
      %264 = vmatprep.mubr.f32.mxu0 0.0
      %265 = vmatmul.mubr.f32.gmra.mrb[0].mxu0 %v196
      %v266 = vpop.f32.mrb[0].mxu0
      %v267 = vadd.f32 0.0, %v266
      %v268 = vpop.f32.mrb[0].mxu0
      %269 = vdwg.mxu0
      %v270 = vmul.f32 %v267, 0.35355338
      %v271 = vadd.f32 %v270, %v191
      %v272 = vsel %vm195, %v271, -inf
      %273 = vmax.xlane.f32.xlu0 %v272
      %v274 = vpop.xlane.xlu0 %273
      %v275 = vsub.f32 %v271, %v274
      %v276 = vmul.f32 %v275, 1.442695
      %v277 = vpow.pop %v276
      %v278 = vsel %vm195, %v277, 0.0
      %279 = vadd.xlane.f32.xlu0 %v278
      %v280 = vpop.xlane.xlu0 %279
      %v281 = vrcp.pop %v280
      %v282 = vmul.f32 %v277, %v281
      %283 = vrot.lane.b32.xlu0 %v180, 64
      %v284 = vpop.permute.xlu0 %283
      %v287 = vsel %vm195, %v282, 0
      %289 = vmatprep.subr.mxu0 0.0
      %290 = vmatpush1.msra.mxu0 %v284
      %291 = vmatprep.subr.mxu0 0.0
      %292 = vmatpush1.msra.mxu0 0.0
      %293 = vmatprep.subr.mxu0 0.0
      %294 = vmatpush1.msra.mxu0 0.0
      %295 = vmatprep.subr.mxu0 0.0
      %296 = vmatpush1.msra.mxu0 0.0
      %297 = vmatprep.subr.mxu0 0.0
      %298 = vmatpush1.msra.mxu0 0.0
      %299 = vmatprep.subr.mxu0 0.0
      %300 = vmatpush1.msra.mxu0 0.0
      %301 = vmatprep.subr.mxu0 0.0
      %302 = vmatpush1.msra.mxu0 0.0
      %303 = vmatprep.subr.mxu0 0.0
      %304 = vmatpush1.msra.mxu0 0.0
      %305 = vmatprep.subr.mxu0 0.0
      %306 = vmatpush1.msra.mxu0 0.0
      %307 = vmatprep.subr.mxu0 0.0
      %308 = vmatpush1.msra.mxu0 0.0
      %309 = vmatprep.subr.mxu0 0.0
      %310 = vmatpush1.msra.mxu0 0.0
      %311 = vmatprep.subr.mxu0 0.0
      %312 = vmatpush1.msra.mxu0 0.0
      %313 = vmatprep.subr.mxu0 0.0
      %314 = vmatpush1.msra.mxu0 0.0
      %315 = vmatprep.subr.mxu0 0.0
      %316 = vmatpush1.msra.mxu0 0.0
      %317 = vmatprep.subr.mxu0 0.0
      %318 = vmatpush1.msra.mxu0 0.0
      %319 = vmatprep.subr.mxu0 0.0
      %320 = vmatpush1.msra.mxu0 0.0
      %321 = vmatprep.subr.mxu0 0.0
      %322 = vmatpush1.msra.mxu0 0.0
      %323 = vmatprep.subr.mxu0 0.0
      %324 = vmatpush1.msra.mxu0 0.0
      %325 = vmatprep.subr.mxu0 0.0
      %326 = vmatpush1.msra.mxu0 0.0
      %327 = vmatprep.subr.mxu0 0.0
      %328 = vmatpush1.msra.mxu0 0.0
      %329 = vmatprep.subr.mxu0 0.0
      %330 = vmatpush1.msra.mxu0 0.0
      %331 = vmatprep.subr.mxu0 0.0
      %332 = vmatpush1.msra.mxu0 0.0
      %333 = vmatprep.subr.mxu0 0.0
      %334 = vmatpush1.msra.mxu0 0.0
      %335 = vmatprep.subr.mxu0 0.0
      %336 = vmatpush1.msra.mxu0 0.0
      %337 = vmatprep.subr.mxu0 0.0
      %338 = vmatpush1.msra.mxu0 0.0
      %339 = vmatprep.subr.mxu0 0.0
      %340 = vmatpush1.msra.mxu0 0.0
      %341 = vmatprep.subr.mxu0 0.0
      %342 = vmatpush1.msra.mxu0 0.0
      %343 = vmatprep.subr.mxu0 0.0
      %344 = vmatpush1.msra.mxu0 0.0
      %345 = vmatprep.subr.mxu0 0.0
      %346 = vmatpush1.msra.mxu0 0.0
      %347 = vmatprep.subr.mxu0 0.0
      %348 = vmatpush1.msra.mxu0 0.0
      %349 = vmatprep.subr.mxu0 0.0
      %350 = vmatpush1.msra.mxu0 0.0
      %351 = vmatprep.subr.mxu0 0.0
      %352 = vmatpush1.msra.mxu0 0.0
      %353 = vmatprep.mubr.f32.mxu0 0.0
      %354 = vmatmul.mubr.f32.gmra.mrb[0].mxu0 %v287
      %v355 = vpop.f32.mrb[0].mxu0
      %v356 = vadd.f32 0.0, %v355
      %v357 = vpop.f32.mrb[0].mxu0
      %358 = vdwg.mxu0
      %359 = vrot.lane.b32.xlu0 %v180, 120
      %v360 = vpop.permute.xlu0 %359
      %361 = vrot.lane.b32.xlu0 %v180, 88
      %v362 = vpop.permute.xlu0 %361
      %v363 = vsel %vm195, %v360, 0
      %v365 = vsel %vm195, %v362, 0
      %367 = vmatprep.subr.mxu0 0.0
      %368 = vmatpush1.xpose.msra.mxu0 %v365
      %369 = vmatprep.subr.mxu0 0.0
      %370 = vmatpush1.xpose.msra.mxu0 0.0
      %371 = vmatprep.subr.mxu0 0.0
      %372 = vmatpush1.xpose.msra.mxu0 0.0
      %373 = vmatprep.subr.mxu0 0.0
      %374 = vmatpush1.xpose.msra.mxu0 0.0
      %375 = vmatprep.subr.mxu0 0.0
      %376 = vmatpush1.xpose.msra.mxu0 0.0
      %377 = vmatprep.subr.mxu0 0.0
      %378 = vmatpush1.xpose.msra.mxu0 0.0
      %379 = vmatprep.subr.mxu0 0.0
      %380 = vmatpush1.xpose.msra.mxu0 0.0
      %381 = vmatprep.subr.mxu0 0.0
      %382 = vmatpush1.xpose.msra.mxu0 0.0
      %383 = vmatprep.subr.mxu0 0.0
      %384 = vmatpush1.xpose.msra.mxu0 0.0
      %385 = vmatprep.subr.mxu0 0.0
      %386 = vmatpush1.xpose.msra.mxu0 0.0
      %387 = vmatprep.subr.mxu0 0.0
      %388 = vmatpush1.xpose.msra.mxu0 0.0
      %389 = vmatprep.subr.mxu0 0.0
      %390 = vmatpush1.xpose.msra.mxu0 0.0
      %391 = vmatprep.subr.mxu0 0.0
      %392 = vmatpush1.xpose.msra.mxu0 0.0
      %393 = vmatprep.subr.mxu0 0.0
      %394 = vmatpush1.xpose.msra.mxu0 0.0
      %395 = vmatprep.subr.mxu0 0.0
      %396 = vmatpush1.xpose.msra.mxu0 0.0
      %397 = vmatprep.subr.mxu0 0.0
      %398 = vmatpush1.xpose.msra.mxu0 0.0
      %399 = vmatprep.subr.mxu0 0.0
      %400 = vmatpush1.xpose.msra.mxu0 0.0
      %401 = vmatprep.subr.mxu0 0.0
      %402 = vmatpush1.xpose.msra.mxu0 0.0
      %403 = vmatprep.subr.mxu0 0.0
      %404 = vmatpush1.xpose.msra.mxu0 0.0
      %405 = vmatprep.subr.mxu0 0.0
      %406 = vmatpush1.xpose.msra.mxu0 0.0
      %407 = vmatprep.subr.mxu0 0.0
      %408 = vmatpush1.xpose.msra.mxu0 0.0
      %409 = vmatprep.subr.mxu0 0.0
      %410 = vmatpush1.xpose.msra.mxu0 0.0
      %411 = vmatprep.subr.mxu0 0.0
      %412 = vmatpush1.xpose.msra.mxu0 0.0
      %413 = vmatprep.subr.mxu0 0.0
      %414 = vmatpush1.xpose.msra.mxu0 0.0
      %415 = vmatprep.subr.mxu0 0.0
      %416 = vmatpush1.xpose.msra.mxu0 0.0
      %417 = vmatprep.subr.mxu0 0.0
      %418 = vmatpush1.xpose.msra.mxu0 0.0
      %419 = vmatprep.subr.mxu0 0.0
      %420 = vmatpush1.xpose.msra.mxu0 0.0
      %421 = vmatprep.subr.mxu0 0.0
      %422 = vmatpush1.xpose.msra.mxu0 0.0
      %423 = vmatprep.subr.mxu0 0.0
      %424 = vmatpush1.xpose.msra.mxu0 0.0
      %425 = vmatprep.subr.mxu0 0.0
      %426 = vmatpush1.xpose.msra.mxu0 0.0
      %427 = vmatprep.subr.mxu0 0.0
      %428 = vmatpush1.xpose.msra.mxu0 0.0
      %429 = vmatprep.subr.mxu0 0.0
      %430 = vmatpush1.xpose.msra.mxu0 0.0
      %431 = vmatprep.mubr.f32.mxu0 0.0
      %432 = vmatmul.mubr.f32.gmra.mrb[0].mxu0 %v363
      %v433 = vpop.f32.mrb[0].mxu0
      %v434 = vadd.f32 0.0, %v433
      %v435 = vpop.f32.mrb[0].mxu0
      %436 = vdwg.mxu0
      %v437 = vmul.f32 %v434, 0.35355338
      %v438 = vadd.f32 %v437, %v191
      %v439 = vsel %vm195, %v438, -inf
      %440 = vmax.xlane.f32.xlu0 %v439
      %v441 = vpop.xlane.xlu0 %440
      %v442 = vsub.f32 %v438, %v441
      %v443 = vmul.f32 %v442, 1.442695
      %v444 = vpow.pop %v443
      %v445 = vsel %vm195, %v444, 0.0
      %446 = vadd.xlane.f32.xlu0 %v445
      %v447 = vpop.xlane.xlu0 %446
      %v448 = vrcp.pop %v447
      %v449 = vmul.f32 %v444, %v448
      %450 = vrot.lane.b32.xlu0 %v180, 56
      %v451 = vpop.permute.xlu0 %450
      %v454 = vsel %vm195, %v449, 0
      %456 = vmatprep.subr.mxu0 0.0
      %457 = vmatpush1.msra.mxu0 %v451
      %458 = vmatprep.subr.mxu0 0.0
      %459 = vmatpush1.msra.mxu0 0.0
      %460 = vmatprep.subr.mxu0 0.0
      %461 = vmatpush1.msra.mxu0 0.0
      %462 = vmatprep.subr.mxu0 0.0
      %463 = vmatpush1.msra.mxu0 0.0
      %464 = vmatprep.subr.mxu0 0.0
      %465 = vmatpush1.msra.mxu0 0.0
      %466 = vmatprep.subr.mxu0 0.0
      %467 = vmatpush1.msra.mxu0 0.0
      %468 = vmatprep.subr.mxu0 0.0
      %469 = vmatpush1.msra.mxu0 0.0
      %470 = vmatprep.subr.mxu0 0.0
      %471 = vmatpush1.msra.mxu0 0.0
      %472 = vmatprep.subr.mxu0 0.0
      %473 = vmatpush1.msra.mxu0 0.0
      %474 = vmatprep.subr.mxu0 0.0
      %475 = vmatpush1.msra.mxu0 0.0
      %476 = vmatprep.subr.mxu0 0.0
      %477 = vmatpush1.msra.mxu0 0.0
      %478 = vmatprep.subr.mxu0 0.0
      %479 = vmatpush1.msra.mxu0 0.0
      %480 = vmatprep.subr.mxu0 0.0
      %481 = vmatpush1.msra.mxu0 0.0
      %482 = vmatprep.subr.mxu0 0.0
      %483 = vmatpush1.msra.mxu0 0.0
      %484 = vmatprep.subr.mxu0 0.0
      %485 = vmatpush1.msra.mxu0 0.0
      %486 = vmatprep.subr.mxu0 0.0
      %487 = vmatpush1.msra.mxu0 0.0
      %488 = vmatprep.subr.mxu0 0.0
      %489 = vmatpush1.msra.mxu0 0.0
      %490 = vmatprep.subr.mxu0 0.0
      %491 = vmatpush1.msra.mxu0 0.0
      %492 = vmatprep.subr.mxu0 0.0
      %493 = vmatpush1.msra.mxu0 0.0
      %494 = vmatprep.subr.mxu0 0.0
      %495 = vmatpush1.msra.mxu0 0.0
      %496 = vmatprep.subr.mxu0 0.0
      %497 = vmatpush1.msra.mxu0 0.0
      %498 = vmatprep.subr.mxu0 0.0
      %499 = vmatpush1.msra.mxu0 0.0
      %500 = vmatprep.subr.mxu0 0.0
      %501 = vmatpush1.msra.mxu0 0.0
      %502 = vmatprep.subr.mxu0 0.0
      %503 = vmatpush1.msra.mxu0 0.0
      %504 = vmatprep.subr.mxu0 0.0
      %505 = vmatpush1.msra.mxu0 0.0
      %506 = vmatprep.subr.mxu0 0.0
      %507 = vmatpush1.msra.mxu0 0.0
      %508 = vmatprep.subr.mxu0 0.0
      %509 = vmatpush1.msra.mxu0 0.0
      %510 = vmatprep.subr.mxu0 0.0
      %511 = vmatpush1.msra.mxu0 0.0
      %512 = vmatprep.subr.mxu0 0.0
      %513 = vmatpush1.msra.mxu0 0.0
      %514 = vmatprep.subr.mxu0 0.0
      %515 = vmatpush1.msra.mxu0 0.0
      %516 = vmatprep.subr.mxu0 0.0
      %517 = vmatpush1.msra.mxu0 0.0
      %518 = vmatprep.subr.mxu0 0.0
      %519 = vmatpush1.msra.mxu0 0.0
      %520 = vmatprep.mubr.f32.mxu0 0.0
      %521 = vmatmul.mubr.f32.gmra.mrb[0].mxu0 %v454
      %v522 = vpop.f32.mrb[0].mxu0
      %v523 = vadd.f32 0.0, %v522
      %v524 = vpop.f32.mrb[0].mxu0
      %525 = vdwg.mxu0
      %526 = vrot.lane.b32.xlu0 %v180, 112
      %v527 = vpop.permute.xlu0 %526
      %528 = vrot.lane.b32.xlu0 %v180, 80
      %v529 = vpop.permute.xlu0 %528
      %v530 = vsel %vm195, %v527, 0
      %v532 = vsel %vm195, %v529, 0
      %534 = vmatprep.subr.mxu0 0.0
      %535 = vmatpush1.xpose.msra.mxu0 %v532
      %536 = vmatprep.subr.mxu0 0.0
      %537 = vmatpush1.xpose.msra.mxu0 0.0
      %538 = vmatprep.subr.mxu0 0.0
      %539 = vmatpush1.xpose.msra.mxu0 0.0
      %540 = vmatprep.subr.mxu0 0.0
      %541 = vmatpush1.xpose.msra.mxu0 0.0
      %542 = vmatprep.subr.mxu0 0.0
      %543 = vmatpush1.xpose.msra.mxu0 0.0
      %544 = vmatprep.subr.mxu0 0.0
      %545 = vmatpush1.xpose.msra.mxu0 0.0
      %546 = vmatprep.subr.mxu0 0.0
      %547 = vmatpush1.xpose.msra.mxu0 0.0
      %548 = vmatprep.subr.mxu0 0.0
      %549 = vmatpush1.xpose.msra.mxu0 0.0
      %550 = vmatprep.subr.mxu0 0.0
      %551 = vmatpush1.xpose.msra.mxu0 0.0
      %552 = vmatprep.subr.mxu0 0.0
      %553 = vmatpush1.xpose.msra.mxu0 0.0
      %554 = vmatprep.subr.mxu0 0.0
      %555 = vmatpush1.xpose.msra.mxu0 0.0
      %556 = vmatprep.subr.mxu0 0.0
      %557 = vmatpush1.xpose.msra.mxu0 0.0
      %558 = vmatprep.subr.mxu0 0.0
      %559 = vmatpush1.xpose.msra.mxu0 0.0
      %560 = vmatprep.subr.mxu0 0.0
      %561 = vmatpush1.xpose.msra.mxu0 0.0
      %562 = vmatprep.subr.mxu0 0.0
      %563 = vmatpush1.xpose.msra.mxu0 0.0
      %564 = vmatprep.subr.mxu0 0.0
      %565 = vmatpush1.xpose.msra.mxu0 0.0
      %566 = vmatprep.subr.mxu0 0.0
      %567 = vmatpush1.xpose.msra.mxu0 0.0
      %568 = vmatprep.subr.mxu0 0.0
      %569 = vmatpush1.xpose.msra.mxu0 0.0
      %570 = vmatprep.subr.mxu0 0.0
      %571 = vmatpush1.xpose.msra.mxu0 0.0
      %572 = vmatprep.subr.mxu0 0.0
      %573 = vmatpush1.xpose.msra.mxu0 0.0
      %574 = vmatprep.subr.mxu0 0.0
      %575 = vmatpush1.xpose.msra.mxu0 0.0
      %576 = vmatprep.subr.mxu0 0.0
      %577 = vmatpush1.xpose.msra.mxu0 0.0
      %578 = vmatprep.subr.mxu0 0.0
      %579 = vmatpush1.xpose.msra.mxu0 0.0
      %580 = vmatprep.subr.mxu0 0.0
      %581 = vmatpush1.xpose.msra.mxu0 0.0
      %582 = vmatprep.subr.mxu0 0.0
      %583 = vmatpush1.xpose.msra.mxu0 0.0
      %584 = vmatprep.subr.mxu0 0.0
      %585 = vmatpush1.xpose.msra.mxu0 0.0
      %586 = vmatprep.subr.mxu0 0.0
      %587 = vmatpush1.xpose.msra.mxu0 0.0
      %588 = vmatprep.subr.mxu0 0.0
      %589 = vmatpush1.xpose.msra.mxu0 0.0
      %590 = vmatprep.subr.mxu0 0.0
      %591 = vmatpush1.xpose.msra.mxu0 0.0
      %592 = vmatprep.subr.mxu0 0.0
      %593 = vmatpush1.xpose.msra.mxu0 0.0
      %594 = vmatprep.subr.mxu0 0.0
      %595 = vmatpush1.xpose.msra.mxu0 0.0
      %596 = vmatprep.subr.mxu0 0.0
      %597 = vmatpush1.xpose.msra.mxu0 0.0
      %598 = vmatprep.mubr.f32.mxu0 0.0
      %599 = vmatmul.mubr.f32.gmra.mrb[0].mxu0 %v530
      %v600 = vpop.f32.mrb[0].mxu0
      %v601 = vadd.f32 0.0, %v600
      %v602 = vpop.f32.mrb[0].mxu0
      %603 = vdwg.mxu0
      %v604 = vmul.f32 %v601, 0.35355338
      %v605 = vadd.f32 %v604, %v191
      %v606 = vsel %vm195, %v605, -inf
      %607 = vmax.xlane.f32.xlu0 %v606
      %v608 = vpop.xlane.xlu0 %607
      %v609 = vsub.f32 %v605, %v608
      %v610 = vmul.f32 %v609, 1.442695
      %v611 = vpow.pop %v610
      %v612 = vsel %vm195, %v611, 0.0
      %613 = vadd.xlane.f32.xlu0 %v612
      %v614 = vpop.xlane.xlu0 %613
      %v615 = vrcp.pop %v614
      %v616 = vmul.f32 %v611, %v615
      %617 = vrot.lane.b32.xlu0 %v180, 48
      %v618 = vpop.permute.xlu0 %617
      %v621 = vsel %vm195, %v616, 0
      %623 = vmatprep.subr.mxu0 0.0
      %624 = vmatpush1.msra.mxu0 %v618
      %625 = vmatprep.subr.mxu0 0.0
      %626 = vmatpush1.msra.mxu0 0.0
      %627 = vmatprep.subr.mxu0 0.0
      %628 = vmatpush1.msra.mxu0 0.0
      %629 = vmatprep.subr.mxu0 0.0
      %630 = vmatpush1.msra.mxu0 0.0
      %631 = vmatprep.subr.mxu0 0.0
      %632 = vmatpush1.msra.mxu0 0.0
      %633 = vmatprep.subr.mxu0 0.0
      %634 = vmatpush1.msra.mxu0 0.0
      %635 = vmatprep.subr.mxu0 0.0
      %636 = vmatpush1.msra.mxu0 0.0
      %637 = vmatprep.subr.mxu0 0.0
      %638 = vmatpush1.msra.mxu0 0.0
      %639 = vmatprep.subr.mxu0 0.0
      %640 = vmatpush1.msra.mxu0 0.0
      %641 = vmatprep.subr.mxu0 0.0
      %642 = vmatpush1.msra.mxu0 0.0
      %643 = vmatprep.subr.mxu0 0.0
      %644 = vmatpush1.msra.mxu0 0.0
      %645 = vmatprep.subr.mxu0 0.0
      %646 = vmatpush1.msra.mxu0 0.0
      %647 = vmatprep.subr.mxu0 0.0
      %648 = vmatpush1.msra.mxu0 0.0
      %649 = vmatprep.subr.mxu0 0.0
      %650 = vmatpush1.msra.mxu0 0.0
      %651 = vmatprep.subr.mxu0 0.0
      %652 = vmatpush1.msra.mxu0 0.0
      %653 = vmatprep.subr.mxu0 0.0
      %654 = vmatpush1.msra.mxu0 0.0
      %655 = vmatprep.subr.mxu0 0.0
      %656 = vmatpush1.msra.mxu0 0.0
      %657 = vmatprep.subr.mxu0 0.0
      %658 = vmatpush1.msra.mxu0 0.0
      %659 = vmatprep.subr.mxu0 0.0
      %660 = vmatpush1.msra.mxu0 0.0
      %661 = vmatprep.subr.mxu0 0.0
      %662 = vmatpush1.msra.mxu0 0.0
      %663 = vmatprep.subr.mxu0 0.0
      %664 = vmatpush1.msra.mxu0 0.0
      %665 = vmatprep.subr.mxu0 0.0
      %666 = vmatpush1.msra.mxu0 0.0
      %667 = vmatprep.subr.mxu0 0.0
      %668 = vmatpush1.msra.mxu0 0.0
      %669 = vmatprep.subr.mxu0 0.0
      %670 = vmatpush1.msra.mxu0 0.0
      %671 = vmatprep.subr.mxu0 0.0
      %672 = vmatpush1.msra.mxu0 0.0
      %673 = vmatprep.subr.mxu0 0.0
      %674 = vmatpush1.msra.mxu0 0.0
      %675 = vmatprep.subr.mxu0 0.0
      %676 = vmatpush1.msra.mxu0 0.0
      %677 = vmatprep.subr.mxu0 0.0
      %678 = vmatpush1.msra.mxu0 0.0
      %679 = vmatprep.subr.mxu0 0.0
      %680 = vmatpush1.msra.mxu0 0.0
      %681 = vmatprep.subr.mxu0 0.0
      %682 = vmatpush1.msra.mxu0 0.0
      %683 = vmatprep.subr.mxu0 0.0
      %684 = vmatpush1.msra.mxu0 0.0
      %685 = vmatprep.subr.mxu0 0.0
      %686 = vmatpush1.msra.mxu0 0.0
      %687 = vmatprep.mubr.f32.mxu0 0.0
      %688 = vmatmul.mubr.f32.gmra.mrb[0].mxu0 %v621
      %v689 = vpop.f32.mrb[0].mxu0
      %v690 = vadd.f32 0.0, %v689
      %v691 = vpop.f32.mrb[0].mxu0
      %692 = vdwg.mxu0
      %693 = vrot.lane.b32.xlu0 %v180, 104
      %v694 = vpop.permute.xlu0 %693
      %695 = vrot.lane.b32.xlu0 %v180, 72
      %v696 = vpop.permute.xlu0 %695
      %v697 = vsel %vm195, %v694, 0
      %v699 = vsel %vm195, %v696, 0
      %701 = vmatprep.subr.mxu0 0.0
      %702 = vmatpush1.xpose.msra.mxu0 %v699
      %703 = vmatprep.subr.mxu0 0.0
      %704 = vmatpush1.xpose.msra.mxu0 0.0
      %705 = vmatprep.subr.mxu0 0.0
      %706 = vmatpush1.xpose.msra.mxu0 0.0
      %707 = vmatprep.subr.mxu0 0.0
      %708 = vmatpush1.xpose.msra.mxu0 0.0
      %709 = vmatprep.subr.mxu0 0.0
      %710 = vmatpush1.xpose.msra.mxu0 0.0
      %711 = vmatprep.subr.mxu0 0.0
      %712 = vmatpush1.xpose.msra.mxu0 0.0
      %713 = vmatprep.subr.mxu0 0.0
      %714 = vmatpush1.xpose.msra.mxu0 0.0
      %715 = vmatprep.subr.mxu0 0.0
      %716 = vmatpush1.xpose.msra.mxu0 0.0
      %717 = vmatprep.subr.mxu0 0.0
      %718 = vmatpush1.xpose.msra.mxu0 0.0
      %719 = vmatprep.subr.mxu0 0.0
      %720 = vmatpush1.xpose.msra.mxu0 0.0
      %721 = vmatprep.subr.mxu0 0.0
      %722 = vmatpush1.xpose.msra.mxu0 0.0
      %723 = vmatprep.subr.mxu0 0.0
      %724 = vmatpush1.xpose.msra.mxu0 0.0
      %725 = vmatprep.subr.mxu0 0.0
      %726 = vmatpush1.xpose.msra.mxu0 0.0
      %727 = vmatprep.subr.mxu0 0.0
      %728 = vmatpush1.xpose.msra.mxu0 0.0
      %729 = vmatprep.subr.mxu0 0.0
      %730 = vmatpush1.xpose.msra.mxu0 0.0
      %731 = vmatprep.subr.mxu0 0.0
      %732 = vmatpush1.xpose.msra.mxu0 0.0
      %733 = vmatprep.subr.mxu0 0.0
      %734 = vmatpush1.xpose.msra.mxu0 0.0
      %735 = vmatprep.subr.mxu0 0.0
      %736 = vmatpush1.xpose.msra.mxu0 0.0
      %737 = vmatprep.subr.mxu0 0.0
      %738 = vmatpush1.xpose.msra.mxu0 0.0
      %739 = vmatprep.subr.mxu0 0.0
      %740 = vmatpush1.xpose.msra.mxu0 0.0
      %741 = vmatprep.subr.mxu0 0.0
      %742 = vmatpush1.xpose.msra.mxu0 0.0
      %743 = vmatprep.subr.mxu0 0.0
      %744 = vmatpush1.xpose.msra.mxu0 0.0
      %745 = vmatprep.subr.mxu0 0.0
      %746 = vmatpush1.xpose.msra.mxu0 0.0
      %747 = vmatprep.subr.mxu0 0.0
      %748 = vmatpush1.xpose.msra.mxu0 0.0
      %749 = vmatprep.subr.mxu0 0.0
      %750 = vmatpush1.xpose.msra.mxu0 0.0
      %751 = vmatprep.subr.mxu0 0.0
      %752 = vmatpush1.xpose.msra.mxu0 0.0
      %753 = vmatprep.subr.mxu0 0.0
      %754 = vmatpush1.xpose.msra.mxu0 0.0
      %755 = vmatprep.subr.mxu0 0.0
      %756 = vmatpush1.xpose.msra.mxu0 0.0
      %757 = vmatprep.subr.mxu0 0.0
      %758 = vmatpush1.xpose.msra.mxu0 0.0
      %759 = vmatprep.subr.mxu0 0.0
      %760 = vmatpush1.xpose.msra.mxu0 0.0
      %761 = vmatprep.subr.mxu0 0.0
      %762 = vmatpush1.xpose.msra.mxu0 0.0
      %763 = vmatprep.subr.mxu0 0.0
      %764 = vmatpush1.xpose.msra.mxu0 0.0
      %765 = vmatprep.mubr.f32.mxu0 0.0
      %766 = vmatmul.mubr.f32.gmra.mrb[0].mxu0 %v697
      %v767 = vpop.f32.mrb[0].mxu0
      %v768 = vadd.f32 0.0, %v767
      %v769 = vpop.f32.mrb[0].mxu0
      %770 = vdwg.mxu0
      %v771 = vmul.f32 %v768, 0.35355338
      %v772 = vadd.f32 %v771, %v191
      %v773 = vsel %vm195, %v772, -inf
      %774 = vmax.xlane.f32.xlu0 %v773
      %v775 = vpop.xlane.xlu0 %774
      %v776 = vsub.f32 %v772, %v775
      %v777 = vmul.f32 %v776, 1.442695
      %v778 = vpow.pop %v777
      %v779 = vsel %vm195, %v778, 0.0
      %780 = vadd.xlane.f32.xlu0 %v779
      %v781 = vpop.xlane.xlu0 %780
      %v782 = vrcp.pop %v781
      %v783 = vmul.f32 %v778, %v782
      %784 = vrot.lane.b32.xlu0 %v180, 40
      %v785 = vpop.permute.xlu0 %784
      %v788 = vsel %vm195, %v783, 0
      %790 = vmatprep.subr.mxu0 0.0
      %791 = vmatpush1.msra.mxu0 %v785
      %792 = vmatprep.subr.mxu0 0.0
      %793 = vmatpush1.msra.mxu0 0.0
      %794 = vmatprep.subr.mxu0 0.0
      %795 = vmatpush1.msra.mxu0 0.0
      %796 = vmatprep.subr.mxu0 0.0
      %797 = vmatpush1.msra.mxu0 0.0
      %798 = vmatprep.subr.mxu0 0.0
      %799 = vmatpush1.msra.mxu0 0.0
      %800 = vmatprep.subr.mxu0 0.0
      %801 = vmatpush1.msra.mxu0 0.0
      %802 = vmatprep.subr.mxu0 0.0
      %803 = vmatpush1.msra.mxu0 0.0
      %804 = vmatprep.subr.mxu0 0.0
      %805 = vmatpush1.msra.mxu0 0.0
      %806 = vmatprep.subr.mxu0 0.0
      %807 = vmatpush1.msra.mxu0 0.0
      %808 = vmatprep.subr.mxu0 0.0
      %809 = vmatpush1.msra.mxu0 0.0
      %810 = vmatprep.subr.mxu0 0.0
      %811 = vmatpush1.msra.mxu0 0.0
      %812 = vmatprep.subr.mxu0 0.0
      %813 = vmatpush1.msra.mxu0 0.0
      %814 = vmatprep.subr.mxu0 0.0
      %815 = vmatpush1.msra.mxu0 0.0
      %816 = vmatprep.subr.mxu0 0.0
      %817 = vmatpush1.msra.mxu0 0.0
      %818 = vmatprep.subr.mxu0 0.0
      %819 = vmatpush1.msra.mxu0 0.0
      %820 = vmatprep.subr.mxu0 0.0
      %821 = vmatpush1.msra.mxu0 0.0
      %822 = vmatprep.subr.mxu0 0.0
      %823 = vmatpush1.msra.mxu0 0.0
      %824 = vmatprep.subr.mxu0 0.0
      %825 = vmatpush1.msra.mxu0 0.0
      %826 = vmatprep.subr.mxu0 0.0
      %827 = vmatpush1.msra.mxu0 0.0
      %828 = vmatprep.subr.mxu0 0.0
      %829 = vmatpush1.msra.mxu0 0.0
      %830 = vmatprep.subr.mxu0 0.0
      %831 = vmatpush1.msra.mxu0 0.0
      %832 = vmatprep.subr.mxu0 0.0
      %833 = vmatpush1.msra.mxu0 0.0
      %834 = vmatprep.subr.mxu0 0.0
      %835 = vmatpush1.msra.mxu0 0.0
      %836 = vmatprep.subr.mxu0 0.0
      %837 = vmatpush1.msra.mxu0 0.0
      %838 = vmatprep.subr.mxu0 0.0
      %839 = vmatpush1.msra.mxu0 0.0
      %840 = vmatprep.subr.mxu0 0.0
      %841 = vmatpush1.msra.mxu0 0.0
      %842 = vmatprep.subr.mxu0 0.0
      %843 = vmatpush1.msra.mxu0 0.0
      %844 = vmatprep.subr.mxu0 0.0
      %845 = vmatpush1.msra.mxu0 0.0
      %846 = vmatprep.subr.mxu0 0.0
      %847 = vmatpush1.msra.mxu0 0.0
      %848 = vmatprep.subr.mxu0 0.0
      %849 = vmatpush1.msra.mxu0 0.0
      %850 = vmatprep.subr.mxu0 0.0
      %851 = vmatpush1.msra.mxu0 0.0
      %852 = vmatprep.subr.mxu0 0.0
      %853 = vmatpush1.msra.mxu0 0.0
      %854 = vmatprep.mubr.f32.mxu0 0.0
      %855 = vmatmul.mubr.f32.gmra.mrb[0].mxu0 %v788
      %v856 = vpop.f32.mrb[0].mxu0
      %v857 = vadd.f32 0.0, %v856
      %v858 = vpop.f32.mrb[0].mxu0
      %859 = vdwg.mxu0
      %861 = vrot.lane.b32.xlu0 %v523, 8
      %v862 = vpop.permute.xlu0 %861
      %865 = vrot.lane.b32.xlu0 %v690, 16
      %v866 = vpop.permute.xlu0 %865
      %869 = vrot.lane.b32.xlu0 %v857, 24
      %v870 = vpop.permute.xlu0 %869
      %v872 = vsel %vm195, %v356, %v862
      %vm873 = vcmask 130048
      %v874 = vsel %vm873, %v872, %v866
      %vm875 = vcmask 195584
      %v876 = vsel %vm875, %v874, %v870
      %vm877 = vcmask 261120
      %878 = vst.msk [vmem:[%s179] sm:$0xff] %vm877, %v876
      %p879 = scmp.lt.s32.totalorder %s14, 1
      %s880 = scalar_select %p879, %s14, 1
      %s881 = smul.addr %s880, 8
      %s882 = scalar_lea.vmem %s3, %s881
      // Predicated region
      $region33: #{decoder_forward.23} parent=31 // pred_check
        %p883 = pneg %p105
      $region34: #{decoder_forward.23} parent=31 // pred_check_branch
        %885 = sbr.rel (%p883) target = $region36
      $region35: #{decoder_forward.23} parent=31 // pred_region
        _
      $region36: #{decoder_forward.23} parent=31 // pred_fallthru
        _
    $region32: #{decoder_forward.23} parent=5 // pred_fallthru
      _
    %p886 = scmp.le.s32.totalorder 2, %s9
    // Predicated region
    $region37: #{decoder_forward.23} parent=5 // pred_check
      %p887 = pneg %p886
    $region38: #{decoder_forward.23} parent=5 // pred_check_branch
      %889 = sbr.rel (%p887) target = $region40
    $region39: #{decoder_forward.23} parent=5 // pred_region
      %s890 = ssub.s32 %s9, 2
      // Predicated region
      $region41: #{decoder_forward.23} parent=39 // pred_check
        %p891 = pneg %p111
      $region42: #{decoder_forward.23} parent=39 // pred_check_branch
        %893 = sbr.rel (%p891) target = $region44
      $region43: #{decoder_forward.23} parent=39 // pred_region
        %p894 = scmp.lt.s32.totalorder %s15, 1
        %s895 = scalar_select %p894, %s15, 1
        %s896 = smul.addr %s895, 8
        %s897 = scalar_lea.vmem %s3, %s896
      $region44: #{decoder_forward.23} parent=39 // pred_fallthru
        _
    $region40: #{decoder_forward.23} parent=5 // pred_fallthru
      _
  $region6: #{decoder_forward.23} parent=0 // loop_footer
    %s13 = sadd.s32 1, %s9
  $region7: #{decoder_forward.23} parent=0 // loop_footer_branch
    %8 = sbr.rel target = $region3
  $region8: #{decoder_forward.23} parent=0 // loop_exit
    _

// kernel: decoder_forward.27
$region0: #{decoder_forward.27}
  #allocation0 [shape = 'u32[]', space=smem, size = 0x4, offset = 0x4, fixed_abs, tag = 'smem constant byte address 0x4 - core index']
  #allocation1 [shape = 'u32[144,128]{1,0:T(1,128)}', space=vmem, size = 0x12000, scoped, tag = 'internal scratch']
  #allocation2 [shape = 'f32[8,64]{1,0:T(8,128)}', space=vmem, size = 0x1000, scoped, tag = 'scratch operand']
  %s0 = inlined_call_operand.vmem [shape: f32[16,32], index: 0, kind: input, shape index: {}]
  %s1 = inlined_call_operand.vmem [shape: f32[32,64], index: 1, kind: input, shape index: {}]
  %s2 = inlined_call_operand.vmem [shape: f32[1,64], index: 2, kind: input, shape index: {}]
  %s3 = inlined_call_operand.vmem [shape: f32[16,64], index: 3, kind: output, shape index: {}]
  %s4 = sld [smem:[#allocation0]]
  $region53: #{decoder_forward.27} parent=0
    _
  %s6 = ssub.s32 1, %s4
  %s7 = scalar_select 0, %s6, %s4
  loop: start=0, step=1, limit=4
  $region2: #{decoder_forward.27} parent=0 // loop_pre_header
    _
  $region3: #{decoder_forward.27} parent=0 // loop_header
    %s9 = sphi 0, %s13
    %p10 = scmp.ge.s32.totalorder %s9, 4
    %s16 = sphi 0, %s35
    %s17 = sphi 0, %s31
    %s18 = sphi 0, %s27
    %s19 = sphi 0, %s16
    %s20 = sphi 0, %s17
    %s21 = sphi 0, %s18
    %s22 = sphi 0, %s19
    %s23 = sphi 0, %s20
    %s24 = sphi 0, %s21
    %s40 = sphi 0, %s42
    %s43 = sphi 0, %s40
    %s44 = sphi 0, %s43
    %s60 = sphi 0, %s44
    %s68 = sphi 0, %s70
    %s71 = sphi 0, %s68
    %s72 = sphi 0, %s71
    %s88 = sphi 0, %s72
    %s94 = sphi 0, %s96
    %s97 = sphi 0, %s94
    %s98 = sphi 0, %s97
    %s114 = sphi 0, %s98
    %s122 = sphi 0, %s124
    %s125 = sphi 0, %s122
    %s126 = sphi 0, %s125
    %s142 = sphi 0, %s126
  $region4: #{decoder_forward.27} parent=0 // loop_header_branch
    %12 = sbr.rel (%p10) target = $region8
  $region5: #{decoder_forward.27} parent=0 // loop_body
    %s14 = ssub.s32 %s9, 1
    %s15 = ssub.s32 %s9, 2
    %s25 = sadd.s32 1, %s18
    %p26 = scmp.ge.s32.totalorder %s25, 1
    %s27 = scalar_select %p26, 0, %s25
    %s28 = sadd.s32 1, %s17
    %s29 = scalar_select %p26, %s28, %s17
    %p30 = scmp.ge.s32.totalorder %s29, 1
    %s31 = scalar_select %p30, 0, %s29
    %s32 = sadd.s32 1, %s16
    %s33 = scalar_select %p30, %s32, %s16
    %p34 = scmp.ge.s32.totalorder %s33, 2
    %s35 = scalar_select %p34, 0, %s33
    %s36 = ssub.s32 %s16, %s35
    %s37 = ssub.s32 %s18, %s27
    %s38 = sor.u32 %s36, %s37
    %p39 = scmp.eq.s32.totalorder %s38, 0
    %s41 = sadd.s32 %s40, 1
    %s42 = scalar_select %p39, %s40, %s41
    %p45 = pneg %p39
    %p46 = scmp.eq.s32.totalorder %s9, 1
    %p47 = por %p45, %p46
    %p48 = scmp.ne.s32.totalorder %s40, %s43
    %p49 = scmp.eq.s32.totalorder %s9, 0
    %p50 = por %p48, %p49
    %p51 = scmp.ne.s32.totalorder %s40, %s43
    %p52 = scmp.eq.s32.totalorder %s14, 1
    %p53 = por %p51, %p52
    %p54 = scmp.ne.s32.totalorder %s43, %s44
    %p55 = scmp.eq.s32.totalorder %s14, 0
    %p56 = por %p54, %p55
    %p57 = scmp.ne.s32.totalorder %s43, %s44
    %p58 = scmp.eq.s32.totalorder %s15, 1
    %p59 = por %p57, %p58
    %p61 = scmp.ne.s32.totalorder %s44, %s60
    %p62 = scmp.eq.s32.totalorder %s15, 0
    %p63 = por %p61, %p62
    %s64 = ssub.s32 %s18, %s27
    %s65 = ssub.s32 %s17, %s31
    %s66 = sor.u32 %s64, %s65
    %p67 = scmp.eq.s32.totalorder %s66, 0
    %s69 = sadd.s32 %s68, 1
    %s70 = scalar_select %p67, %s68, %s69
    %p73 = pneg %p67
    %p74 = scmp.eq.s32.totalorder %s9, 1
    %p75 = por %p73, %p74
    %p76 = scmp.ne.s32.totalorder %s68, %s71
    %p77 = scmp.eq.s32.totalorder %s9, 0
    %p78 = por %p76, %p77
    %p79 = scmp.ne.s32.totalorder %s68, %s71
    %p80 = scmp.eq.s32.totalorder %s14, 1
    %p81 = por %p79, %p80
    %p82 = scmp.ne.s32.totalorder %s71, %s72
    %p83 = scmp.eq.s32.totalorder %s14, 0
    %p84 = por %p82, %p83
    %p85 = scmp.ne.s32.totalorder %s71, %s72
    %p86 = scmp.eq.s32.totalorder %s15, 1
    %p87 = por %p85, %p86
    %p89 = scmp.ne.s32.totalorder %s72, %s88
    %p90 = scmp.eq.s32.totalorder %s15, 0
    %p91 = por %p89, %p90
    %s92 = ssub.s32 %s17, %s31
    %p93 = scmp.eq.s32.totalorder %s92, 0
    %s95 = sadd.s32 %s94, 1
    %s96 = scalar_select %p93, %s94, %s95
    %p99 = pneg %p93
    %p100 = scmp.eq.s32.totalorder %s9, 1
    %p101 = por %p99, %p100
    %p102 = scmp.ne.s32.totalorder %s94, %s97
    %p103 = scmp.eq.s32.totalorder %s9, 0
    %p104 = por %p102, %p103
    %p105 = scmp.ne.s32.totalorder %s94, %s97
    %p106 = scmp.eq.s32.totalorder %s14, 1
    %p107 = por %p105, %p106
    %p108 = scmp.ne.s32.totalorder %s97, %s98
    %p109 = scmp.eq.s32.totalorder %s14, 0
    %p110 = por %p108, %p109
    %p111 = scmp.ne.s32.totalorder %s97, %s98
    %p112 = scmp.eq.s32.totalorder %s15, 1
    %p113 = por %p111, %p112
    %p115 = scmp.ne.s32.totalorder %s98, %s114
    %p116 = scmp.eq.s32.totalorder %s15, 0
    %p117 = por %p115, %p116
    %s118 = ssub.s32 %s16, %s35
    %s119 = ssub.s32 %s17, %s31
    %s120 = sor.u32 %s118, %s119
    %p121 = scmp.eq.s32.totalorder %s120, 0
    %s123 = sadd.s32 %s122, 1
    %s124 = scalar_select %p121, %s122, %s123
    %p127 = pneg %p121
    %p128 = scmp.eq.s32.totalorder %s9, 1
    %p129 = por %p127, %p128
    %p130 = scmp.ne.s32.totalorder %s122, %s125
    %p131 = scmp.eq.s32.totalorder %s9, 0
    %p132 = por %p130, %p131
    %p133 = scmp.ne.s32.totalorder %s122, %s125
    %p134 = scmp.eq.s32.totalorder %s14, 1
    %p135 = por %p133, %p134
    %p136 = scmp.ne.s32.totalorder %s125, %s126
    %p137 = scmp.eq.s32.totalorder %s14, 0
    %p138 = por %p136, %p137
    %p139 = scmp.ne.s32.totalorder %s125, %s126
    %p140 = scmp.eq.s32.totalorder %s15, 1
    %p141 = por %p139, %p140
    %p143 = scmp.ne.s32.totalorder %s126, %s142
    %p144 = scmp.eq.s32.totalorder %s15, 0
    %p145 = por %p143, %p144
    %p146 = scmp.le.s32.totalorder 1, %s9
    %p147 = scmp.lt.s32.totalorder %s9, 3
    %p148 = pnand %p146, %p147
    %p149 = pneg %p148
    // Predicated region
    $region9: #{decoder_forward.27} parent=5 // pred_check
      _
    $region10: #{decoder_forward.27} parent=5 // pred_check_branch
      %151 = sbr.rel (%p148) target = $region12
    $region11: #{decoder_forward.27} parent=5 // pred_region
      %s152 = ssub.s32 %s9, 1
      // Predicated region
      $region13: #{decoder_forward.27} parent=11 // pred_check
        %p153 = pneg %p84
      $region14: #{decoder_forward.27} parent=11 // pred_check_branch
        %155 = sbr.rel (%p153) target = $region16
      $region15: #{decoder_forward.27} parent=11 // pred_region
        %s156 = smul.u32 4, %s21
        %p157 = scmp.lt.s32.totalorder %s156, 3
        %s158 = scalar_select %p157, %s156, 3
        %p159 = scmp.lt.s32.totalorder %s20, 0
        %s160 = scalar_select %p159, %s20, 0
        %s161 = sadd.s32 %s160, %s158
        %s162 = smul.addr %s161, 8
        %s163 = scalar_lea.vmem %s1, %s162
        %s164 = smul.u32 4, %s21
      $region16: #{decoder_forward.27} parent=11 // pred_fallthru
        _
      // Predicated region
      $region17: #{decoder_forward.27} parent=11 // pred_check
        %p165 = pneg %p110
      $region18: #{decoder_forward.27} parent=11 // pred_check_branch
        %167 = sbr.rel (%p165) target = $region20
      $region19: #{decoder_forward.27} parent=11 // pred_region
        %p168 = scmp.lt.s32.totalorder %s20, 0
        %s169 = scalar_select %p168, %s20, 0
        %s170 = scalar_lea.vmem %s2, %s169
      $region20: #{decoder_forward.27} parent=11 // pred_fallthru
        _
    $region12: #{decoder_forward.27} parent=5 // pred_fallthru
      _
    %p171 = scmp.lt.s32.totalorder %s9, 2
    // Predicated region
    $region21: #{decoder_forward.27} parent=5 // pred_check
      %p172 = pneg %p171
    $region22: #{decoder_forward.27} parent=5 // pred_check_branch
      %174 = sbr.rel (%p172) target = $region24
    $region23: #{decoder_forward.27} parent=5 // pred_region
      // Predicated region
      $region25: #{decoder_forward.27} parent=23 // pred_check
        %p175 = pneg %p50
      $region26: #{decoder_forward.27} parent=23 // pred_check_branch
        %177 = sbr.rel (%p175) target = $region28
      $region27: #{decoder_forward.27} parent=23 // pred_region
        %p178 = scmp.lt.s32.totalorder %s16, 1
        %s179 = scalar_select %p178, %s16, 1
        %p180 = scmp.lt.s32.totalorder %s18, 0
        %s181 = scalar_select %p180, %s18, 0
        %s182 = sadd.s32 %s181, %s179
        %s183 = smul.addr %s182, 8
        %s184 = scalar_lea.vmem %s0, %s183
      $region28: #{decoder_forward.27} parent=23 // pred_fallthru
        _
    $region24: #{decoder_forward.27} parent=5 // pred_fallthru
      _
    %p185 = scmp.le.s32.totalorder 1, %s9
    %p186 = scmp.lt.s32.totalorder %s9, 3
    %p187 = pnand %p185, %p186
    %p188 = pneg %p187
    // Predicated region
    $region29: #{decoder_forward.27} parent=5 // pred_check
      _
    $region30: #{decoder_forward.27} parent=5 // pred_check_branch
      %190 = sbr.rel (%p187) target = $region32
    $region31: #{decoder_forward.27} parent=5 // pred_region
      %s191 = ssub.s32 %s9, 1
      %p192 = scmp.lt.s32.totalorder %s19, 1
      %s193 = scalar_select %p192, %s19, 1
      %p194 = scmp.lt.s32.totalorder %s21, 0
      %s195 = scalar_select %p194, %s21, 0
      %s196 = sadd.s32 %s195, %s193
      %s197 = smul.addr %s196, 8
      %s198 = scalar_lea.vmem %s0, %s197
      %p199 = pneg %p56
      %p200 = pneg %p53
      %s201 = smul.u32 4, %s21
      %p202 = scmp.lt.s32.totalorder %s201, 3
      %s203 = scalar_select %p202, %s201, 3
      %p204 = scmp.lt.s32.totalorder %s20, 0
      %s205 = scalar_select %p204, %s20, 0
      %s206 = sadd.s32 %s205, %s203
      %s207 = smul.addr %s206, 8
      %s208 = scalar_lea.vmem %s1, %s207
      %p209 = pneg %p84
      %p210 = pneg %p81
      %p211 = scmp.lt.s32.totalorder %s20, 0
      %s212 = scalar_select %p211, %s20, 0
      %s213 = scalar_lea.vmem %s2, %s212
      %p214 = pneg %p110
      %p215 = pneg %p107
      %p216 = pneg %p138
      %p217 = pneg %p135
      %p218 = scmp.lt.s32.totalorder %s19, 1
      %s219 = scalar_select %p218, %s19, 1
      %p220 = scmp.lt.s32.totalorder %s20, 0
      %s221 = scalar_select %p220, %s20, 0
      %s222 = sadd.s32 %s221, %s219
      %s223 = smul.addr %s222, 8
      %s224 = scalar_lea.vmem %s3, %s223
      %p225 = scmp.lt.s32.totalorder %s19, 1
      %s226 = scalar_select %p225, %s19, 1
      %p227 = scmp.lt.s32.totalorder %s21, 0
      %s228 = scalar_select %p227, %s21, 0
      %s229 = sadd.s32 %s228, %s226
      %s230 = smul.addr %s229, 8
      %s231 = scalar_lea.vmem %s0, %s230
      %s232 = smul.u32 4, %s21
      %p233 = scmp.lt.s32.totalorder %s232, 3
      %s234 = scalar_select %p233, %s232, 3
      %p235 = scmp.lt.s32.totalorder %s20, 0
      %s236 = scalar_select %p235, %s20, 0
      %s237 = sadd.s32 %s236, %s234
      %s238 = smul.addr %s237, 8
      %s239 = scalar_lea.vmem %s1, %s238
      %s240 = smul.u32 4, %s21
      %p241 = scmp.lt.s32.totalorder %s20, 0
      %s242 = scalar_select %p241, %s20, 0
      %s243 = scalar_lea.vmem %s2, %s242
      %p244 = scmp.lt.s32.totalorder %s19, 1
      %s245 = scalar_select %p244, %s19, 1
      %p246 = scmp.lt.s32.totalorder %s20, 0
      %s247 = scalar_select %p246, %s20, 0
      %s248 = sadd.s32 %s247, %s245
      %s249 = smul.addr %s248, 8
      %s250 = scalar_lea.vmem %s3, %s249
      %p251 = scmp.eq.s32.totalorder %s21, 0
      // Predicated region
      $region33: #{decoder_forward.27} parent=31 // pred_check
        %p252 = pneg %p251
      $region34: #{decoder_forward.27} parent=31 // pred_check_branch
        %254 = sbr.rel (%p252) target = $region36
      $region35: #{decoder_forward.27} parent=31 // pred_region
        %vm255 = vcmask 523264
        %256 = vst.msk [vmem:[#allocation2] sm:$0xff] %vm255, 0.0
      $region36: #{decoder_forward.27} parent=31 // pred_fallthru
        _
      %v257 = vld [vmem:[#allocation2] sm:$0xff]
      %v258 = vld [vmem:[%s231] sm:$0xff]
      %v259 = vld [vmem:[%s239] sm:$0xff]
      %v260 = vld [vmem:[%s239 + $0x8] sm:$0xff]
      %v261 = vld [vmem:[%s239 + $0x10] sm:$0xff]
      %v262 = vld [vmem:[%s239 + $0x18] sm:$0xff]
      %vm263 = vcmask 261120
      %v265 = vsel %vm263, %v258, 0
      %267 = vmatprep.subr.mxu0 0.0
      %268 = vmatpush1.msra.mxu0 %v259
      %269 = vmatprep.subr.mxu0 0.0
      %270 = vmatpush1.msra.mxu0 %v260
      %271 = vmatprep.subr.mxu0 0.0
      %272 = vmatpush1.msra.mxu0 %v261
      %273 = vmatprep.subr.mxu0 0.0
      %274 = vmatpush1.msra.mxu0 %v262
      %275 = vmatprep.subr.mxu0 0.0
      %276 = vmatpush1.msra.mxu0 0.0
      %277 = vmatprep.subr.mxu0 0.0
      %278 = vmatpush1.msra.mxu0 0.0
      %279 = vmatprep.subr.mxu0 0.0
      %280 = vmatpush1.msra.mxu0 0.0
      %281 = vmatprep.subr.mxu0 0.0
      %282 = vmatpush1.msra.mxu0 0.0
      %283 = vmatprep.subr.mxu0 0.0
      %284 = vmatpush1.msra.mxu0 0.0
      %285 = vmatprep.subr.mxu0 0.0
      %286 = vmatpush1.msra.mxu0 0.0
      %287 = vmatprep.subr.mxu0 0.0
      %288 = vmatpush1.msra.mxu0 0.0
      %289 = vmatprep.subr.mxu0 0.0
      %290 = vmatpush1.msra.mxu0 0.0
      %291 = vmatprep.subr.mxu0 0.0
      %292 = vmatpush1.msra.mxu0 0.0
      %293 = vmatprep.subr.mxu0 0.0
      %294 = vmatpush1.msra.mxu0 0.0
      %295 = vmatprep.subr.mxu0 0.0
      %296 = vmatpush1.msra.mxu0 0.0
      %297 = vmatprep.subr.mxu0 0.0
      %298 = vmatpush1.msra.mxu0 0.0
      %299 = vmatprep.subr.mxu0 0.0
      %300 = vmatpush1.msra.mxu0 0.0
      %301 = vmatprep.subr.mxu0 0.0
      %302 = vmatpush1.msra.mxu0 0.0
      %303 = vmatprep.subr.mxu0 0.0
      %304 = vmatpush1.msra.mxu0 0.0
      %305 = vmatprep.subr.mxu0 0.0
      %306 = vmatpush1.msra.mxu0 0.0
      %307 = vmatprep.subr.mxu0 0.0
      %308 = vmatpush1.msra.mxu0 0.0
      %309 = vmatprep.subr.mxu0 0.0
      %310 = vmatpush1.msra.mxu0 0.0
      %311 = vmatprep.subr.mxu0 0.0
      %312 = vmatpush1.msra.mxu0 0.0
      %313 = vmatprep.subr.mxu0 0.0
      %314 = vmatpush1.msra.mxu0 0.0
      %315 = vmatprep.subr.mxu0 0.0
      %316 = vmatpush1.msra.mxu0 0.0
      %317 = vmatprep.subr.mxu0 0.0
      %318 = vmatpush1.msra.mxu0 0.0
      %319 = vmatprep.subr.mxu0 0.0
      %320 = vmatpush1.msra.mxu0 0.0
      %321 = vmatprep.subr.mxu0 0.0
      %322 = vmatpush1.msra.mxu0 0.0
      %323 = vmatprep.subr.mxu0 0.0
      %324 = vmatpush1.msra.mxu0 0.0
      %325 = vmatprep.subr.mxu0 0.0
      %326 = vmatpush1.msra.mxu0 0.0
      %327 = vmatprep.subr.mxu0 0.0
      %328 = vmatpush1.msra.mxu0 0.0
      %329 = vmatprep.subr.mxu0 0.0
      %330 = vmatpush1.msra.mxu0 0.0
      %331 = vmatprep.mubr.f32.mxu0 0.0
      %332 = vmatmul.mubr.f32.gmra.mrb[0].mxu0 %v265
      %v333 = vpop.f32.mrb[0].mxu0
      %v334 = vadd.f32 0.0, %v333
      %v335 = vpop.f32.mrb[0].mxu0
      %336 = vdwg.mxu0
      %v337 = vadd.f32 %v257, %v334
      %vm338 = vcmask 523264
      %339 = vst.msk [vmem:[#allocation2] sm:$0xff] %vm338, %v337
      // Predicated region
      $region37: #{decoder_forward.27} parent=31 // pred_check
        %p340 = pneg %p251
      $region38: #{decoder_forward.27} parent=31 // pred_check_branch
        %342 = sbr.rel (%p340) target = $region40
      $region39: #{decoder_forward.27} parent=31 // pred_region
        %v343 = vld [vmem:[#allocation2] sm:$0xff]
        %v344 = vld [vmem:[%s243] sm:$0x1]
        %v346 = vlaneseq
        %v347 = vshrl.u32 %v346, 7
        %v348 = vsub.s32 0, %v347
        %v349 = vrot.slane %v344, %v348
        %v351 = vadd.f32 %v343, %v349
        %352 = vst.msk [vmem:[%s250] sm:$0xff] %vm338, %v351
      $region40: #{decoder_forward.27} parent=31 // pred_fallthru
        _
      %p353 = scmp.lt.s32.totalorder %s19, 1
      %s354 = scalar_select %p353, %s19, 1
      %p355 = scmp.lt.s32.totalorder %s20, 0
      %s356 = scalar_select %p355, %s20, 0
      %s357 = sadd.s32 %s356, %s354
      %s358 = smul.addr %s357, 8
      %s359 = scalar_lea.vmem %s3, %s358
      // Predicated region
      $region41: #{decoder_forward.27} parent=31 // pred_check
        %p360 = pneg %p135
      $region42: #{decoder_forward.27} parent=31 // pred_check_branch
        %362 = sbr.rel (%p360) target = $region44
      $region43: #{decoder_forward.27} parent=31 // pred_region
        _
      $region44: #{decoder_forward.27} parent=31 // pred_fallthru
        _
    $region32: #{decoder_forward.27} parent=5 // pred_fallthru
      _
    %p363 = scmp.le.s32.totalorder 2, %s9
    // Predicated region
    $region45: #{decoder_forward.27} parent=5 // pred_check
      %p364 = pneg %p363
    $region46: #{decoder_forward.27} parent=5 // pred_check_branch
      %366 = sbr.rel (%p364) target = $region48
    $region47: #{decoder_forward.27} parent=5 // pred_region
      %s367 = ssub.s32 %s9, 2
      // Predicated region
      $region49: #{decoder_forward.27} parent=47 // pred_check
        %p368 = pneg %p141
      $region50: #{decoder_forward.27} parent=47 // pred_check_branch
        %370 = sbr.rel (%p368) target = $region52
      $region51: #{decoder_forward.27} parent=47 // pred_region
        %p371 = scmp.lt.s32.totalorder %s22, 1
        %s372 = scalar_select %p371, %s22, 1
        %p373 = scmp.lt.s32.totalorder %s23, 0
        %s374 = scalar_select %p373, %s23, 0
        %s375 = sadd.s32 %s374, %s372
        %s376 = smul.addr %s375, 8
        %s377 = scalar_lea.vmem %s3, %s376
      $region52: #{decoder_forward.27} parent=47 // pred_fallthru
        _
    $region48: #{decoder_forward.27} parent=5 // pred_fallthru
      _
  $region6: #{decoder_forward.27} parent=0 // loop_footer
    %s13 = sadd.s32 1, %s9
  $region7: #{decoder_forward.27} parent=0 // loop_footer_branch
    %8 = sbr.rel target = $region3
  $region8: #{decoder_forward.27} parent=0 // loop_exit
    _

// kernel: decoder_forward.31
$region0: #{decoder_forward.31}
  #allocation0 [shape = 'u32[]', space=smem, size = 0x4, offset = 0x4, fixed_abs, tag = 'smem constant byte address 0x4 - core index']
  #allocation1 [shape = 'u32[144,128]{1,0:T(1,128)}', space=vmem, size = 0x12000, scoped, tag = 'internal scratch']
  %s0 = inlined_call_operand.vmem [shape: f32[16,32], index: 0, kind: input, shape index: {}]
  %s1 = inlined_call_operand.vmem [shape: f32[32,64], index: 1, kind: input, shape index: {}]
  %s2 = inlined_call_operand.vmem [shape: f32[1,64], index: 2, kind: input, shape index: {}]
  %s3 = inlined_call_operand.vmem [shape: f32[64,32], index: 3, kind: input, shape index: {}]
  %s4 = inlined_call_operand.vmem [shape: f32[1,32], index: 4, kind: input, shape index: {}]
  %s5 = inlined_call_operand.vmem [shape: f32[16,32], index: 5, kind: output, shape index: {}]
  %s6 = sld [smem:[#allocation0]]
  $region53: #{decoder_forward.31} parent=0
    _
  %s8 = ssub.s32 1, %s6
  %s9 = scalar_select 0, %s8, %s6
  loop: start=0, step=1, limit=4
  $region2: #{decoder_forward.31} parent=0 // loop_pre_header
    _
  $region3: #{decoder_forward.31} parent=0 // loop_header
    %s11 = sphi 0, %s15
    %p12 = scmp.ge.s32.totalorder %s11, 4
    %s21 = sphi 0, %s23
    %s24 = sphi 0, %s21
    %s25 = sphi 0, %s24
    %s41 = sphi 0, %s25
    %s45 = sphi 0, %s45
    %s47 = sphi 0, %s45
    %s48 = sphi 0, %s47
    %s62 = sphi 0, %s48
    %s66 = sphi 0, %s66
    %s68 = sphi 0, %s66
    %s69 = sphi 0, %s68
    %s83 = sphi 0, %s69
    %s87 = sphi 0, %s87
    %s89 = sphi 0, %s87
    %s90 = sphi 0, %s89
    %s104 = sphi 0, %s90
    %s108 = sphi 0, %s108
    %s110 = sphi 0, %s108
    %s111 = sphi 0, %s110
    %s125 = sphi 0, %s111
    %s131 = sphi 0, %s133
    %s134 = sphi 0, %s131
    %s135 = sphi 0, %s134
    %s151 = sphi 0, %s135
  $region4: #{decoder_forward.31} parent=0 // loop_header_branch
    %14 = sbr.rel (%p12) target = $region8
  $region5: #{decoder_forward.31} parent=0 // loop_body
    %s16 = ssub.s32 %s11, 1
    %s17 = ssub.s32 %s11, 2
    %s18 = sadd.s32 %s11, 1
    %s19 = ssub.s32 %s11, %s18
    %p20 = scmp.eq.s32.totalorder %s19, 0
    %s22 = sadd.s32 %s21, 1
    %s23 = scalar_select %p20, %s21, %s22
    %p26 = pneg %p20
    %p27 = scmp.eq.s32.totalorder %s11, 1
    %p28 = por %p26, %p27
    %p29 = scmp.ne.s32.totalorder %s21, %s24
    %p30 = scmp.eq.s32.totalorder %s11, 0
    %p31 = por %p29, %p30
    %p32 = scmp.ne.s32.totalorder %s21, %s24
    %p33 = scmp.eq.s32.totalorder %s16, 1
    %p34 = por %p32, %p33
    %p35 = scmp.ne.s32.totalorder %s24, %s25
    %p36 = scmp.eq.s32.totalorder %s16, 0
    %p37 = por %p35, %p36
    %p38 = scmp.ne.s32.totalorder %s24, %s25
    %p39 = scmp.eq.s32.totalorder %s17, 1
    %p40 = por %p38, %p39
    %p42 = scmp.ne.s32.totalorder %s25, %s41
    %p43 = scmp.eq.s32.totalorder %s17, 0
    %p44 = por %p42, %p43
    %s46 = sadd.s32 %s45, 1
    %p49 = scmp.eq.s32.totalorder %s11, 1
    %p50 = scmp.ne.s32.totalorder %s45, %s47
    %p51 = scmp.eq.s32.totalorder %s11, 0
    %p52 = por %p50, %p51
    %p53 = scmp.ne.s32.totalorder %s45, %s47
    %p54 = scmp.eq.s32.totalorder %s16, 1
    %p55 = por %p53, %p54
    %p56 = scmp.ne.s32.totalorder %s47, %s48
    %p57 = scmp.eq.s32.totalorder %s16, 0
    %p58 = por %p56, %p57
    %p59 = scmp.ne.s32.totalorder %s47, %s48
    %p60 = scmp.eq.s32.totalorder %s17, 1
    %p61 = por %p59, %p60
    %p63 = scmp.ne.s32.totalorder %s48, %s62
    %p64 = scmp.eq.s32.totalorder %s17, 0
    %p65 = por %p63, %p64
    %s67 = sadd.s32 %s66, 1
    %p70 = scmp.eq.s32.totalorder %s11, 1
    %p71 = scmp.ne.s32.totalorder %s66, %s68
    %p72 = scmp.eq.s32.totalorder %s11, 0
    %p73 = por %p71, %p72
    %p74 = scmp.ne.s32.totalorder %s66, %s68
    %p75 = scmp.eq.s32.totalorder %s16, 1
    %p76 = por %p74, %p75
    %p77 = scmp.ne.s32.totalorder %s68, %s69
    %p78 = scmp.eq.s32.totalorder %s16, 0
    %p79 = por %p77, %p78
    %p80 = scmp.ne.s32.totalorder %s68, %s69
    %p81 = scmp.eq.s32.totalorder %s17, 1
    %p82 = por %p80, %p81
    %p84 = scmp.ne.s32.totalorder %s69, %s83
    %p85 = scmp.eq.s32.totalorder %s17, 0
    %p86 = por %p84, %p85
    %s88 = sadd.s32 %s87, 1
    %p91 = scmp.eq.s32.totalorder %s11, 1
    %p92 = scmp.ne.s32.totalorder %s87, %s89
    %p93 = scmp.eq.s32.totalorder %s11, 0
    %p94 = por %p92, %p93
    %p95 = scmp.ne.s32.totalorder %s87, %s89
    %p96 = scmp.eq.s32.totalorder %s16, 1
    %p97 = por %p95, %p96
    %p98 = scmp.ne.s32.totalorder %s89, %s90
    %p99 = scmp.eq.s32.totalorder %s16, 0
    %p100 = por %p98, %p99
    %p101 = scmp.ne.s32.totalorder %s89, %s90
    %p102 = scmp.eq.s32.totalorder %s17, 1
    %p103 = por %p101, %p102
    %p105 = scmp.ne.s32.totalorder %s90, %s104
    %p106 = scmp.eq.s32.totalorder %s17, 0
    %p107 = por %p105, %p106
    %s109 = sadd.s32 %s108, 1
    %p112 = scmp.eq.s32.totalorder %s11, 1
    %p113 = scmp.ne.s32.totalorder %s108, %s110
    %p114 = scmp.eq.s32.totalorder %s11, 0
    %p115 = por %p113, %p114
    %p116 = scmp.ne.s32.totalorder %s108, %s110
    %p117 = scmp.eq.s32.totalorder %s16, 1
    %p118 = por %p116, %p117
    %p119 = scmp.ne.s32.totalorder %s110, %s111
    %p120 = scmp.eq.s32.totalorder %s16, 0
    %p121 = por %p119, %p120
    %p122 = scmp.ne.s32.totalorder %s110, %s111
    %p123 = scmp.eq.s32.totalorder %s17, 1
    %p124 = por %p122, %p123
    %p126 = scmp.ne.s32.totalorder %s111, %s125
    %p127 = scmp.eq.s32.totalorder %s17, 0
    %p128 = por %p126, %p127
    %s129 = ssub.s32 %s11, %s18
    %p130 = scmp.eq.s32.totalorder %s129, 0
    %s132 = sadd.s32 %s131, 1
    %s133 = scalar_select %p130, %s131, %s132
    %p136 = pneg %p130
    %p137 = scmp.eq.s32.totalorder %s11, 1
    %p138 = por %p136, %p137
    %p139 = scmp.ne.s32.totalorder %s131, %s134
    %p140 = scmp.eq.s32.totalorder %s11, 0
    %p141 = por %p139, %p140
    %p142 = scmp.ne.s32.totalorder %s131, %s134
    %p143 = scmp.eq.s32.totalorder %s16, 1
    %p144 = por %p142, %p143
    %p145 = scmp.ne.s32.totalorder %s134, %s135
    %p146 = scmp.eq.s32.totalorder %s16, 0
    %p147 = por %p145, %p146
    %p148 = scmp.ne.s32.totalorder %s134, %s135
    %p149 = scmp.eq.s32.totalorder %s17, 1
    %p150 = por %p148, %p149
    %p152 = scmp.ne.s32.totalorder %s135, %s151
    %p153 = scmp.eq.s32.totalorder %s17, 0
    %p154 = por %p152, %p153
    %p155 = scmp.le.s32.totalorder 1, %s11
    %p156 = scmp.lt.s32.totalorder %s11, 3
    %p157 = pnand %p155, %p156
    %p158 = pneg %p157
    // Predicated region
    $region9: #{decoder_forward.31} parent=5 // pred_check
      _
    $region10: #{decoder_forward.31} parent=5 // pred_check_branch
      %160 = sbr.rel (%p157) target = $region12
    $region11: #{decoder_forward.31} parent=5 // pred_region
      %s161 = ssub.s32 %s11, 1
      // Predicated region
      $region13: #{decoder_forward.31} parent=11 // pred_check
        %p162 = pneg %p58
      $region14: #{decoder_forward.31} parent=11 // pred_check_branch
        %164 = sbr.rel (%p162) target = $region16
      $region15: #{decoder_forward.31} parent=11 // pred_region
        _
      $region16: #{decoder_forward.31} parent=11 // pred_fallthru
        _
      // Predicated region
      $region17: #{decoder_forward.31} parent=11 // pred_check
        %p165 = pneg %p79
      $region18: #{decoder_forward.31} parent=11 // pred_check_branch
        %167 = sbr.rel (%p165) target = $region20
      $region19: #{decoder_forward.31} parent=11 // pred_region
        _
      $region20: #{decoder_forward.31} parent=11 // pred_fallthru
        _
      // Predicated region
      $region21: #{decoder_forward.31} parent=11 // pred_check
        %p168 = pneg %p100
      $region22: #{decoder_forward.31} parent=11 // pred_check_branch
        %170 = sbr.rel (%p168) target = $region24
      $region23: #{decoder_forward.31} parent=11 // pred_region
        _
      $region24: #{decoder_forward.31} parent=11 // pred_fallthru
        _
      // Predicated region
      $region25: #{decoder_forward.31} parent=11 // pred_check
        %p171 = pneg %p121
      $region26: #{decoder_forward.31} parent=11 // pred_check_branch
        %173 = sbr.rel (%p171) target = $region28
      $region27: #{decoder_forward.31} parent=11 // pred_region
        _
      $region28: #{decoder_forward.31} parent=11 // pred_fallthru
        _
    $region12: #{decoder_forward.31} parent=5 // pred_fallthru
      _
    %p174 = scmp.lt.s32.totalorder %s11, 2
    // Predicated region
    $region29: #{decoder_forward.31} parent=5 // pred_check
      %p175 = pneg %p174
    $region30: #{decoder_forward.31} parent=5 // pred_check_branch
      %177 = sbr.rel (%p175) target = $region32
    $region31: #{decoder_forward.31} parent=5 // pred_region
      // Predicated region
      $region33: #{decoder_forward.31} parent=31 // pred_check
        %p178 = pneg %p31
      $region34: #{decoder_forward.31} parent=31 // pred_check_branch
        %180 = sbr.rel (%p178) target = $region36
      $region35: #{decoder_forward.31} parent=31 // pred_region
        %p181 = scmp.lt.s32.totalorder %s11, 1
        %s182 = scalar_select %p181, %s11, 1
        %s183 = smul.addr %s182, 8
        %s184 = scalar_lea.vmem %s0, %s183
      $region36: #{decoder_forward.31} parent=31 // pred_fallthru
        _
    $region32: #{decoder_forward.31} parent=5 // pred_fallthru
      _
    %p185 = scmp.le.s32.totalorder 1, %s11
    %p186 = scmp.lt.s32.totalorder %s11, 3
    %p187 = pnand %p185, %p186
    %p188 = pneg %p187
    // Predicated region
    $region37: #{decoder_forward.31} parent=5 // pred_check
      _
    $region38: #{decoder_forward.31} parent=5 // pred_check_branch
      %190 = sbr.rel (%p187) target = $region40
    $region39: #{decoder_forward.31} parent=5 // pred_region
      %s191 = ssub.s32 %s11, 1
      %p192 = scmp.lt.s32.totalorder %s16, 1
      %s193 = scalar_select %p192, %s16, 1
      %s194 = smul.addr %s193, 8
      %s195 = scalar_lea.vmem %s0, %s194
      %p196 = pneg %p37
      %p197 = pneg %p34
      %p198 = pneg %p58
      %p199 = pneg %p55
      %p200 = pneg %p79
      %p201 = pneg %p76
      %p202 = pneg %p100
      %p203 = pneg %p97
      %p204 = pneg %p121
      %p205 = pneg %p118
      %p206 = pneg %p147
      %p207 = pneg %p144
      %p208 = scmp.lt.s32.totalorder %s16, 1
      %s209 = scalar_select %p208, %s16, 1
      %s210 = smul.addr %s209, 8
      %s211 = scalar_lea.vmem %s5, %s210
      %p212 = scmp.lt.s32.totalorder %s16, 1
      %s213 = scalar_select %p212, %s16, 1
      %s214 = smul.addr %s213, 8
      %s215 = scalar_lea.vmem %s0, %s214
      %p216 = scmp.lt.s32.totalorder %s16, 1
      %s217 = scalar_select %p216, %s16, 1
      %s218 = smul.addr %s217, 8
      %s219 = scalar_lea.vmem %s5, %s218
      %v220 = vld [vmem:[%s215] sm:$0xff]
      %v221 = vld [vmem:[%s1] sm:$0xff]
      %v222 = vld [vmem:[%s1 + $0x8] sm:$0xff]
      %v223 = vld [vmem:[%s1 + $0x10] sm:$0xff]
      %v224 = vld [vmem:[%s1 + $0x18] sm:$0xff]
      %v225 = vld [vmem:[%s2] sm:$0x1]
      %v227 = vlaneseq
      %v228 = vshrl.u32 %v227, 7
      %v229 = vsub.s32 0, %v228
      %v230 = vrot.slane %v225, %v229
      %vm232 = vcmask 261120
      %v234 = vsel %vm232, %v220, 0
      %236 = vmatprep.subr.mxu0 0.0
      %237 = vmatpush1.msra.mxu0 %v221
      %238 = vmatprep.subr.mxu0 0.0
      %239 = vmatpush1.msra.mxu0 %v222
      %240 = vmatprep.subr.mxu0 0.0
      %241 = vmatpush1.msra.mxu0 %v223
      %242 = vmatprep.subr.mxu0 0.0
      %243 = vmatpush1.msra.mxu0 %v224
      %244 = vmatprep.subr.mxu0 0.0
      %245 = vmatpush1.msra.mxu0 0.0
      %246 = vmatprep.subr.mxu0 0.0
      %247 = vmatpush1.msra.mxu0 0.0
      %248 = vmatprep.subr.mxu0 0.0
      %249 = vmatpush1.msra.mxu0 0.0
      %250 = vmatprep.subr.mxu0 0.0
      %251 = vmatpush1.msra.mxu0 0.0
      %252 = vmatprep.subr.mxu0 0.0
      %253 = vmatpush1.msra.mxu0 0.0
      %254 = vmatprep.subr.mxu0 0.0
      %255 = vmatpush1.msra.mxu0 0.0
      %256 = vmatprep.subr.mxu0 0.0
      %257 = vmatpush1.msra.mxu0 0.0
      %258 = vmatprep.subr.mxu0 0.0
      %259 = vmatpush1.msra.mxu0 0.0
      %260 = vmatprep.subr.mxu0 0.0
      %261 = vmatpush1.msra.mxu0 0.0
      %262 = vmatprep.subr.mxu0 0.0
      %263 = vmatpush1.msra.mxu0 0.0
      %264 = vmatprep.subr.mxu0 0.0
      %265 = vmatpush1.msra.mxu0 0.0
      %266 = vmatprep.subr.mxu0 0.0
      %267 = vmatpush1.msra.mxu0 0.0
      %268 = vmatprep.subr.mxu0 0.0
      %269 = vmatpush1.msra.mxu0 0.0
      %270 = vmatprep.subr.mxu0 0.0
      %271 = vmatpush1.msra.mxu0 0.0
      %272 = vmatprep.subr.mxu0 0.0
      %273 = vmatpush1.msra.mxu0 0.0
      %274 = vmatprep.subr.mxu0 0.0
      %275 = vmatpush1.msra.mxu0 0.0
      %276 = vmatprep.subr.mxu0 0.0
      %277 = vmatpush1.msra.mxu0 0.0
      %278 = vmatprep.subr.mxu0 0.0
      %279 = vmatpush1.msra.mxu0 0.0
      %280 = vmatprep.subr.mxu0 0.0
      %281 = vmatpush1.msra.mxu0 0.0
      %282 = vmatprep.subr.mxu0 0.0
      %283 = vmatpush1.msra.mxu0 0.0
      %284 = vmatprep.subr.mxu0 0.0
      %285 = vmatpush1.msra.mxu0 0.0
      %286 = vmatprep.subr.mxu0 0.0
      %287 = vmatpush1.msra.mxu0 0.0
      %288 = vmatprep.subr.mxu0 0.0
      %289 = vmatpush1.msra.mxu0 0.0
      %290 = vmatprep.subr.mxu0 0.0
      %291 = vmatpush1.msra.mxu0 0.0
      %292 = vmatprep.subr.mxu0 0.0
      %293 = vmatpush1.msra.mxu0 0.0
      %294 = vmatprep.subr.mxu0 0.0
      %295 = vmatpush1.msra.mxu0 0.0
      %296 = vmatprep.subr.mxu0 0.0
      %297 = vmatpush1.msra.mxu0 0.0
      %298 = vmatprep.subr.mxu0 0.0
      %299 = vmatpush1.msra.mxu0 0.0
      %300 = vmatprep.mubr.f32.mxu0 0.0
      %301 = vmatmul.mubr.f32.gmra.mrb[0].mxu0 %v234
      %v302 = vpop.f32.mrb[0].mxu0
      %v303 = vadd.f32 %v230, %v302
      %v304 = vpop.f32.mrb[0].mxu0
      %305 = vdwg.mxu0
      %v306 = vmax.f32 %v303, 0.0
      %v307 = vld [vmem:[%s3] sm:$0xff]
      %v308 = vld [vmem:[%s3 + $0x8] sm:$0xff]
      %v309 = vld [vmem:[%s3 + $0x10] sm:$0xff]
      %v310 = vld [vmem:[%s3 + $0x18] sm:$0xff]
      %v311 = vld [vmem:[%s3 + $0x20] sm:$0xff]
      %v312 = vld [vmem:[%s3 + $0x28] sm:$0xff]
      %v313 = vld [vmem:[%s3 + $0x30] sm:$0xff]
      %v314 = vld [vmem:[%s3 + $0x38] sm:$0xff]
      %v315 = vld [vmem:[%s4] sm:$0x1]
      %v317 = vlaneseq
      %v318 = vshrl.u32 %v317, 7
      %v319 = vsub.s32 0, %v318
      %v320 = vrot.slane %v315, %v319
      %vm322 = vcmask 523264
      %v324 = vsel %vm322, %v306, 0
      %326 = vmatprep.subr.mxu0 0.0
      %327 = vmatpush1.msra.mxu0 %v307
      %328 = vmatprep.subr.mxu0 0.0
      %329 = vmatpush1.msra.mxu0 %v308
      %330 = vmatprep.subr.mxu0 0.0
      %331 = vmatpush1.msra.mxu0 %v309
      %332 = vmatprep.subr.mxu0 0.0
      %333 = vmatpush1.msra.mxu0 %v310
      %334 = vmatprep.subr.mxu0 0.0
      %335 = vmatpush1.msra.mxu0 %v311
      %336 = vmatprep.subr.mxu0 0.0
      %337 = vmatpush1.msra.mxu0 %v312
      %338 = vmatprep.subr.mxu0 0.0
      %339 = vmatpush1.msra.mxu0 %v313
      %340 = vmatprep.subr.mxu0 0.0
      %341 = vmatpush1.msra.mxu0 %v314
      %342 = vmatprep.subr.mxu0 0.0
      %343 = vmatpush1.msra.mxu0 0.0
      %344 = vmatprep.subr.mxu0 0.0
      %345 = vmatpush1.msra.mxu0 0.0
      %346 = vmatprep.subr.mxu0 0.0
      %347 = vmatpush1.msra.mxu0 0.0
      %348 = vmatprep.subr.mxu0 0.0
      %349 = vmatpush1.msra.mxu0 0.0
      %350 = vmatprep.subr.mxu0 0.0
      %351 = vmatpush1.msra.mxu0 0.0
      %352 = vmatprep.subr.mxu0 0.0
      %353 = vmatpush1.msra.mxu0 0.0
      %354 = vmatprep.subr.mxu0 0.0
      %355 = vmatpush1.msra.mxu0 0.0
      %356 = vmatprep.subr.mxu0 0.0
      %357 = vmatpush1.msra.mxu0 0.0
      %358 = vmatprep.subr.mxu0 0.0
      %359 = vmatpush1.msra.mxu0 0.0
      %360 = vmatprep.subr.mxu0 0.0
      %361 = vmatpush1.msra.mxu0 0.0
      %362 = vmatprep.subr.mxu0 0.0
      %363 = vmatpush1.msra.mxu0 0.0
      %364 = vmatprep.subr.mxu0 0.0
      %365 = vmatpush1.msra.mxu0 0.0
      %366 = vmatprep.subr.mxu0 0.0
      %367 = vmatpush1.msra.mxu0 0.0
      %368 = vmatprep.subr.mxu0 0.0
      %369 = vmatpush1.msra.mxu0 0.0
      %370 = vmatprep.subr.mxu0 0.0
      %371 = vmatpush1.msra.mxu0 0.0
      %372 = vmatprep.subr.mxu0 0.0
      %373 = vmatpush1.msra.mxu0 0.0
      %374 = vmatprep.subr.mxu0 0.0
      %375 = vmatpush1.msra.mxu0 0.0
      %376 = vmatprep.subr.mxu0 0.0
      %377 = vmatpush1.msra.mxu0 0.0
      %378 = vmatprep.subr.mxu0 0.0
      %379 = vmatpush1.msra.mxu0 0.0
      %380 = vmatprep.subr.mxu0 0.0
      %381 = vmatpush1.msra.mxu0 0.0
      %382 = vmatprep.subr.mxu0 0.0
      %383 = vmatpush1.msra.mxu0 0.0
      %384 = vmatprep.subr.mxu0 0.0
      %385 = vmatpush1.msra.mxu0 0.0
      %386 = vmatprep.subr.mxu0 0.0
      %387 = vmatpush1.msra.mxu0 0.0
      %388 = vmatprep.subr.mxu0 0.0
      %389 = vmatpush1.msra.mxu0 0.0
      %390 = vmatprep.mubr.f32.mxu0 0.0
      %391 = vmatmul.mubr.f32.gmra.mrb[0].mxu0 %v324
      %v392 = vpop.f32.mrb[0].mxu0
      %v393 = vadd.f32 %v320, %v392
      %v394 = vpop.f32.mrb[0].mxu0
      %395 = vdwg.mxu0
      %396 = vst.msk [vmem:[%s219] sm:$0xff] %vm232, %v393
      %p397 = scmp.lt.s32.totalorder %s16, 1
      %s398 = scalar_select %p397, %s16, 1
      %s399 = smul.addr %s398, 8
      %s400 = scalar_lea.vmem %s5, %s399
      // Predicated region
      $region41: #{decoder_forward.31} parent=39 // pred_check
        %p401 = pneg %p144
      $region42: #{decoder_forward.31} parent=39 // pred_check_branch
        %403 = sbr.rel (%p401) target = $region44
      $region43: #{decoder_forward.31} parent=39 // pred_region
        _
      $region44: #{decoder_forward.31} parent=39 // pred_fallthru
        _
    $region40: #{decoder_forward.31} parent=5 // pred_fallthru
      _
    %p404 = scmp.le.s32.totalorder 2, %s11
    // Predicated region
    $region45: #{decoder_forward.31} parent=5 // pred_check
      %p405 = pneg %p404
    $region46: #{decoder_forward.31} parent=5 // pred_check_branch
      %407 = sbr.rel (%p405) target = $region48
    $region47: #{decoder_forward.31} parent=5 // pred_region
      %s408 = ssub.s32 %s11, 2
      // Predicated region
      $region49: #{decoder_forward.31} parent=47 // pred_check
        %p409 = pneg %p150
      $region50: #{decoder_forward.31} parent=47 // pred_check_branch
        %411 = sbr.rel (%p409) target = $region52
      $region51: #{decoder_forward.31} parent=47 // pred_region
        %p412 = scmp.lt.s32.totalorder %s17, 1
        %s413 = scalar_select %p412, %s17, 1
        %s414 = smul.addr %s413, 8
        %s415 = scalar_lea.vmem %s5, %s414
      $region52: #{decoder_forward.31} parent=47 // pred_fallthru
        _
    $region48: #{decoder_forward.31} parent=5 // pred_fallthru
      _
  $region6: #{decoder_forward.31} parent=0 // loop_footer
    %s15 = sadd.s32 1, %s11
  $region7: #{decoder_forward.31} parent=0 // loop_footer_branch
    %10 = sbr.rel target = $region3
  $region8: #{decoder_forward.31} parent=0 // loop_exit
    _

// kernel: decoder_forward.43
$region0: #{decoder_forward.43}
  #allocation0 [shape = 'u32[]', space=smem, size = 0x4, offset = 0x4, fixed_abs, tag = 'smem constant byte address 0x4 - core index']
  #allocation1 [shape = 'u32[144,128]{1,0:T(1,128)}', space=vmem, size = 0x12000, scoped, tag = 'internal scratch']
  %s0 = inlined_call_operand.vmem [shape: f32[16,32], index: 0, kind: input, shape index: {}]
  %s1 = inlined_call_operand.vmem [shape: f32[16,32], index: 1, kind: input, shape index: {}]
  %s2 = inlined_call_operand.vmem [shape: f32[1,32], index: 2, kind: input, shape index: {}]
  %s3 = inlined_call_operand.vmem [shape: f32[1,32], index: 3, kind: input, shape index: {}]
  %s4 = inlined_call_operand.hbm [shape: f32[16,32], index: 4, kind: output, shape index: {}]
  %s5 = sld [smem:[#allocation0]]
  $region49: #{decoder_forward.43} parent=0
    _
  %s7 = ssub.s32 1, %s5
  %s8 = scalar_select 0, %s7, %s5
  $region1: #{decoder_forward.43} parent=0
    #allocation2 [shape = 'u8[8192]{0}', space=vmem, size = 0x2000, scoped, tag = 'output window, operand 0']
    #allocation3 [shape = 's32[2]{0}', space=sflag, size = 0x8, scoped, tag = 'scoped memory for decoder_forward.43']
    %9 = vsyncpa [#allocation3], 0
    %s10 = scalar_lea.sflag [#allocation3], 1
    %11 = vsyncpa %s10, 0
    loop: start=0, step=1, limit=4
    $region2: #{decoder_forward.43} parent=1 // loop_pre_header
      _
    $region3: #{decoder_forward.43} parent=1 // loop_header
      %s13 = sphi 0, %s17
      %p14 = scmp.ge.s32.totalorder %s13, 4
      %s23 = sphi 0, %s25
      %s26 = sphi 0, %s23
      %s27 = sphi 0, %s26
      %s43 = sphi 0, %s27
      %s49 = sphi 0, %s51
      %s52 = sphi 0, %s49
      %s53 = sphi 0, %s52
      %s69 = sphi 0, %s53
      %s73 = sphi 0, %s73
      %s75 = sphi 0, %s73
      %s76 = sphi 0, %s75
      %s90 = sphi 0, %s76
      %s94 = sphi 0, %s94
      %s96 = sphi 0, %s94
      %s97 = sphi 0, %s96
      %s111 = sphi 0, %s97
      %s117 = sphi 0, %s119
      %s120 = sphi 0, %s117
      %s121 = sphi 0, %s120
      %s137 = sphi 0, %s121
    $region4: #{decoder_forward.43} parent=1 // loop_header_branch
      %16 = sbr.rel (%p14) target = $region8
    $region5: #{decoder_forward.43} parent=1 // loop_body
      %s18 = ssub.s32 %s13, 1
      %s19 = ssub.s32 %s13, 2
      %s20 = sadd.s32 %s13, 1
      %s21 = ssub.s32 %s13, %s20
      %p22 = scmp.eq.s32.totalorder %s21, 0
      %s24 = sadd.s32 %s23, 1
      %s25 = scalar_select %p22, %s23, %s24
      %p28 = pneg %p22
      %p29 = scmp.eq.s32.totalorder %s13, 1
      %p30 = por %p28, %p29
      %p31 = scmp.ne.s32.totalorder %s23, %s26
      %p32 = scmp.eq.s32.totalorder %s13, 0
      %p33 = por %p31, %p32
      %p34 = scmp.ne.s32.totalorder %s23, %s26
      %p35 = scmp.eq.s32.totalorder %s18, 1
      %p36 = por %p34, %p35
      %p37 = scmp.ne.s32.totalorder %s26, %s27
      %p38 = scmp.eq.s32.totalorder %s18, 0
      %p39 = por %p37, %p38
      %p40 = scmp.ne.s32.totalorder %s26, %s27
      %p41 = scmp.eq.s32.totalorder %s19, 1
      %p42 = por %p40, %p41
      %p44 = scmp.ne.s32.totalorder %s27, %s43
      %p45 = scmp.eq.s32.totalorder %s19, 0
      %p46 = por %p44, %p45
      %s47 = ssub.s32 %s13, %s20
      %p48 = scmp.eq.s32.totalorder %s47, 0
      %s50 = sadd.s32 %s49, 1
      %s51 = scalar_select %p48, %s49, %s50
      %p54 = pneg %p48
      %p55 = scmp.eq.s32.totalorder %s13, 1
      %p56 = por %p54, %p55
      %p57 = scmp.ne.s32.totalorder %s49, %s52
      %p58 = scmp.eq.s32.totalorder %s13, 0
      %p59 = por %p57, %p58
      %p60 = scmp.ne.s32.totalorder %s49, %s52
      %p61 = scmp.eq.s32.totalorder %s18, 1
      %p62 = por %p60, %p61
      %p63 = scmp.ne.s32.totalorder %s52, %s53
      %p64 = scmp.eq.s32.totalorder %s18, 0
      %p65 = por %p63, %p64
      %p66 = scmp.ne.s32.totalorder %s52, %s53
      %p67 = scmp.eq.s32.totalorder %s19, 1
      %p68 = por %p66, %p67
      %p70 = scmp.ne.s32.totalorder %s53, %s69
      %p71 = scmp.eq.s32.totalorder %s19, 0
      %p72 = por %p70, %p71
      %s74 = sadd.s32 %s73, 1
      %p77 = scmp.eq.s32.totalorder %s13, 1
      %p78 = scmp.ne.s32.totalorder %s73, %s75
      %p79 = scmp.eq.s32.totalorder %s13, 0
      %p80 = por %p78, %p79
      %p81 = scmp.ne.s32.totalorder %s73, %s75
      %p82 = scmp.eq.s32.totalorder %s18, 1
      %p83 = por %p81, %p82
      %p84 = scmp.ne.s32.totalorder %s75, %s76
      %p85 = scmp.eq.s32.totalorder %s18, 0
      %p86 = por %p84, %p85
      %p87 = scmp.ne.s32.totalorder %s75, %s76
      %p88 = scmp.eq.s32.totalorder %s19, 1
      %p89 = por %p87, %p88
      %p91 = scmp.ne.s32.totalorder %s76, %s90
      %p92 = scmp.eq.s32.totalorder %s19, 0
      %p93 = por %p91, %p92
      %s95 = sadd.s32 %s94, 1
      %p98 = scmp.eq.s32.totalorder %s13, 1
      %p99 = scmp.ne.s32.totalorder %s94, %s96
      %p100 = scmp.eq.s32.totalorder %s13, 0
      %p101 = por %p99, %p100
      %p102 = scmp.ne.s32.totalorder %s94, %s96
      %p103 = scmp.eq.s32.totalorder %s18, 1
      %p104 = por %p102, %p103
      %p105 = scmp.ne.s32.totalorder %s96, %s97
      %p106 = scmp.eq.s32.totalorder %s18, 0
      %p107 = por %p105, %p106
      %p108 = scmp.ne.s32.totalorder %s96, %s97
      %p109 = scmp.eq.s32.totalorder %s19, 1
      %p110 = por %p108, %p109
      %p112 = scmp.ne.s32.totalorder %s97, %s111
      %p113 = scmp.eq.s32.totalorder %s19, 0
      %p114 = por %p112, %p113
      %s115 = ssub.s32 %s13, %s20
      %p116 = scmp.eq.s32.totalorder %s115, 0
      %s118 = sadd.s32 %s117, 1
      %s119 = scalar_select %p116, %s117, %s118
      %p122 = pneg %p116
      %p123 = scmp.eq.s32.totalorder %s13, 1
      %p124 = por %p122, %p123
      %p125 = scmp.ne.s32.totalorder %s117, %s120
      %p126 = scmp.eq.s32.totalorder %s13, 0
      %p127 = por %p125, %p126
      %p128 = scmp.ne.s32.totalorder %s117, %s120
      %p129 = scmp.eq.s32.totalorder %s18, 1
      %p130 = por %p128, %p129
      %p131 = scmp.ne.s32.totalorder %s120, %s121
      %p132 = scmp.eq.s32.totalorder %s18, 0
      %p133 = por %p131, %p132
      %p134 = scmp.ne.s32.totalorder %s120, %s121
      %p135 = scmp.eq.s32.totalorder %s19, 1
      %p136 = por %p134, %p135
      %p138 = scmp.ne.s32.totalorder %s121, %s137
      %p139 = scmp.eq.s32.totalorder %s19, 0
      %p140 = por %p138, %p139
      %p141 = scmp.le.s32.totalorder 1, %s13
      %p142 = scmp.lt.s32.totalorder %s13, 3
      %p143 = pnand %p141, %p142
      %p144 = pneg %p143
      // Predicated region
      $region9: #{decoder_forward.43} parent=5 // pred_check
        _
      $region10: #{decoder_forward.43} parent=5 // pred_check_branch
        %146 = sbr.rel (%p143) target = $region12
      $region11: #{decoder_forward.43} parent=5 // pred_region
        %s147 = ssub.s32 %s13, 1
        // Predicated region
        $region13: #{decoder_forward.43} parent=11 // pred_check
          %p148 = pneg %p86
        $region14: #{decoder_forward.43} parent=11 // pred_check_branch
          %150 = sbr.rel (%p148) target = $region16
        $region15: #{decoder_forward.43} parent=11 // pred_region
          _
        $region16: #{decoder_forward.43} parent=11 // pred_fallthru
          _
        // Predicated region
        $region17: #{decoder_forward.43} parent=11 // pred_check
          %p151 = pneg %p107
        $region18: #{decoder_forward.43} parent=11 // pred_check_branch
          %153 = sbr.rel (%p151) target = $region20
        $region19: #{decoder_forward.43} parent=11 // pred_region
          _
        $region20: #{decoder_forward.43} parent=11 // pred_fallthru
          _
      $region12: #{decoder_forward.43} parent=5 // pred_fallthru
        _
      %p154 = scmp.lt.s32.totalorder %s13, 2
      // Predicated region
      $region21: #{decoder_forward.43} parent=5 // pred_check
        %p155 = pneg %p154
      $region22: #{decoder_forward.43} parent=5 // pred_check_branch
        %157 = sbr.rel (%p155) target = $region24
      $region23: #{decoder_forward.43} parent=5 // pred_region
        // Predicated region
        $region25: #{decoder_forward.43} parent=23 // pred_check
          %p158 = pneg %p33
        $region26: #{decoder_forward.43} parent=23 // pred_check_branch
          %160 = sbr.rel (%p158) target = $region28
        $region27: #{decoder_forward.43} parent=23 // pred_region
          %p161 = scmp.lt.s32.totalorder %s13, 1
          %s162 = scalar_select %p161, %s13, 1
          %s163 = smul.addr %s162, 8
          %s164 = scalar_lea.vmem %s0, %s163
        $region28: #{decoder_forward.43} parent=23 // pred_fallthru
          _
        // Predicated region
        $region29: #{decoder_forward.43} parent=23 // pred_check
          %p165 = pneg %p59
        $region30: #{decoder_forward.43} parent=23 // pred_check_branch
          %167 = sbr.rel (%p165) target = $region32
        $region31: #{decoder_forward.43} parent=23 // pred_region
          %p168 = scmp.lt.s32.totalorder %s13, 1
          %s169 = scalar_select %p168, %s13, 1
          %s170 = smul.addr %s169, 8
          %s171 = scalar_lea.vmem %s1, %s170
        $region32: #{decoder_forward.43} parent=23 // pred_fallthru
          _
      $region24: #{decoder_forward.43} parent=5 // pred_fallthru
        _
      %p172 = scmp.le.s32.totalorder 1, %s13
      %p173 = scmp.lt.s32.totalorder %s13, 3
      %p174 = pnand %p172, %p173
      %p175 = pneg %p174
      // Predicated region
      $region33: #{decoder_forward.43} parent=5 // pred_check
        _
      $region34: #{decoder_forward.43} parent=5 // pred_check_branch
        %177 = sbr.rel (%p174) target = $region36
      $region35: #{decoder_forward.43} parent=5 // pred_region
        %s178 = ssub.s32 %s13, 1
        %p179 = scmp.lt.s32.totalorder %s18, 1
        %s180 = scalar_select %p179, %s18, 1
        %s181 = smul.addr %s180, 8
        %s182 = scalar_lea.vmem %s0, %s181
        %p183 = pneg %p39
        %p184 = pneg %p36
        %p185 = scmp.lt.s32.totalorder %s18, 1
        %s186 = scalar_select %p185, %s18, 1
        %s187 = smul.addr %s186, 8
        %s188 = scalar_lea.vmem %s1, %s187
        %p189 = pneg %p65
        %p190 = pneg %p62
        %p191 = pneg %p86
        %p192 = pneg %p83
        %p193 = pneg %p107
        %p194 = pneg %p104
        %p195 = pneg %p133
        %p196 = pneg %p130
        %s197 = sand.u32 %s120, 1
        %s198 = scalar_lea.sflag [#allocation3], %s197
        %s199 = sand.u32 %s120, 1
        %s200 = smul.addr %s199, 8
        %s201 = scalar_lea.vmem [#allocation2], %s200
        %p202 = scmp.lt.s32.totalorder %s18, 1
        %s203 = scalar_select %p202, %s18, 1
        %s204 = smul.addr %s203, 8
        %s205 = scalar_lea.vmem %s0, %s204
        %p206 = scmp.lt.s32.totalorder %s18, 1
        %s207 = scalar_select %p206, %s18, 1
        %s208 = smul.addr %s207, 8
        %s209 = scalar_lea.vmem %s1, %s208
        %v210 = vld [vmem:[%s205] sm:$0xff]
        %v211 = vld [vmem:[%s209] sm:$0xff]
        %v212 = vadd.f32 %v210, %v211
        %vm213 = vcmask 261120
        %v214 = vsel %vm213, %v212, 0.0
        %215 = vadd.xlane.f32.xlu0 %v214
        %v216 = vpop.xlane.xlu0 %215
        %v217 = vrcp.pop 32.0
        %v218 = vmul.f32 %v216, %v217
        %v219 = vsub.f32 %v212, %v218
        %v220 = vmul.f32 %v219, %v219
        %v221 = vsel %vm213, %v220, 0.0
        %222 = vadd.xlane.f32.xlu0 %v221
        %v223 = vpop.xlane.xlu0 %222
        %v224 = vmul.f32 %v223, %v217
        %v225 = vadd.f32 %v224, 1e-05
        %v226 = vrsqrt.pop %v225
        %v227 = vmul.f32 %v219, %v226
        %v228 = vld [vmem:[%s2] sm:$0x1]
        %v230 = vlaneseq
        %v231 = vshrl.u32 %v230, 7
        %v232 = vsub.s32 0, %v231
        %v233 = vrot.slane %v228, %v232
        %v235 = vmul.f32 %v227, %v233
        %v236 = vld [vmem:[%s3] sm:$0x1]
        %v238 = vlaneseq
        %v239 = vshrl.u32 %v238, 7
        %v240 = vsub.s32 0, %v239
        %v241 = vrot.slane %v236, %v240
        %v243 = vadd.f32 %v235, %v241
        %244 = vst.msk [vmem:[%s201] sm:$0xff] %vm213, %v243
        %s245 = sand.u32 %s120, 1
        %s246 = scalar_lea.sflag [#allocation3], %s245
        %s247 = sand.u32 %s120, 1
        %s248 = smul.addr %s247, 8
        %s249 = scalar_lea.vmem [#allocation2], %s248
        // Predicated region
        $region37: #{decoder_forward.43} parent=35 // pred_check
          %p250 = pneg %p130
        $region38: #{decoder_forward.43} parent=35 // pred_check_branch
          %252 = sbr.rel (%p250) target = $region40
        $region39: #{decoder_forward.43} parent=35 // pred_region
          %s254 = ssub.s32 128, 128
          %255 = vsyncadd %s246, %s254
          %s256 = smul.addr %s18, 128
          %s257 = scalar_lea.hbm %s4, %s256
          %s259 = sshll.u32 %s249, 4
          %s260 = int_to_ptr.vmem [resolvable:$true] %s259
          %262 = dma.vmem_to_hbm [thread:$0]  %s260, 128, %s257, %s246
        $region40: #{decoder_forward.43} parent=35 // pred_fallthru
          _
      $region36: #{decoder_forward.43} parent=5 // pred_fallthru
        _
      %p263 = scmp.le.s32.totalorder 2, %s13
      // Predicated region
      $region41: #{decoder_forward.43} parent=5 // pred_check
        %p264 = pneg %p263
      $region42: #{decoder_forward.43} parent=5 // pred_check_branch
        %266 = sbr.rel (%p264) target = $region44
      $region43: #{decoder_forward.43} parent=5 // pred_region
        %s267 = ssub.s32 %s13, 2
        // Predicated region
        $region45: #{decoder_forward.43} parent=43 // pred_check
          %p268 = pneg %p136
        $region46: #{decoder_forward.43} parent=43 // pred_check_branch
          %270 = sbr.rel (%p268) target = $region48
        $region47: #{decoder_forward.43} parent=43 // pred_region
          %s271 = sand.u32 %s121, 1
          %s272 = scalar_lea.sflag [#allocation3], %s271
          %s273 = sand.u32 %s121, 1
          %s274 = smul.addr %s273, 8
          %s275 = scalar_lea.vmem [#allocation2], %s274
          %276 = dma.done %s272, 128
        $region48: #{decoder_forward.43} parent=43 // pred_fallthru
          _
      $region44: #{decoder_forward.43} parent=5 // pred_fallthru
        _
    $region6: #{decoder_forward.43} parent=1 // loop_footer
      %s17 = sadd.s32 1, %s13
    $region7: #{decoder_forward.43} parent=1 // loop_footer_branch
      %12 = sbr.rel target = $region3
    $region8: #{decoder_forward.43} parent=1 // loop_exit
      _
    %277 = vsyncpa [#allocation3], 1
    %s278 = scalar_lea.sflag [#allocation3], 1
    %279 = vsyncpa %s278, 1

// kernel: decoder_forward.28
$region0: #{decoder_forward.28}
  #allocation0 [shape = 'u32[]', space=smem, size = 0x4, offset = 0x4, fixed_abs, tag = 'smem constant byte address 0x4 - core index']
  #allocation1 [shape = 'u32[144,128]{1,0:T(1,128)}', space=vmem, size = 0x12000, scoped, tag = 'internal scratch']
  %s0 = inlined_call_operand.vmem [shape: f32[2,8,32], index: 0, kind: input, shape index: {}]
  %s1 = inlined_call_operand.vmem [shape: f32[2,8,64], index: 1, kind: input, shape index: {}]
  %s2 = inlined_call_operand.vmem [shape: f32[2,1,8], index: 2, kind: input, shape index: {}]
  %s3 = inlined_call_operand.vmem [shape: f32[8,8], index: 3, kind: input, shape index: {}]
  %s4 = inlined_call_operand.vmem [shape: f32[2,8,32], index: 4, kind: output, shape index: {}]
  %s5 = sld [smem:[#allocation0]]
  $region49: #{decoder_forward.28} parent=0
    _
  %s7 = ssub.s32 1, %s5
  %s8 = scalar_select 0, %s7, %s5
  loop: start=0, step=1, limit=4
  $region2: #{decoder_forward.28} parent=0 // loop_pre_header
    _
  $region3: #{decoder_forward.28} parent=0 // loop_header
    %s10 = sphi 0, %s14
    %p11 = scmp.ge.s32.totalorder %s10, 4
    %s20 = sphi 0, %s22
    %s23 = sphi 0, %s20
    %s24 = sphi 0, %s23
    %s40 = sphi 0, %s24
    %s46 = sphi 0, %s48
    %s49 = sphi 0, %s46
    %s50 = sphi 0, %s49
    %s66 = sphi 0, %s50
    %s72 = sphi 0, %s74
    %s75 = sphi 0, %s72
    %s76 = sphi 0, %s75
    %s92 = sphi 0, %s76
    %s96 = sphi 0, %s96
    %s98 = sphi 0, %s96
    %s99 = sphi 0, %s98
    %s113 = sphi 0, %s99
    %s119 = sphi 0, %s121
    %s122 = sphi 0, %s119
    %s123 = sphi 0, %s122
    %s139 = sphi 0, %s123
  $region4: #{decoder_forward.28} parent=0 // loop_header_branch
    %13 = sbr.rel (%p11) target = $region8
  $region5: #{decoder_forward.28} parent=0 // loop_body
    %s15 = ssub.s32 %s10, 1
    %s16 = ssub.s32 %s10, 2
    %s17 = sadd.s32 %s10, 1
    %s18 = ssub.s32 %s10, %s17
    %p19 = scmp.eq.s32.totalorder %s18, 0
    %s21 = sadd.s32 %s20, 1
    %s22 = scalar_select %p19, %s20, %s21
    %p25 = pneg %p19
    %p26 = scmp.eq.s32.totalorder %s10, 1
    %p27 = por %p25, %p26
    %p28 = scmp.ne.s32.totalorder %s20, %s23
    %p29 = scmp.eq.s32.totalorder %s10, 0
    %p30 = por %p28, %p29
    %p31 = scmp.ne.s32.totalorder %s20, %s23
    %p32 = scmp.eq.s32.totalorder %s15, 1
    %p33 = por %p31, %p32
    %p34 = scmp.ne.s32.totalorder %s23, %s24
    %p35 = scmp.eq.s32.totalorder %s15, 0
    %p36 = por %p34, %p35
    %p37 = scmp.ne.s32.totalorder %s23, %s24
    %p38 = scmp.eq.s32.totalorder %s16, 1
    %p39 = por %p37, %p38
    %p41 = scmp.ne.s32.totalorder %s24, %s40
    %p42 = scmp.eq.s32.totalorder %s16, 0
    %p43 = por %p41, %p42
    %s44 = ssub.s32 %s10, %s17
    %p45 = scmp.eq.s32.totalorder %s44, 0
    %s47 = sadd.s32 %s46, 1
    %s48 = scalar_select %p45, %s46, %s47
    %p51 = pneg %p45
    %p52 = scmp.eq.s32.totalorder %s10, 1
    %p53 = por %p51, %p52
    %p54 = scmp.ne.s32.totalorder %s46, %s49
    %p55 = scmp.eq.s32.totalorder %s10, 0
    %p56 = por %p54, %p55
    %p57 = scmp.ne.s32.totalorder %s46, %s49
    %p58 = scmp.eq.s32.totalorder %s15, 1
    %p59 = por %p57, %p58
    %p60 = scmp.ne.s32.totalorder %s49, %s50
    %p61 = scmp.eq.s32.totalorder %s15, 0
    %p62 = por %p60, %p61
    %p63 = scmp.ne.s32.totalorder %s49, %s50
    %p64 = scmp.eq.s32.totalorder %s16, 1
    %p65 = por %p63, %p64
    %p67 = scmp.ne.s32.totalorder %s50, %s66
    %p68 = scmp.eq.s32.totalorder %s16, 0
    %p69 = por %p67, %p68
    %s70 = ssub.s32 %s10, %s17
    %p71 = scmp.eq.s32.totalorder %s70, 0
    %s73 = sadd.s32 %s72, 1
    %s74 = scalar_select %p71, %s72, %s73
    %p77 = pneg %p71
    %p78 = scmp.eq.s32.totalorder %s10, 1
    %p79 = por %p77, %p78
    %p80 = scmp.ne.s32.totalorder %s72, %s75
    %p81 = scmp.eq.s32.totalorder %s10, 0
    %p82 = por %p80, %p81
    %p83 = scmp.ne.s32.totalorder %s72, %s75
    %p84 = scmp.eq.s32.totalorder %s15, 1
    %p85 = por %p83, %p84
    %p86 = scmp.ne.s32.totalorder %s75, %s76
    %p87 = scmp.eq.s32.totalorder %s15, 0
    %p88 = por %p86, %p87
    %p89 = scmp.ne.s32.totalorder %s75, %s76
    %p90 = scmp.eq.s32.totalorder %s16, 1
    %p91 = por %p89, %p90
    %p93 = scmp.ne.s32.totalorder %s76, %s92
    %p94 = scmp.eq.s32.totalorder %s16, 0
    %p95 = por %p93, %p94
    %s97 = sadd.s32 %s96, 1
    %p100 = scmp.eq.s32.totalorder %s10, 1
    %p101 = scmp.ne.s32.totalorder %s96, %s98
    %p102 = scmp.eq.s32.totalorder %s10, 0
    %p103 = por %p101, %p102
    %p104 = scmp.ne.s32.totalorder %s96, %s98
    %p105 = scmp.eq.s32.totalorder %s15, 1
    %p106 = por %p104, %p105
    %p107 = scmp.ne.s32.totalorder %s98, %s99
    %p108 = scmp.eq.s32.totalorder %s15, 0
    %p109 = por %p107, %p108
    %p110 = scmp.ne.s32.totalorder %s98, %s99
    %p111 = scmp.eq.s32.totalorder %s16, 1
    %p112 = por %p110, %p111
    %p114 = scmp.ne.s32.totalorder %s99, %s113
    %p115 = scmp.eq.s32.totalorder %s16, 0
    %p116 = por %p114, %p115
    %s117 = ssub.s32 %s10, %s17
    %p118 = scmp.eq.s32.totalorder %s117, 0
    %s120 = sadd.s32 %s119, 1
    %s121 = scalar_select %p118, %s119, %s120
    %p124 = pneg %p118
    %p125 = scmp.eq.s32.totalorder %s10, 1
    %p126 = por %p124, %p125
    %p127 = scmp.ne.s32.totalorder %s119, %s122
    %p128 = scmp.eq.s32.totalorder %s10, 0
    %p129 = por %p127, %p128
    %p130 = scmp.ne.s32.totalorder %s119, %s122
    %p131 = scmp.eq.s32.totalorder %s15, 1
    %p132 = por %p130, %p131
    %p133 = scmp.ne.s32.totalorder %s122, %s123
    %p134 = scmp.eq.s32.totalorder %s15, 0
    %p135 = por %p133, %p134
    %p136 = scmp.ne.s32.totalorder %s122, %s123
    %p137 = scmp.eq.s32.totalorder %s16, 1
    %p138 = por %p136, %p137
    %p140 = scmp.ne.s32.totalorder %s123, %s139
    %p141 = scmp.eq.s32.totalorder %s16, 0
    %p142 = por %p140, %p141
    %p143 = scmp.le.s32.totalorder 1, %s10
    %p144 = scmp.lt.s32.totalorder %s10, 3
    %p145 = pnand %p143, %p144
    %p146 = pneg %p145
    // Predicated region
    $region9: #{decoder_forward.28} parent=5 // pred_check
      _
    $region10: #{decoder_forward.28} parent=5 // pred_check_branch
      %148 = sbr.rel (%p145) target = $region12
    $region11: #{decoder_forward.28} parent=5 // pred_region
      %s149 = ssub.s32 %s10, 1
      // Predicated region
      $region13: #{decoder_forward.28} parent=11 // pred_check
        %p150 = pneg %p109
      $region14: #{decoder_forward.28} parent=11 // pred_check_branch
        %152 = sbr.rel (%p150) target = $region16
      $region15: #{decoder_forward.28} parent=11 // pred_region
        _
      $region16: #{decoder_forward.28} parent=11 // pred_fallthru
        _
    $region12: #{decoder_forward.28} parent=5 // pred_fallthru
      _
    %p153 = scmp.lt.s32.totalorder %s10, 2
    // Predicated region
    $region17: #{decoder_forward.28} parent=5 // pred_check
      %p154 = pneg %p153
    $region18: #{decoder_forward.28} parent=5 // pred_check_branch
      %156 = sbr.rel (%p154) target = $region20
    $region19: #{decoder_forward.28} parent=5 // pred_region
      // Predicated region
      $region21: #{decoder_forward.28} parent=19 // pred_check
        %p157 = pneg %p30
      $region22: #{decoder_forward.28} parent=19 // pred_check_branch
        %159 = sbr.rel (%p157) target = $region24
      $region23: #{decoder_forward.28} parent=19 // pred_region
        %p160 = scmp.lt.s32.totalorder %s10, 1
        %s161 = scalar_select %p160, %s10, 1
        %s162 = smul.addr %s161, 8
        %s163 = scalar_lea.vmem %s0, %s162
      $region24: #{decoder_forward.28} parent=19 // pred_fallthru
        _
      // Predicated region
      $region25: #{decoder_forward.28} parent=19 // pred_check
        %p164 = pneg %p56
      $region26: #{decoder_forward.28} parent=19 // pred_check_branch
        %166 = sbr.rel (%p164) target = $region28
      $region27: #{decoder_forward.28} parent=19 // pred_region
        %p167 = scmp.lt.s32.totalorder %s10, 1
        %s168 = scalar_select %p167, %s10, 1
        %s169 = smul.addr %s168, 8
        %s170 = scalar_lea.vmem %s1, %s169
      $region28: #{decoder_forward.28} parent=19 // pred_fallthru
        _
      // Predicated region
      $region29: #{decoder_forward.28} parent=19 // pred_check
        %p171 = pneg %p82
      $region30: #{decoder_forward.28} parent=19 // pred_check_branch
        %173 = sbr.rel (%p171) target = $region32
      $region31: #{decoder_forward.28} parent=19 // pred_region
        %p174 = scmp.lt.s32.totalorder %s10, 1
        %s175 = scalar_select %p174, %s10, 1
        %s176 = scalar_lea.vmem %s2, %s175
      $region32: #{decoder_forward.28} parent=19 // pred_fallthru
        _
    $region20: #{decoder_forward.28} parent=5 // pred_fallthru
      _
    %p177 = scmp.le.s32.totalorder 1, %s10
    %p178 = scmp.lt.s32.totalorder %s10, 3
    %p179 = pnand %p177, %p178
    %p180 = pneg %p179
    // Predicated region
    $region33: #{decoder_forward.28} parent=5 // pred_check
      _
    $region34: #{decoder_forward.28} parent=5 // pred_check_branch
      %182 = sbr.rel (%p179) target = $region36
    $region35: #{decoder_forward.28} parent=5 // pred_region
      %s183 = ssub.s32 %s10, 1
      %p184 = scmp.lt.s32.totalorder %s15, 1
      %s185 = scalar_select %p184, %s15, 1
      %s186 = smul.addr %s185, 8
      %s187 = scalar_lea.vmem %s0, %s186
      %p188 = pneg %p36
      %p189 = pneg %p33
      %p190 = scmp.lt.s32.totalorder %s15, 1
      %s191 = scalar_select %p190, %s15, 1
      %s192 = smul.addr %s191, 8
      %s193 = scalar_lea.vmem %s1, %s192
      %p194 = pneg %p62
      %p195 = pneg %p59
      %p196 = scmp.lt.s32.totalorder %s15, 1
      %s197 = scalar_select %p196, %s15, 1
      %s198 = scalar_lea.vmem %s2, %s197
      %p199 = pneg %p88
      %p200 = pneg %p85
      %p201 = pneg %p109
      %p202 = pneg %p106
      %p203 = pneg %p135
      %p204 = pneg %p132
      %p205 = scmp.lt.s32.totalorder %s15, 1
      %s206 = scalar_select %p205, %s15, 1
      %s207 = smul.addr %s206, 8
      %s208 = scalar_lea.vmem %s4, %s207
      %p209 = scmp.lt.s32.totalorder %s15, 1
      %s210 = scalar_select %p209, %s15, 1
      %s211 = smul.addr %s210, 8
      %s212 = scalar_lea.vmem %s0, %s211
      %p213 = scmp.lt.s32.totalorder %s15, 1
      %s214 = scalar_select %p213, %s15, 1
      %s215 = smul.addr %s214, 8
      %s216 = scalar_lea.vmem %s1, %s215
      %p217 = scmp.lt.s32.totalorder %s15, 1
      %s218 = scalar_select %p217, %s15, 1
      %s219 = scalar_lea.vmem %s2, %s218
      %p220 = scmp.lt.s32.totalorder %s15, 1
      %s221 = scalar_select %p220, %s15, 1
      %s222 = smul.addr %s221, 8
      %s223 = scalar_lea.vmem %s4, %s222
      %v224 = vld [vmem:[%s212] sm:$0xff]
      %v225 = vld [vmem:[%s216] sm:$0xff]
      %v226 = vld [vmem:[%s219] sm:$0x1]
      %v227 = vld [vmem:[%s3] sm:$0xff]
      %v229 = vlaneseq
      %v230 = vshrl.u32 %v229, 7
      %v231 = vsub.s32 0, %v230
      %v232 = vrot.slane %v226, %v231
      %v234 = vadd.f32 %v232, %v227
      %vm235 = vcmp.gt.f32.partialorder %v234, 0.5
      %v236 = vsel %vm235, -1e+09, 0.0
      %vm237 = vcmask 64512
      %v239 = vsel %vm237, %v224, 0
      %v242 = vsel %vm237, %v225, 0
      %244 = vmatprep.subr.mxu0 0.0
      %245 = vmatpush1.xpose.msra.mxu0 %v242
      %246 = vmatprep.subr.mxu0 0.0
      %247 = vmatpush1.xpose.msra.mxu0 0.0
      %248 = vmatprep.subr.mxu0 0.0
      %249 = vmatpush1.xpose.msra.mxu0 0.0
      %250 = vmatprep.subr.mxu0 0.0
      %251 = vmatpush1.xpose.msra.mxu0 0.0
      %252 = vmatprep.subr.mxu0 0.0
      %253 = vmatpush1.xpose.msra.mxu0 0.0
      %254 = vmatprep.subr.mxu0 0.0
      %255 = vmatpush1.xpose.msra.mxu0 0.0
      %256 = vmatprep.subr.mxu0 0.0
      %257 = vmatpush1.xpose.msra.mxu0 0.0
      %258 = vmatprep.subr.mxu0 0.0
      %259 = vmatpush1.xpose.msra.mxu0 0.0
      %260 = vmatprep.subr.mxu0 0.0
      %261 = vmatpush1.xpose.msra.mxu0 0.0
      %262 = vmatprep.subr.mxu0 0.0
      %263 = vmatpush1.xpose.msra.mxu0 0.0
      %264 = vmatprep.subr.mxu0 0.0
      %265 = vmatpush1.xpose.msra.mxu0 0.0
      %266 = vmatprep.subr.mxu0 0.0
      %267 = vmatpush1.xpose.msra.mxu0 0.0
      %268 = vmatprep.subr.mxu0 0.0
      %269 = vmatpush1.xpose.msra.mxu0 0.0
      %270 = vmatprep.subr.mxu0 0.0
      %271 = vmatpush1.xpose.msra.mxu0 0.0
      %272 = vmatprep.subr.mxu0 0.0
      %273 = vmatpush1.xpose.msra.mxu0 0.0
      %274 = vmatprep.subr.mxu0 0.0
      %275 = vmatpush1.xpose.msra.mxu0 0.0
      %276 = vmatprep.subr.mxu0 0.0
      %277 = vmatpush1.xpose.msra.mxu0 0.0
      %278 = vmatprep.subr.mxu0 0.0
      %279 = vmatpush1.xpose.msra.mxu0 0.0
      %280 = vmatprep.subr.mxu0 0.0
      %281 = vmatpush1.xpose.msra.mxu0 0.0
      %282 = vmatprep.subr.mxu0 0.0
      %283 = vmatpush1.xpose.msra.mxu0 0.0
      %284 = vmatprep.subr.mxu0 0.0
      %285 = vmatpush1.xpose.msra.mxu0 0.0
      %286 = vmatprep.subr.mxu0 0.0
      %287 = vmatpush1.xpose.msra.mxu0 0.0
      %288 = vmatprep.subr.mxu0 0.0
      %289 = vmatpush1.xpose.msra.mxu0 0.0
      %290 = vmatprep.subr.mxu0 0.0
      %291 = vmatpush1.xpose.msra.mxu0 0.0
      %292 = vmatprep.subr.mxu0 0.0
      %293 = vmatpush1.xpose.msra.mxu0 0.0
      %294 = vmatprep.subr.mxu0 0.0
      %295 = vmatpush1.xpose.msra.mxu0 0.0
      %296 = vmatprep.subr.mxu0 0.0
      %297 = vmatpush1.xpose.msra.mxu0 0.0
      %298 = vmatprep.subr.mxu0 0.0
      %299 = vmatpush1.xpose.msra.mxu0 0.0
      %300 = vmatprep.subr.mxu0 0.0
      %301 = vmatpush1.xpose.msra.mxu0 0.0
      %302 = vmatprep.subr.mxu0 0.0
      %303 = vmatpush1.xpose.msra.mxu0 0.0
      %304 = vmatprep.subr.mxu0 0.0
      %305 = vmatpush1.xpose.msra.mxu0 0.0
      %306 = vmatprep.subr.mxu0 0.0
      %307 = vmatpush1.xpose.msra.mxu0 0.0
      %308 = vmatprep.mubr.f32.mxu0 0.0
      %309 = vmatmul.mubr.f32.gmra.mrb[0].mxu0 %v239
      %v310 = vpop.f32.mrb[0].mxu0
      %v311 = vadd.f32 0.0, %v310
      %v312 = vpop.f32.mrb[0].mxu0
      %313 = vdwg.mxu0
      %v314 = vmul.f32 %v311, 0.35355338
      %v315 = vadd.f32 %v314, %v236
      %v316 = vsel %vm237, %v315, -inf
      %317 = vmax.xlane.f32.xlu0 %v316
      %v318 = vpop.xlane.xlu0 %317
      %v319 = vsub.f32 %v315, %v318
      %v320 = vmul.f32 %v319, 1.442695
      %v321 = vpow.pop %v320
      %v322 = vsel %vm237, %v321, 0.0
      %323 = vadd.xlane.f32.xlu0 %v322
      %v324 = vpop.xlane.xlu0 %323
      %v325 = vrcp.pop %v324
      %v326 = vmul.f32 %v321, %v325
      %327 = vrot.lane.b32.xlu0 %v225, 96
      %v328 = vpop.permute.xlu0 %327
      %v331 = vsel %vm237, %v326, 0
      %333 = vmatprep.subr.mxu0 0.0
      %334 = vmatpush1.msra.mxu0 %v328
      %335 = vmatprep.subr.mxu0 0.0
      %336 = vmatpush1.msra.mxu0 0.0
      %337 = vmatprep.subr.mxu0 0.0
      %338 = vmatpush1.msra.mxu0 0.0
      %339 = vmatprep.subr.mxu0 0.0
      %340 = vmatpush1.msra.mxu0 0.0
      %341 = vmatprep.subr.mxu0 0.0
      %342 = vmatpush1.msra.mxu0 0.0
      %343 = vmatprep.subr.mxu0 0.0
      %344 = vmatpush1.msra.mxu0 0.0
      %345 = vmatprep.subr.mxu0 0.0
      %346 = vmatpush1.msra.mxu0 0.0
      %347 = vmatprep.subr.mxu0 0.0
      %348 = vmatpush1.msra.mxu0 0.0
      %349 = vmatprep.subr.mxu0 0.0
      %350 = vmatpush1.msra.mxu0 0.0
      %351 = vmatprep.subr.mxu0 0.0
      %352 = vmatpush1.msra.mxu0 0.0
      %353 = vmatprep.subr.mxu0 0.0
      %354 = vmatpush1.msra.mxu0 0.0
      %355 = vmatprep.subr.mxu0 0.0
      %356 = vmatpush1.msra.mxu0 0.0
      %357 = vmatprep.subr.mxu0 0.0
      %358 = vmatpush1.msra.mxu0 0.0
      %359 = vmatprep.subr.mxu0 0.0
      %360 = vmatpush1.msra.mxu0 0.0
      %361 = vmatprep.subr.mxu0 0.0
      %362 = vmatpush1.msra.mxu0 0.0
      %363 = vmatprep.subr.mxu0 0.0
      %364 = vmatpush1.msra.mxu0 0.0
      %365 = vmatprep.subr.mxu0 0.0
      %366 = vmatpush1.msra.mxu0 0.0
      %367 = vmatprep.subr.mxu0 0.0
      %368 = vmatpush1.msra.mxu0 0.0
      %369 = vmatprep.subr.mxu0 0.0
      %370 = vmatpush1.msra.mxu0 0.0
      %371 = vmatprep.subr.mxu0 0.0
      %372 = vmatpush1.msra.mxu0 0.0
      %373 = vmatprep.subr.mxu0 0.0
      %374 = vmatpush1.msra.mxu0 0.0
      %375 = vmatprep.subr.mxu0 0.0
      %376 = vmatpush1.msra.mxu0 0.0
      %377 = vmatprep.subr.mxu0 0.0
      %378 = vmatpush1.msra.mxu0 0.0
      %379 = vmatprep.subr.mxu0 0.0
      %380 = vmatpush1.msra.mxu0 0.0
      %381 = vmatprep.subr.mxu0 0.0
      %382 = vmatpush1.msra.mxu0 0.0
      %383 = vmatprep.subr.mxu0 0.0
      %384 = vmatpush1.msra.mxu0 0.0
      %385 = vmatprep.subr.mxu0 0.0
      %386 = vmatpush1.msra.mxu0 0.0
      %387 = vmatprep.subr.mxu0 0.0
      %388 = vmatpush1.msra.mxu0 0.0
      %389 = vmatprep.subr.mxu0 0.0
      %390 = vmatpush1.msra.mxu0 0.0
      %391 = vmatprep.subr.mxu0 0.0
      %392 = vmatpush1.msra.mxu0 0.0
      %393 = vmatprep.subr.mxu0 0.0
      %394 = vmatpush1.msra.mxu0 0.0
      %395 = vmatprep.subr.mxu0 0.0
      %396 = vmatpush1.msra.mxu0 0.0
      %397 = vmatprep.mubr.f32.mxu0 0.0
      %398 = vmatmul.mubr.f32.gmra.mrb[0].mxu0 %v331
      %v399 = vpop.f32.mrb[0].mxu0
      %v400 = vadd.f32 0.0, %v399
      %v401 = vpop.f32.mrb[0].mxu0
      %402 = vdwg.mxu0
      %403 = vrot.lane.b32.xlu0 %v224, 120
      %v404 = vpop.permute.xlu0 %403
      %405 = vrot.lane.b32.xlu0 %v225, 120
      %v406 = vpop.permute.xlu0 %405
      %v407 = vsel %vm237, %v404, 0
      %v409 = vsel %vm237, %v406, 0
      %411 = vmatprep.subr.mxu0 0.0
      %412 = vmatpush1.xpose.msra.mxu0 %v409
      %413 = vmatprep.subr.mxu0 0.0
      %414 = vmatpush1.xpose.msra.mxu0 0.0
      %415 = vmatprep.subr.mxu0 0.0
      %416 = vmatpush1.xpose.msra.mxu0 0.0
      %417 = vmatprep.subr.mxu0 0.0
      %418 = vmatpush1.xpose.msra.mxu0 0.0
      %419 = vmatprep.subr.mxu0 0.0
      %420 = vmatpush1.xpose.msra.mxu0 0.0
      %421 = vmatprep.subr.mxu0 0.0
      %422 = vmatpush1.xpose.msra.mxu0 0.0
      %423 = vmatprep.subr.mxu0 0.0
      %424 = vmatpush1.xpose.msra.mxu0 0.0
      %425 = vmatprep.subr.mxu0 0.0
      %426 = vmatpush1.xpose.msra.mxu0 0.0
      %427 = vmatprep.subr.mxu0 0.0
      %428 = vmatpush1.xpose.msra.mxu0 0.0
      %429 = vmatprep.subr.mxu0 0.0
      %430 = vmatpush1.xpose.msra.mxu0 0.0
      %431 = vmatprep.subr.mxu0 0.0
      %432 = vmatpush1.xpose.msra.mxu0 0.0
      %433 = vmatprep.subr.mxu0 0.0
      %434 = vmatpush1.xpose.msra.mxu0 0.0
      %435 = vmatprep.subr.mxu0 0.0
      %436 = vmatpush1.xpose.msra.mxu0 0.0
      %437 = vmatprep.subr.mxu0 0.0
      %438 = vmatpush1.xpose.msra.mxu0 0.0
      %439 = vmatprep.subr.mxu0 0.0
      %440 = vmatpush1.xpose.msra.mxu0 0.0
      %441 = vmatprep.subr.mxu0 0.0
      %442 = vmatpush1.xpose.msra.mxu0 0.0
      %443 = vmatprep.subr.mxu0 0.0
      %444 = vmatpush1.xpose.msra.mxu0 0.0
      %445 = vmatprep.subr.mxu0 0.0
      %446 = vmatpush1.xpose.msra.mxu0 0.0
      %447 = vmatprep.subr.mxu0 0.0
      %448 = vmatpush1.xpose.msra.mxu0 0.0
      %449 = vmatprep.subr.mxu0 0.0
      %450 = vmatpush1.xpose.msra.mxu0 0.0
      %451 = vmatprep.subr.mxu0 0.0
      %452 = vmatpush1.xpose.msra.mxu0 0.0
      %453 = vmatprep.subr.mxu0 0.0
      %454 = vmatpush1.xpose.msra.mxu0 0.0
      %455 = vmatprep.subr.mxu0 0.0
      %456 = vmatpush1.xpose.msra.mxu0 0.0
      %457 = vmatprep.subr.mxu0 0.0
      %458 = vmatpush1.xpose.msra.mxu0 0.0
      %459 = vmatprep.subr.mxu0 0.0
      %460 = vmatpush1.xpose.msra.mxu0 0.0
      %461 = vmatprep.subr.mxu0 0.0
      %462 = vmatpush1.xpose.msra.mxu0 0.0
      %463 = vmatprep.subr.mxu0 0.0
      %464 = vmatpush1.xpose.msra.mxu0 0.0
      %465 = vmatprep.subr.mxu0 0.0
      %466 = vmatpush1.xpose.msra.mxu0 0.0
      %467 = vmatprep.subr.mxu0 0.0
      %468 = vmatpush1.xpose.msra.mxu0 0.0
      %469 = vmatprep.subr.mxu0 0.0
      %470 = vmatpush1.xpose.msra.mxu0 0.0
      %471 = vmatprep.subr.mxu0 0.0
      %472 = vmatpush1.xpose.msra.mxu0 0.0
      %473 = vmatprep.subr.mxu0 0.0
      %474 = vmatpush1.xpose.msra.mxu0 0.0
      %475 = vmatprep.mubr.f32.mxu0 0.0
      %476 = vmatmul.mubr.f32.gmra.mrb[0].mxu0 %v407
      %v477 = vpop.f32.mrb[0].mxu0
      %v478 = vadd.f32 0.0, %v477
      %v479 = vpop.f32.mrb[0].mxu0
      %480 = vdwg.mxu0
      %v481 = vmul.f32 %v478, 0.35355338
      %v482 = vadd.f32 %v481, %v236
      %v483 = vsel %vm237, %v482, -inf
      %484 = vmax.xlane.f32.xlu0 %v483
      %v485 = vpop.xlane.xlu0 %484
      %v486 = vsub.f32 %v482, %v485
      %v487 = vmul.f32 %v486, 1.442695
      %v488 = vpow.pop %v487
      %v489 = vsel %vm237, %v488, 0.0
      %490 = vadd.xlane.f32.xlu0 %v489
      %v491 = vpop.xlane.xlu0 %490
      %v492 = vrcp.pop %v491
      %v493 = vmul.f32 %v488, %v492
      %494 = vrot.lane.b32.xlu0 %v225, 88
      %v495 = vpop.permute.xlu0 %494
      %v498 = vsel %vm237, %v493, 0
      %500 = vmatprep.subr.mxu0 0.0
      %501 = vmatpush1.msra.mxu0 %v495
      %502 = vmatprep.subr.mxu0 0.0
      %503 = vmatpush1.msra.mxu0 0.0
      %504 = vmatprep.subr.mxu0 0.0
      %505 = vmatpush1.msra.mxu0 0.0
      %506 = vmatprep.subr.mxu0 0.0
      %507 = vmatpush1.msra.mxu0 0.0
      %508 = vmatprep.subr.mxu0 0.0
      %509 = vmatpush1.msra.mxu0 0.0
      %510 = vmatprep.subr.mxu0 0.0
      %511 = vmatpush1.msra.mxu0 0.0
      %512 = vmatprep.subr.mxu0 0.0
      %513 = vmatpush1.msra.mxu0 0.0
      %514 = vmatprep.subr.mxu0 0.0
      %515 = vmatpush1.msra.mxu0 0.0
      %516 = vmatprep.subr.mxu0 0.0
      %517 = vmatpush1.msra.mxu0 0.0
      %518 = vmatprep.subr.mxu0 0.0
      %519 = vmatpush1.msra.mxu0 0.0
      %520 = vmatprep.subr.mxu0 0.0
      %521 = vmatpush1.msra.mxu0 0.0
      %522 = vmatprep.subr.mxu0 0.0
      %523 = vmatpush1.msra.mxu0 0.0
      %524 = vmatprep.subr.mxu0 0.0
      %525 = vmatpush1.msra.mxu0 0.0
      %526 = vmatprep.subr.mxu0 0.0
      %527 = vmatpush1.msra.mxu0 0.0
      %528 = vmatprep.subr.mxu0 0.0
      %529 = vmatpush1.msra.mxu0 0.0
      %530 = vmatprep.subr.mxu0 0.0
      %531 = vmatpush1.msra.mxu0 0.0
      %532 = vmatprep.subr.mxu0 0.0
      %533 = vmatpush1.msra.mxu0 0.0
      %534 = vmatprep.subr.mxu0 0.0
      %535 = vmatpush1.msra.mxu0 0.0
      %536 = vmatprep.subr.mxu0 0.0
      %537 = vmatpush1.msra.mxu0 0.0
      %538 = vmatprep.subr.mxu0 0.0
      %539 = vmatpush1.msra.mxu0 0.0
      %540 = vmatprep.subr.mxu0 0.0
      %541 = vmatpush1.msra.mxu0 0.0
      %542 = vmatprep.subr.mxu0 0.0
      %543 = vmatpush1.msra.mxu0 0.0
      %544 = vmatprep.subr.mxu0 0.0
      %545 = vmatpush1.msra.mxu0 0.0
      %546 = vmatprep.subr.mxu0 0.0
      %547 = vmatpush1.msra.mxu0 0.0
      %548 = vmatprep.subr.mxu0 0.0
      %549 = vmatpush1.msra.mxu0 0.0
      %550 = vmatprep.subr.mxu0 0.0
      %551 = vmatpush1.msra.mxu0 0.0
      %552 = vmatprep.subr.mxu0 0.0
      %553 = vmatpush1.msra.mxu0 0.0
      %554 = vmatprep.subr.mxu0 0.0
      %555 = vmatpush1.msra.mxu0 0.0
      %556 = vmatprep.subr.mxu0 0.0
      %557 = vmatpush1.msra.mxu0 0.0
      %558 = vmatprep.subr.mxu0 0.0
      %559 = vmatpush1.msra.mxu0 0.0
      %560 = vmatprep.subr.mxu0 0.0
      %561 = vmatpush1.msra.mxu0 0.0
      %562 = vmatprep.subr.mxu0 0.0
      %563 = vmatpush1.msra.mxu0 0.0
      %564 = vmatprep.mubr.f32.mxu0 0.0
      %565 = vmatmul.mubr.f32.gmra.mrb[0].mxu0 %v498
      %v566 = vpop.f32.mrb[0].mxu0
      %v567 = vadd.f32 0.0, %v566
      %v568 = vpop.f32.mrb[0].mxu0
      %569 = vdwg.mxu0
      %570 = vrot.lane.b32.xlu0 %v224, 112
      %v571 = vpop.permute.xlu0 %570
      %572 = vrot.lane.b32.xlu0 %v225, 112
      %v573 = vpop.permute.xlu0 %572
      %v574 = vsel %vm237, %v571, 0
      %v576 = vsel %vm237, %v573, 0
      %578 = vmatprep.subr.mxu0 0.0
      %579 = vmatpush1.xpose.msra.mxu0 %v576
      %580 = vmatprep.subr.mxu0 0.0
      %581 = vmatpush1.xpose.msra.mxu0 0.0
      %582 = vmatprep.subr.mxu0 0.0
      %583 = vmatpush1.xpose.msra.mxu0 0.0
      %584 = vmatprep.subr.mxu0 0.0
      %585 = vmatpush1.xpose.msra.mxu0 0.0
      %586 = vmatprep.subr.mxu0 0.0
      %587 = vmatpush1.xpose.msra.mxu0 0.0
      %588 = vmatprep.subr.mxu0 0.0
      %589 = vmatpush1.xpose.msra.mxu0 0.0
      %590 = vmatprep.subr.mxu0 0.0
      %591 = vmatpush1.xpose.msra.mxu0 0.0
      %592 = vmatprep.subr.mxu0 0.0
      %593 = vmatpush1.xpose.msra.mxu0 0.0
      %594 = vmatprep.subr.mxu0 0.0
      %595 = vmatpush1.xpose.msra.mxu0 0.0
      %596 = vmatprep.subr.mxu0 0.0
      %597 = vmatpush1.xpose.msra.mxu0 0.0
      %598 = vmatprep.subr.mxu0 0.0
      %599 = vmatpush1.xpose.msra.mxu0 0.0
      %600 = vmatprep.subr.mxu0 0.0
      %601 = vmatpush1.xpose.msra.mxu0 0.0
      %602 = vmatprep.subr.mxu0 0.0
      %603 = vmatpush1.xpose.msra.mxu0 0.0
      %604 = vmatprep.subr.mxu0 0.0
      %605 = vmatpush1.xpose.msra.mxu0 0.0
      %606 = vmatprep.subr.mxu0 0.0
      %607 = vmatpush1.xpose.msra.mxu0 0.0
      %608 = vmatprep.subr.mxu0 0.0
      %609 = vmatpush1.xpose.msra.mxu0 0.0
      %610 = vmatprep.subr.mxu0 0.0
      %611 = vmatpush1.xpose.msra.mxu0 0.0
      %612 = vmatprep.subr.mxu0 0.0
      %613 = vmatpush1.xpose.msra.mxu0 0.0
      %614 = vmatprep.subr.mxu0 0.0
      %615 = vmatpush1.xpose.msra.mxu0 0.0
      %616 = vmatprep.subr.mxu0 0.0
      %617 = vmatpush1.xpose.msra.mxu0 0.0
      %618 = vmatprep.subr.mxu0 0.0
      %619 = vmatpush1.xpose.msra.mxu0 0.0
      %620 = vmatprep.subr.mxu0 0.0
      %621 = vmatpush1.xpose.msra.mxu0 0.0
      %622 = vmatprep.subr.mxu0 0.0
      %623 = vmatpush1.xpose.msra.mxu0 0.0
      %624 = vmatprep.subr.mxu0 0.0
      %625 = vmatpush1.xpose.msra.mxu0 0.0
      %626 = vmatprep.subr.mxu0 0.0
      %627 = vmatpush1.xpose.msra.mxu0 0.0
      %628 = vmatprep.subr.mxu0 0.0
      %629 = vmatpush1.xpose.msra.mxu0 0.0
      %630 = vmatprep.subr.mxu0 0.0
      %631 = vmatpush1.xpose.msra.mxu0 0.0
      %632 = vmatprep.subr.mxu0 0.0
      %633 = vmatpush1.xpose.msra.mxu0 0.0
      %634 = vmatprep.subr.mxu0 0.0
      %635 = vmatpush1.xpose.msra.mxu0 0.0
      %636 = vmatprep.subr.mxu0 0.0
      %637 = vmatpush1.xpose.msra.mxu0 0.0
      %638 = vmatprep.subr.mxu0 0.0
      %639 = vmatpush1.xpose.msra.mxu0 0.0
      %640 = vmatprep.subr.mxu0 0.0
      %641 = vmatpush1.xpose.msra.mxu0 0.0
      %642 = vmatprep.mubr.f32.mxu0 0.0
      %643 = vmatmul.mubr.f32.gmra.mrb[0].mxu0 %v574
      %v644 = vpop.f32.mrb[0].mxu0
      %v645 = vadd.f32 0.0, %v644
      %v646 = vpop.f32.mrb[0].mxu0
      %647 = vdwg.mxu0
      %v648 = vmul.f32 %v645, 0.35355338
      %v649 = vadd.f32 %v648, %v236
      %v650 = vsel %vm237, %v649, -inf
      %651 = vmax.xlane.f32.xlu0 %v650
      %v652 = vpop.xlane.xlu0 %651
      %v653 = vsub.f32 %v649, %v652
      %v654 = vmul.f32 %v653, 1.442695
      %v655 = vpow.pop %v654
      %v656 = vsel %vm237, %v655, 0.0
      %657 = vadd.xlane.f32.xlu0 %v656
      %v658 = vpop.xlane.xlu0 %657
      %v659 = vrcp.pop %v658
      %v660 = vmul.f32 %v655, %v659
      %661 = vrot.lane.b32.xlu0 %v225, 80
      %v662 = vpop.permute.xlu0 %661
      %v665 = vsel %vm237, %v660, 0
      %667 = vmatprep.subr.mxu0 0.0
      %668 = vmatpush1.msra.mxu0 %v662
      %669 = vmatprep.subr.mxu0 0.0
      %670 = vmatpush1.msra.mxu0 0.0
      %671 = vmatprep.subr.mxu0 0.0
      %672 = vmatpush1.msra.mxu0 0.0
      %673 = vmatprep.subr.mxu0 0.0
      %674 = vmatpush1.msra.mxu0 0.0
      %675 = vmatprep.subr.mxu0 0.0
      %676 = vmatpush1.msra.mxu0 0.0
      %677 = vmatprep.subr.mxu0 0.0
      %678 = vmatpush1.msra.mxu0 0.0
      %679 = vmatprep.subr.mxu0 0.0
      %680 = vmatpush1.msra.mxu0 0.0
      %681 = vmatprep.subr.mxu0 0.0
      %682 = vmatpush1.msra.mxu0 0.0
      %683 = vmatprep.subr.mxu0 0.0
      %684 = vmatpush1.msra.mxu0 0.0
      %685 = vmatprep.subr.mxu0 0.0
      %686 = vmatpush1.msra.mxu0 0.0
      %687 = vmatprep.subr.mxu0 0.0
      %688 = vmatpush1.msra.mxu0 0.0
      %689 = vmatprep.subr.mxu0 0.0
      %690 = vmatpush1.msra.mxu0 0.0
      %691 = vmatprep.subr.mxu0 0.0
      %692 = vmatpush1.msra.mxu0 0.0
      %693 = vmatprep.subr.mxu0 0.0
      %694 = vmatpush1.msra.mxu0 0.0
      %695 = vmatprep.subr.mxu0 0.0
      %696 = vmatpush1.msra.mxu0 0.0
      %697 = vmatprep.subr.mxu0 0.0
      %698 = vmatpush1.msra.mxu0 0.0
      %699 = vmatprep.subr.mxu0 0.0
      %700 = vmatpush1.msra.mxu0 0.0
      %701 = vmatprep.subr.mxu0 0.0
      %702 = vmatpush1.msra.mxu0 0.0
      %703 = vmatprep.subr.mxu0 0.0
      %704 = vmatpush1.msra.mxu0 0.0
      %705 = vmatprep.subr.mxu0 0.0
      %706 = vmatpush1.msra.mxu0 0.0
      %707 = vmatprep.subr.mxu0 0.0
      %708 = vmatpush1.msra.mxu0 0.0
      %709 = vmatprep.subr.mxu0 0.0
      %710 = vmatpush1.msra.mxu0 0.0
      %711 = vmatprep.subr.mxu0 0.0
      %712 = vmatpush1.msra.mxu0 0.0
      %713 = vmatprep.subr.mxu0 0.0
      %714 = vmatpush1.msra.mxu0 0.0
      %715 = vmatprep.subr.mxu0 0.0
      %716 = vmatpush1.msra.mxu0 0.0
      %717 = vmatprep.subr.mxu0 0.0
      %718 = vmatpush1.msra.mxu0 0.0
      %719 = vmatprep.subr.mxu0 0.0
      %720 = vmatpush1.msra.mxu0 0.0
      %721 = vmatprep.subr.mxu0 0.0
      %722 = vmatpush1.msra.mxu0 0.0
      %723 = vmatprep.subr.mxu0 0.0
      %724 = vmatpush1.msra.mxu0 0.0
      %725 = vmatprep.subr.mxu0 0.0
      %726 = vmatpush1.msra.mxu0 0.0
      %727 = vmatprep.subr.mxu0 0.0
      %728 = vmatpush1.msra.mxu0 0.0
      %729 = vmatprep.subr.mxu0 0.0
      %730 = vmatpush1.msra.mxu0 0.0
      %731 = vmatprep.mubr.f32.mxu0 0.0
      %732 = vmatmul.mubr.f32.gmra.mrb[0].mxu0 %v665
      %v733 = vpop.f32.mrb[0].mxu0
      %v734 = vadd.f32 0.0, %v733
      %v735 = vpop.f32.mrb[0].mxu0
      %736 = vdwg.mxu0
      %737 = vrot.lane.b32.xlu0 %v224, 104
      %v738 = vpop.permute.xlu0 %737
      %739 = vrot.lane.b32.xlu0 %v225, 104
      %v740 = vpop.permute.xlu0 %739
      %v741 = vsel %vm237, %v738, 0
      %v743 = vsel %vm237, %v740, 0
      %745 = vmatprep.subr.mxu0 0.0
      %746 = vmatpush1.xpose.msra.mxu0 %v743
      %747 = vmatprep.subr.mxu0 0.0
      %748 = vmatpush1.xpose.msra.mxu0 0.0
      %749 = vmatprep.subr.mxu0 0.0
      %750 = vmatpush1.xpose.msra.mxu0 0.0
      %751 = vmatprep.subr.mxu0 0.0
      %752 = vmatpush1.xpose.msra.mxu0 0.0
      %753 = vmatprep.subr.mxu0 0.0
      %754 = vmatpush1.xpose.msra.mxu0 0.0
      %755 = vmatprep.subr.mxu0 0.0
      %756 = vmatpush1.xpose.msra.mxu0 0.0
      %757 = vmatprep.subr.mxu0 0.0
      %758 = vmatpush1.xpose.msra.mxu0 0.0
      %759 = vmatprep.subr.mxu0 0.0
      %760 = vmatpush1.xpose.msra.mxu0 0.0
      %761 = vmatprep.subr.mxu0 0.0
      %762 = vmatpush1.xpose.msra.mxu0 0.0
      %763 = vmatprep.subr.mxu0 0.0
      %764 = vmatpush1.xpose.msra.mxu0 0.0
      %765 = vmatprep.subr.mxu0 0.0
      %766 = vmatpush1.xpose.msra.mxu0 0.0
      %767 = vmatprep.subr.mxu0 0.0
      %768 = vmatpush1.xpose.msra.mxu0 0.0
      %769 = vmatprep.subr.mxu0 0.0
      %770 = vmatpush1.xpose.msra.mxu0 0.0
      %771 = vmatprep.subr.mxu0 0.0
      %772 = vmatpush1.xpose.msra.mxu0 0.0
      %773 = vmatprep.subr.mxu0 0.0
      %774 = vmatpush1.xpose.msra.mxu0 0.0
      %775 = vmatprep.subr.mxu0 0.0
      %776 = vmatpush1.xpose.msra.mxu0 0.0
      %777 = vmatprep.subr.mxu0 0.0
      %778 = vmatpush1.xpose.msra.mxu0 0.0
      %779 = vmatprep.subr.mxu0 0.0
      %780 = vmatpush1.xpose.msra.mxu0 0.0
      %781 = vmatprep.subr.mxu0 0.0
      %782 = vmatpush1.xpose.msra.mxu0 0.0
      %783 = vmatprep.subr.mxu0 0.0
      %784 = vmatpush1.xpose.msra.mxu0 0.0
      %785 = vmatprep.subr.mxu0 0.0
      %786 = vmatpush1.xpose.msra.mxu0 0.0
      %787 = vmatprep.subr.mxu0 0.0
      %788 = vmatpush1.xpose.msra.mxu0 0.0
      %789 = vmatprep.subr.mxu0 0.0
      %790 = vmatpush1.xpose.msra.mxu0 0.0
      %791 = vmatprep.subr.mxu0 0.0
      %792 = vmatpush1.xpose.msra.mxu0 0.0
      %793 = vmatprep.subr.mxu0 0.0
      %794 = vmatpush1.xpose.msra.mxu0 0.0
      %795 = vmatprep.subr.mxu0 0.0
      %796 = vmatpush1.xpose.msra.mxu0 0.0
      %797 = vmatprep.subr.mxu0 0.0
      %798 = vmatpush1.xpose.msra.mxu0 0.0
      %799 = vmatprep.subr.mxu0 0.0
      %800 = vmatpush1.xpose.msra.mxu0 0.0
      %801 = vmatprep.subr.mxu0 0.0
      %802 = vmatpush1.xpose.msra.mxu0 0.0
      %803 = vmatprep.subr.mxu0 0.0
      %804 = vmatpush1.xpose.msra.mxu0 0.0
      %805 = vmatprep.subr.mxu0 0.0
      %806 = vmatpush1.xpose.msra.mxu0 0.0
      %807 = vmatprep.subr.mxu0 0.0
      %808 = vmatpush1.xpose.msra.mxu0 0.0
      %809 = vmatprep.mubr.f32.mxu0 0.0
      %810 = vmatmul.mubr.f32.gmra.mrb[0].mxu0 %v741
      %v811 = vpop.f32.mrb[0].mxu0
      %v812 = vadd.f32 0.0, %v811
      %v813 = vpop.f32.mrb[0].mxu0
      %814 = vdwg.mxu0
      %v815 = vmul.f32 %v812, 0.35355338
      %v816 = vadd.f32 %v815, %v236
      %v817 = vsel %vm237, %v816, -inf
      %818 = vmax.xlane.f32.xlu0 %v817
      %v819 = vpop.xlane.xlu0 %818
      %v820 = vsub.f32 %v816, %v819
      %v821 = vmul.f32 %v820, 1.442695
      %v822 = vpow.pop %v821
      %v823 = vsel %vm237, %v822, 0.0
      %824 = vadd.xlane.f32.xlu0 %v823
      %v825 = vpop.xlane.xlu0 %824
      %v826 = vrcp.pop %v825
      %v827 = vmul.f32 %v822, %v826
      %828 = vrot.lane.b32.xlu0 %v225, 72
      %v829 = vpop.permute.xlu0 %828
      %v832 = vsel %vm237, %v827, 0
      %834 = vmatprep.subr.mxu0 0.0
      %835 = vmatpush1.msra.mxu0 %v829
      %836 = vmatprep.subr.mxu0 0.0
      %837 = vmatpush1.msra.mxu0 0.0
      %838 = vmatprep.subr.mxu0 0.0
      %839 = vmatpush1.msra.mxu0 0.0
      %840 = vmatprep.subr.mxu0 0.0
      %841 = vmatpush1.msra.mxu0 0.0
      %842 = vmatprep.subr.mxu0 0.0
      %843 = vmatpush1.msra.mxu0 0.0
      %844 = vmatprep.subr.mxu0 0.0
      %845 = vmatpush1.msra.mxu0 0.0
      %846 = vmatprep.subr.mxu0 0.0
      %847 = vmatpush1.msra.mxu0 0.0
      %848 = vmatprep.subr.mxu0 0.0
      %849 = vmatpush1.msra.mxu0 0.0
      %850 = vmatprep.subr.mxu0 0.0
      %851 = vmatpush1.msra.mxu0 0.0
      %852 = vmatprep.subr.mxu0 0.0
      %853 = vmatpush1.msra.mxu0 0.0
      %854 = vmatprep.subr.mxu0 0.0
      %855 = vmatpush1.msra.mxu0 0.0
      %856 = vmatprep.subr.mxu0 0.0
      %857 = vmatpush1.msra.mxu0 0.0
      %858 = vmatprep.subr.mxu0 0.0
      %859 = vmatpush1.msra.mxu0 0.0
      %860 = vmatprep.subr.mxu0 0.0
      %861 = vmatpush1.msra.mxu0 0.0
      %862 = vmatprep.subr.mxu0 0.0
      %863 = vmatpush1.msra.mxu0 0.0
      %864 = vmatprep.subr.mxu0 0.0
      %865 = vmatpush1.msra.mxu0 0.0
      %866 = vmatprep.subr.mxu0 0.0
      %867 = vmatpush1.msra.mxu0 0.0
      %868 = vmatprep.subr.mxu0 0.0
      %869 = vmatpush1.msra.mxu0 0.0
      %870 = vmatprep.subr.mxu0 0.0
      %871 = vmatpush1.msra.mxu0 0.0
      %872 = vmatprep.subr.mxu0 0.0
      %873 = vmatpush1.msra.mxu0 0.0
      %874 = vmatprep.subr.mxu0 0.0
      %875 = vmatpush1.msra.mxu0 0.0
      %876 = vmatprep.subr.mxu0 0.0
      %877 = vmatpush1.msra.mxu0 0.0
      %878 = vmatprep.subr.mxu0 0.0
      %879 = vmatpush1.msra.mxu0 0.0
      %880 = vmatprep.subr.mxu0 0.0
      %881 = vmatpush1.msra.mxu0 0.0
      %882 = vmatprep.subr.mxu0 0.0
      %883 = vmatpush1.msra.mxu0 0.0
      %884 = vmatprep.subr.mxu0 0.0
      %885 = vmatpush1.msra.mxu0 0.0
      %886 = vmatprep.subr.mxu0 0.0
      %887 = vmatpush1.msra.mxu0 0.0
      %888 = vmatprep.subr.mxu0 0.0
      %889 = vmatpush1.msra.mxu0 0.0
      %890 = vmatprep.subr.mxu0 0.0
      %891 = vmatpush1.msra.mxu0 0.0
      %892 = vmatprep.subr.mxu0 0.0
      %893 = vmatpush1.msra.mxu0 0.0
      %894 = vmatprep.subr.mxu0 0.0
      %895 = vmatpush1.msra.mxu0 0.0
      %896 = vmatprep.subr.mxu0 0.0
      %897 = vmatpush1.msra.mxu0 0.0
      %898 = vmatprep.mubr.f32.mxu0 0.0
      %899 = vmatmul.mubr.f32.gmra.mrb[0].mxu0 %v832
      %v900 = vpop.f32.mrb[0].mxu0
      %v901 = vadd.f32 0.0, %v900
      %v902 = vpop.f32.mrb[0].mxu0
      %903 = vdwg.mxu0
      %905 = vrot.lane.b32.xlu0 %v567, 8
      %v906 = vpop.permute.xlu0 %905
      %909 = vrot.lane.b32.xlu0 %v734, 16
      %v910 = vpop.permute.xlu0 %909
      %913 = vrot.lane.b32.xlu0 %v901, 24
      %v914 = vpop.permute.xlu0 %913
      %v916 = vsel %vm237, %v400, %v906
      %vm917 = vcmask 130048
      %v918 = vsel %vm917, %v916, %v910
      %vm919 = vcmask 195584
      %v920 = vsel %vm919, %v918, %v914
      %vm921 = vcmask 261120
      %922 = vst.msk [vmem:[%s223] sm:$0xff] %vm921, %v920
      %p923 = scmp.lt.s32.totalorder %s15, 1
      %s924 = scalar_select %p923, %s15, 1
      %s925 = smul.addr %s924, 8
      %s926 = scalar_lea.vmem %s4, %s925
      // Predicated region
      $region37: #{decoder_forward.28} parent=35 // pred_check
        %p927 = pneg %p132
      $region38: #{decoder_forward.28} parent=35 // pred_check_branch
        %929 = sbr.rel (%p927) target = $region40
      $region39: #{decoder_forward.28} parent=35 // pred_region
        _
      $region40: #{decoder_forward.28} parent=35 // pred_fallthru
        _
    $region36: #{decoder_forward.28} parent=5 // pred_fallthru
      _
    %p930 = scmp.le.s32.totalorder 2, %s10
    // Predicated region
    $region41: #{decoder_forward.28} parent=5 // pred_check
      %p931 = pneg %p930
    $region42: #{decoder_forward.28} parent=5 // pred_check_branch
      %933 = sbr.rel (%p931) target = $region44
    $region43: #{decoder_forward.28} parent=5 // pred_region
      %s934 = ssub.s32 %s10, 2
      // Predicated region
      $region45: #{decoder_forward.28} parent=43 // pred_check
        %p935 = pneg %p138
      $region46: #{decoder_forward.28} parent=43 // pred_check_branch
        %937 = sbr.rel (%p935) target = $region48
      $region47: #{decoder_forward.28} parent=43 // pred_region
        %p938 = scmp.lt.s32.totalorder %s16, 1
        %s939 = scalar_select %p938, %s16, 1
        %s940 = smul.addr %s939, 8
        %s941 = scalar_lea.vmem %s4, %s940
      $region48: #{decoder_forward.28} parent=43 // pred_fallthru
        _
    $region44: #{decoder_forward.28} parent=5 // pred_fallthru
      _
  $region6: #{decoder_forward.28} parent=0 // loop_footer
    %s14 = sadd.s32 1, %s10
  $region7: #{decoder_forward.28} parent=0 // loop_footer_branch
    %9 = sbr.rel target = $region3
  $region8: #{decoder_forward.28} parent=0 // loop_exit
    _

</llo_original>
